<compile_context>
chip_gen: v6e
topology: v6e:2x2x1
jax: 0.10.0
libtpu: 0.0.40
codegen_flags: <defaults>
</compile_context>

<pallas_src>
import math

import numpy as np
import jax
import jax.numpy as jnp
from jax.experimental import pallas as pl
from jax.experimental.pallas import tpu as pltpu

# ---- model hyper-parameters ----
B = 2            # batch
S = 8            # seq len
D_MODEL = 32
N_HEAD = 4
N_KV_HEAD = 2
D_HEAD = 8
D_INTER = 64
EPS = 1e-6
SCALE = 1.0 / math.sqrt(D_HEAD)

# ---- padded / derived sizes (lane-dense layout) ----
DP = 128                 # d_model padded to a full 128-lane tile
DIP = 128                # d_inter padded to a full 128-lane tile
BS = B * S               # 16 rows = 2 sublane tiles
G = N_HEAD // N_KV_HEAD  # GQA group size
NEG = -1e30              # finite large-negative additive mask


# ----------------------------- kernel -----------------------------
def shared_block_kernel(x_ref, wn1_ref, wq_ref, wqr_ref, wk_ref, wkr_ref,
                        wv_ref, wo_ref, wn2_ref, wg_ref, wu_ref, wd_ref,
                        cos_ref, sin_ref, mask_ref, o_ref):
    x = x_ref[...]                                   # (BS, DP); cols >= D_MODEL are zero

    # ---------------- RMSNorm 1 (sum / true D_MODEL: padding-safe) ----------------
    ms = jnp.sum(x * x, axis=-1, keepdims=True) * (1.0 / D_MODEL)
    h = x * jax.lax.rsqrt(ms + EPS) * wn1_ref[...]   # (BS, DP)

    cos = cos_ref[...]                               # (BS, D_HEAD)
    sin = sin_ref[...]
    mask = mask_ref[...]                             # (S, S) additive 0 / -1e30

    # ---------------- GQA attention ----------------
    attn_out = jnp.zeros((BS, DP), jnp.float32)
    for kvh in range(N_KV_HEAD):
        # K / V projections for this kv head; rotate_half is folded into wkr.
        k_h = jnp.dot(h, wk_ref[kvh], preferred_element_type=jnp.float32)    # (BS, Dh)
        kr_h = jnp.dot(h, wkr_ref[kvh], preferred_element_type=jnp.float32)
        k_h = k_h * cos + kr_h * sin                                         # RoPE
        v_h = jnp.dot(h, wv_ref[kvh], preferred_element_type=jnp.float32)

        for g in range(G):
            hh = kvh * G + g                         # repeat_interleave semantics
            q_h = jnp.dot(h, wq_ref[hh], preferred_element_type=jnp.float32)
            qr_h = jnp.dot(h, wqr_ref[hh], preferred_element_type=jnp.float32)
            q_h = q_h * cos + qr_h * sin             # RoPE

            ctx_parts = []
            for b in range(B):                       # sublane-tile-aligned batch slices
                qb = q_h[b * S:(b + 1) * S]          # (S, Dh)
                kb = k_h[b * S:(b + 1) * S]
                vb = v_h[b * S:(b + 1) * S]
                scores = jax.lax.dot_general(
                    qb, kb, (((1,), (1,)), ((), ())),
                    preferred_element_type=jnp.float32) * SCALE              # (S, S)
                scores = scores + mask
                m = jnp.max(scores, axis=-1, keepdims=True)
                e = jnp.exp(scores - m)
                # softmax normalizer on the EUP (approx reciprocal)
                p = e * pl.reciprocal(jnp.sum(e, axis=-1, keepdims=True), approx=True)
                ctx_parts.append(jnp.dot(p, vb, preferred_element_type=jnp.float32))
            ctx_h = jnp.concatenate(ctx_parts, axis=0)                       # (BS, Dh)
            # per-head output projection, accumulated -> no lane concat of heads
            attn_out = attn_out + jnp.dot(ctx_h, wo_ref[hh],
                                          preferred_element_type=jnp.float32)

    x1 = x + attn_out                                # residual 1 (padded cols stay 0)

    # ---------------- RMSNorm 2 + SiLU-gated FFN ----------------
    ms2 = jnp.sum(x1 * x1, axis=-1, keepdims=True) * (1.0 / D_MODEL)
    h2 = x1 * jax.lax.rsqrt(ms2 + EPS) * wn2_ref[...]
    gate_pre = jnp.dot(h2, wg_ref[...], preferred_element_type=jnp.float32)  # (BS, DIP)
    gate = gate_pre * jax.nn.sigmoid(gate_pre)       # SiLU
    up = jnp.dot(h2, wu_ref[...], preferred_element_type=jnp.float32)
    ffn = jnp.dot(gate * up, wd_ref[...], preferred_element_type=jnp.float32)

    o_ref[...] = x1 + ffn                            # lane-dense (BS, 128) store


# ----------------------------- wrapper -----------------------------
def _rotate_half_matrix(n_heads, d_head):
    """P such that (z @ P) == rotate_half(z) applied independently per head block."""
    half = d_head // 2
    p = np.zeros((n_heads * d_head, n_heads * d_head), np.float32)
    for hh in range(n_heads):
        o = hh * d_head
        for j in range(half):
            p[o + j + half, o + j] = -1.0     # out[j]        = -in[j + half]
            p[o + j, o + j + half] = 1.0      # out[j + half] =  in[j]
    return jnp.asarray(p)


def _pad2(w, rows, cols):
    r, c = w.shape
    return jnp.pad(w, ((0, rows - r), (0, cols - c)))


def _split_in_heads(w_t, n_heads):
    """(D_MODEL, n*Dh) -> (n, DP, Dh), zero-padding the d_model axis."""
    w = jnp.pad(w_t, ((0, DP - D_MODEL), (0, 0)))
    return w.reshape(DP, n_heads, D_HEAD).transpose(1, 0, 2)


def prepare_kernel_inputs(x, params, cos, sin):
    x_p = jnp.pad(x, ((0, 0), (0, 0), (0, DP - D_MODEL))).reshape(BS, DP)
    wn1 = _pad2(params["wn1"], 1, DP)
    wn2 = _pad2(params["wn2"], 1, DP)

    pq = _rotate_half_matrix(N_HEAD, D_HEAD)
    pk = _rotate_half_matrix(N_KV_HEAD, D_HEAD)

    wq_h = _split_in_heads(params["wq_t"], N_HEAD)
    wqr_h = _split_in_heads(params["wq_t"] @ pq, N_HEAD)      # rotate folded into weight
    wk_h = _split_in_heads(params["wk_t"], N_KV_HEAD)
    wkr_h = _split_in_heads(params["wk_t"] @ pk, N_KV_HEAD)
    wv_h = _split_in_heads(params["wv_t"], N_KV_HEAD)

    wo_h = _pad2(params["wo_t"], N_HEAD * D_HEAD, DP).reshape(N_HEAD, D_HEAD, DP)

    wg = _pad2(params["wg_t"], DP, DIP)
    wu = _pad2(params["wu_t"], DP, DIP)
    wd = _pad2(params["wd_t"], DIP, DP)

    cos2 = jnp.tile(cos, (B, 1))                              # (BS, D_HEAD)
    sin2 = jnp.tile(sin, (B, 1))
    mask = jnp.triu(jnp.full((S, S), NEG, jnp.float32), k=1)  # additive causal mask

    return (x_p, wn1, wq_h, wqr_h, wk_h, wkr_h, wv_h, wo_h, wn2,
            wg, wu, wd, cos2, sin2, mask)


def _full_spec(shape):
    nd = len(shape)
    return pl.BlockSpec(shape, lambda i: (0,) * nd)


def shared_block(x, params, cos, sin):
    """x: (B, S, D_MODEL) f32. params: dict of pre-transposed weights."""
    args = prepare_kernel_inputs(x, params, cos, sin)

    out = pl.pallas_call(
        shared_block_kernel,
        out_shape=jax.ShapeDtypeStruct((BS, DP), jnp.float32),
        grid=(1,),                                    # whole problem in ONE grid step
        in_specs=[_full_spec(a.shape) for a in args],
        out_specs=_full_spec((BS, DP)),
        compiler_params=pltpu.CompilerParams(dimension_semantics=("arbitrary",)),
    )(*args)
    return out.reshape(B, S, DP)[:, :, :D_MODEL]


# ---------------- pure-JAX reference (mirrors PyTorch module) ----------------
def _ref_rotate_half(a):
    half = a.shape[-1] // 2
    return jnp.concatenate([-a[..., half:], a[..., :half]], axis=-1)


def reference_shared_block(x, params, cos, sin):
    def rmsnorm(t, w):
        return t * jax.lax.rsqrt(jnp.mean(t * t, axis=-1, keepdims=True) + EPS) * w[0]

    h = rmsnorm(x, params["wn1"])
    q = (h @ params["wq_t"]).reshape(B, S, N_HEAD, D_HEAD).transpose(0, 2, 1, 3)
    k = (h @ params["wk_t"]).reshape(B, S, N_KV_HEAD, D_HEAD).transpose(0, 2, 1, 3)
    v = (h @ params["wv_t"]).reshape(B, S, N_KV_HEAD, D_HEAD).transpose(0, 2, 1, 3)
    c = cos[None, None]
    s = sin[None, None]
    q = q * c + _ref_rotate_half(q) * s
    k = k * c + _ref_rotate_half(k) * s
    k = jnp.repeat(k, G, axis=1)
    v = jnp.repeat(v, G, axis=1)
    scores = jnp.einsum("bhqd,bhkd->bhqk", q, k) * SCALE
    causal = jnp.triu(jnp.ones((S, S), bool), k=1)
    scores = jnp.where(causal[None, None], -jnp.inf, scores)
    probs = jax.nn.softmax(scores, axis=-1)
    ctx = jnp.einsum("bhqk,bhkd->bhqd", probs, v)
    ctx = ctx.transpose(0, 2, 1, 3).reshape(B, S, N_HEAD * D_HEAD)
    x1 = x + ctx @ params["wo_t"]
    h2 = rmsnorm(x1, params["wn2"])
    gate = jax.nn.silu(h2 @ params["wg_t"])
    up = h2 @ params["wu_t"]
    return x1 + (gate * up) @ params["wd_t"]


def make_params(key):
    ks = jax.random.split(key, 10)
    scale = 0.05
    params = {
        "wn1": 1.0 + 0.1 * jax.random.normal(ks[0], (1, D_MODEL), jnp.float32),
        "wn2": 1.0 + 0.1 * jax.random.normal(ks[1], (1, D_MODEL), jnp.float32),
        "wq_t": scale * jax.random.normal(ks[2], (D_MODEL, N_HEAD * D_HEAD), jnp.float32),
        "wk_t": scale * jax.random.normal(ks[3], (D_MODEL, N_KV_HEAD * D_HEAD), jnp.float32),
        "wv_t": scale * jax.random.normal(ks[4], (D_MODEL, N_KV_HEAD * D_HEAD), jnp.float32),
        "wo_t": scale * jax.random.normal(ks[5], (N_HEAD * D_HEAD, D_MODEL), jnp.float32),
        "wg_t": scale * jax.random.normal(ks[6], (D_MODEL, D_INTER), jnp.float32),
        "wu_t": scale * jax.random.normal(ks[7], (D_MODEL, D_INTER), jnp.float32),
        "wd_t": scale * jax.random.normal(ks[8], (D_INTER, D_MODEL), jnp.float32),
    }
    return params, ks[9]


def make_rotary(seq_len, dim):
    inv_freq = 1.0 / (10000.0 ** (jnp.arange(0, dim, 2, dtype=jnp.float32) / dim))
    t = jnp.arange(seq_len, dtype=jnp.float32)
    freqs = jnp.einsum("i,j->ij", t, inv_freq)
    emb = jnp.concatenate([freqs, freqs], axis=-1)
    return jnp.cos(emb), jnp.sin(emb)       # each (S, D_HEAD)


if __name__ == "__main__":
    key = jax.random.PRNGKey(0)
    params, xkey = make_params(key)
    x = jax.random.normal(xkey, (B, S, D_MODEL), jnp.float32)
    cos, sin = make_rotary(S, D_HEAD)

    # TODO(synk): only the default causal mask (attention_mask=None) is supported.
    out = jax.block_until_ready(shared_block(x, params, cos, sin))

    ref = reference_shared_block(x, params, cos, sin)
    # Tolerance accounts for the approximate EUP reciprocal used in the softmax
    # normalizer (everything else is exact f32); real semantic bugs would be >> 1e-3.
    np.testing.assert_allclose(np.asarray(out), np.asarray(ref), rtol=1e-3, atol=1e-3)

    print("KERNEL_OK")
</pallas_src>

<mosaic_0001>
module attributes {stable_mosaic.version = 11 : i64} {
  func.func @shared_block_kernel(%arg0: i32, %arg1: memref<16x128xf32, #tpu.memory_space<vmem>>, %arg2: memref<1x128xf32, #tpu.memory_space<vmem>>, %arg3: memref<4x128x8xf32, #tpu.memory_space<vmem>>, %arg4: memref<4x128x8xf32, #tpu.memory_space<vmem>>, %arg5: memref<2x128x8xf32, #tpu.memory_space<vmem>>, %arg6: memref<2x128x8xf32, #tpu.memory_space<vmem>>, %arg7: memref<2x128x8xf32, #tpu.memory_space<vmem>>, %arg8: memref<4x8x128xf32, #tpu.memory_space<vmem>>, %arg9: memref<1x128xf32, #tpu.memory_space<vmem>>, %arg10: memref<128x128xf32, #tpu.memory_space<vmem>>, %arg11: memref<128x128xf32, #tpu.memory_space<vmem>>, %arg12: memref<128x128xf32, #tpu.memory_space<vmem>>, %arg13: memref<16x8xf32, #tpu.memory_space<vmem>>, %arg14: memref<16x8xf32, #tpu.memory_space<vmem>>, %arg15: memref<8x8xf32, #tpu.memory_space<vmem>>, %arg16: memref<16x128xf32, #tpu.memory_space<vmem>>) attributes {dimension_semantics = [#tpu.dimension_semantics<arbitrary>], iteration_bounds = array<i64: 1>, scalar_prefetch = 0 : i64, scratch_operands = 0 : i64, tpu.core_type = #tpu.core_type<tc>, window_params = [{pipeline_mode = #tpu.pipeline_mode<synchronous>, transform_indices = @transform_0, window_bounds = array<i64: 16, 128>}, {pipeline_mode = #tpu.pipeline_mode<synchronous>, transform_indices = @transform_1, window_bounds = array<i64: 1, 128>}, {pipeline_mode = #tpu.pipeline_mode<synchronous>, transform_indices = @transform_2, window_bounds = array<i64: 4, 128, 8>}, {pipeline_mode = #tpu.pipeline_mode<synchronous>, transform_indices = @transform_3, window_bounds = array<i64: 4, 128, 8>}, {pipeline_mode = #tpu.pipeline_mode<synchronous>, transform_indices = @transform_4, window_bounds = array<i64: 2, 128, 8>}, {pipeline_mode = #tpu.pipeline_mode<synchronous>, transform_indices = @transform_5, window_bounds = array<i64: 2, 128, 8>}, {pipeline_mode = #tpu.pipeline_mode<synchronous>, transform_indices = @transform_6, window_bounds = array<i64: 2, 128, 8>}, {pipeline_mode = #tpu.pipeline_mode<synchronous>, transform_indices = @transform_7, window_bounds = array<i64: 4, 8, 128>}, {pipeline_mode = #tpu.pipeline_mode<synchronous>, transform_indices = @transform_8, window_bounds = array<i64: 1, 128>}, {pipeline_mode = #tpu.pipeline_mode<synchronous>, transform_indices = @transform_9, window_bounds = array<i64: 128, 128>}, {pipeline_mode = #tpu.pipeline_mode<synchronous>, transform_indices = @transform_10, window_bounds = array<i64: 128, 128>}, {pipeline_mode = #tpu.pipeline_mode<synchronous>, transform_indices = @transform_11, window_bounds = array<i64: 128, 128>}, {pipeline_mode = #tpu.pipeline_mode<synchronous>, transform_indices = @transform_12, window_bounds = array<i64: 16, 8>}, {pipeline_mode = #tpu.pipeline_mode<synchronous>, transform_indices = @transform_13, window_bounds = array<i64: 16, 8>}, {pipeline_mode = #tpu.pipeline_mode<synchronous>, transform_indices = @transform_14, window_bounds = array<i64: 8, 8>}, {pipeline_mode = #tpu.pipeline_mode<synchronous>, transform_indices = @transform_15, window_bounds = array<i64: 16, 128>}]} {
    %c0 = arith.constant 0 : index
    %c0_0 = arith.constant 0 : index
    %0 = vector.load %arg1[%c0, %c0_0] : memref<16x128xf32, #tpu.memory_space<vmem>>, vector<16x128xf32>
    %1 = arith.mulf %0, %0 : vector<16x128xf32>
    %cst = arith.constant dense<0.000000e+00> : vector<16xf32>
    %2 = vector.multi_reduction <add>, %1, %cst [1] : vector<16x128xf32> to vector<16xf32>
    %3 = vector.shape_cast %2 : vector<16xf32> to vector<16x1xf32>
    %cst_1 = arith.constant 3.125000e-02 : f32
    %4 = vector.broadcast %cst_1 : f32 to vector<16x1xf32>
    %5 = arith.mulf %3, %4 : vector<16x1xf32>
    %cst_2 = arith.constant 9.99999997E-7 : f32
    %6 = vector.broadcast %cst_2 : f32 to vector<16x1xf32>
    %7 = arith.addf %5, %6 : vector<16x1xf32>
    %8 = math.rsqrt %7 : vector<16x1xf32>
    %9 = vector.broadcast %8 : vector<16x1xf32> to vector<16x128xf32>
    %10 = arith.mulf %0, %9 : vector<16x128xf32>
    %c0_3 = arith.constant 0 : index
    %c0_4 = arith.constant 0 : index
    %11 = vector.load %arg2[%c0_3, %c0_4] : memref<1x128xf32, #tpu.memory_space<vmem>>, vector<1x128xf32>
    %12 = vector.broadcast %11 : vector<1x128xf32> to vector<16x128xf32>
    %13 = arith.mulf %10, %12 : vector<16x128xf32>
    %c0_5 = arith.constant 0 : index
    %c0_6 = arith.constant 0 : index
    %14 = vector.load %arg13[%c0_5, %c0_6] : memref<16x8xf32, #tpu.memory_space<vmem>>, vector<16x8xf32>
    %c0_7 = arith.constant 0 : index
    %c0_8 = arith.constant 0 : index
    %15 = vector.load %arg14[%c0_7, %c0_8] : memref<16x8xf32, #tpu.memory_space<vmem>>, vector<16x8xf32>
    %c0_9 = arith.constant 0 : index
    %c0_10 = arith.constant 0 : index
    %16 = vector.load %arg15[%c0_9, %c0_10] : memref<8x8xf32, #tpu.memory_space<vmem>>, vector<8x8xf32>
    %cst_11 = arith.constant 0.000000e+00 : f32
    %17 = vector.broadcast %cst_11 : f32 to vector<16x128xf32>
    %c0_12 = arith.constant 0 : index
    %c0_13 = arith.constant 0 : index
    %c0_14 = arith.constant 0 : index
    %18 = vector.load %arg5[%c0_12, %c0_13, %c0_14] : memref<2x128x8xf32, #tpu.memory_space<vmem>>, vector<1x128x8xf32>
    %19 = vector.shape_cast %18 : vector<1x128x8xf32> to vector<128x8xf32>
    %cst_15 = arith.constant dense<0.000000e+00> : vector<16x8xf32>
    %20 = tpu.matmul %13, %19, %cst_15 {dimension_numbers = #tpu.dot_dimension_numbers<[1], [0], [0], [1], [0, 0, 1, 1], [], []>} : vector<16x128xf32>, vector<128x8xf32>, vector<16x8xf32> -> vector<16x8xf32>
    %c0_16 = arith.constant 0 : index
    %c0_17 = arith.constant 0 : index
    %c0_18 = arith.constant 0 : index
    %21 = vector.load %arg6[%c0_16, %c0_17, %c0_18] : memref<2x128x8xf32, #tpu.memory_space<vmem>>, vector<1x128x8xf32>
    %22 = vector.shape_cast %21 : vector<1x128x8xf32> to vector<128x8xf32>
    %cst_19 = arith.constant dense<0.000000e+00> : vector<16x8xf32>
    %23 = tpu.matmul %13, %22, %cst_19 {dimension_numbers = #tpu.dot_dimension_numbers<[1], [0], [0], [1], [0, 0, 1, 1], [], []>} : vector<16x128xf32>, vector<128x8xf32>, vector<16x8xf32> -> vector<16x8xf32>
    %24 = arith.mulf %20, %14 : vector<16x8xf32>
    %25 = arith.mulf %23, %15 : vector<16x8xf32>
    %26 = arith.addf %24, %25 : vector<16x8xf32>
    %c0_20 = arith.constant 0 : index
    %c0_21 = arith.constant 0 : index
    %c0_22 = arith.constant 0 : index
    %27 = vector.load %arg7[%c0_20, %c0_21, %c0_22] : memref<2x128x8xf32, #tpu.memory_space<vmem>>, vector<1x128x8xf32>
    %28 = vector.shape_cast %27 : vector<1x128x8xf32> to vector<128x8xf32>
    %cst_23 = arith.constant dense<0.000000e+00> : vector<16x8xf32>
    %29 = tpu.matmul %13, %28, %cst_23 {dimension_numbers = #tpu.dot_dimension_numbers<[1], [0], [0], [1], [0, 0, 1, 1], [], []>} : vector<16x128xf32>, vector<128x8xf32>, vector<16x8xf32> -> vector<16x8xf32>
    %c0_24 = arith.constant 0 : index
    %c0_25 = arith.constant 0 : index
    %c0_26 = arith.constant 0 : index
    %30 = vector.load %arg3[%c0_24, %c0_25, %c0_26] : memref<4x128x8xf32, #tpu.memory_space<vmem>>, vector<1x128x8xf32>
    %31 = vector.shape_cast %30 : vector<1x128x8xf32> to vector<128x8xf32>
    %cst_27 = arith.constant dense<0.000000e+00> : vector<16x8xf32>
    %32 = tpu.matmul %13, %31, %cst_27 {dimension_numbers = #tpu.dot_dimension_numbers<[1], [0], [0], [1], [0, 0, 1, 1], [], []>} : vector<16x128xf32>, vector<128x8xf32>, vector<16x8xf32> -> vector<16x8xf32>
    %c0_28 = arith.constant 0 : index
    %c0_29 = arith.constant 0 : index
    %c0_30 = arith.constant 0 : index
    %33 = vector.load %arg4[%c0_28, %c0_29, %c0_30] : memref<4x128x8xf32, #tpu.memory_space<vmem>>, vector<1x128x8xf32>
    %34 = vector.shape_cast %33 : vector<1x128x8xf32> to vector<128x8xf32>
    %cst_31 = arith.constant dense<0.000000e+00> : vector<16x8xf32>
    %35 = tpu.matmul %13, %34, %cst_31 {dimension_numbers = #tpu.dot_dimension_numbers<[1], [0], [0], [1], [0, 0, 1, 1], [], []>} : vector<16x128xf32>, vector<128x8xf32>, vector<16x8xf32> -> vector<16x8xf32>
    %36 = arith.mulf %32, %14 : vector<16x8xf32>
    %37 = arith.mulf %35, %15 : vector<16x8xf32>
    %38 = arith.addf %36, %37 : vector<16x8xf32>
    %39 = vector.extract_strided_slice %38 {offsets = [0, 0], sizes = [8, 8], strides = [1, 1]} : vector<16x8xf32> to vector<8x8xf32>
    %40 = vector.extract_strided_slice %26 {offsets = [0, 0], sizes = [8, 8], strides = [1, 1]} : vector<16x8xf32> to vector<8x8xf32>
    %41 = vector.extract_strided_slice %29 {offsets = [0, 0], sizes = [8, 8], strides = [1, 1]} : vector<16x8xf32> to vector<8x8xf32>
    %cst_32 = arith.constant dense<0.000000e+00> : vector<8x8xf32>
    %42 = tpu.matmul %39, %40, %cst_32 {dimension_numbers = #tpu.dot_dimension_numbers<[1], [1], [0], [0], [0, 0, 1, 0], [], []>} : vector<8x8xf32>, vector<8x8xf32>, vector<8x8xf32> -> vector<8x8xf32>
    %cst_33 = arith.constant 0.353553385 : f32
    %43 = vector.broadcast %cst_33 : f32 to vector<8x8xf32>
    %44 = arith.mulf %42, %43 : vector<8x8xf32>
    %45 = arith.addf %44, %16 : vector<8x8xf32>
    %cst_34 = arith.constant dense<0xFF800000> : vector<8xf32>
    %46 = vector.multi_reduction <maximumf>, %45, %cst_34 [1] : vector<8x8xf32> to vector<8xf32>
    %47 = vector.shape_cast %46 : vector<8xf32> to vector<8x1xf32>
    %48 = vector.broadcast %47 : vector<8x1xf32> to vector<8x8xf32>
    %49 = arith.subf %45, %48 : vector<8x8xf32>
    %50 = math.exp %49 : vector<8x8xf32>
    %cst_35 = arith.constant dense<0.000000e+00> : vector<8xf32>
    %51 = vector.multi_reduction <add>, %50, %cst_35 [1] : vector<8x8xf32> to vector<8xf32>
    %52 = vector.shape_cast %51 : vector<8xf32> to vector<8x1xf32>
    %53 = tpu.reciprocal %52 {approx = true} : vector<8x1xf32> -> vector<8x1xf32>
    %54 = vector.broadcast %53 : vector<8x1xf32> to vector<8x8xf32>
    %55 = arith.mulf %50, %54 : vector<8x8xf32>
    %cst_36 = arith.constant dense<0.000000e+00> : vector<8x8xf32>
    %56 = tpu.matmul %55, %41, %cst_36 {dimension_numbers = #tpu.dot_dimension_numbers<[1], [0], [0], [1], [0, 0, 1, 1], [], []>} : vector<8x8xf32>, vector<8x8xf32>, vector<8x8xf32> -> vector<8x8xf32>
    %57 = vector.extract_strided_slice %38 {offsets = [8, 0], sizes = [8, 8], strides = [1, 1]} : vector<16x8xf32> to vector<8x8xf32>
    %58 = vector.extract_strided_slice %26 {offsets = [8, 0], sizes = [8, 8], strides = [1, 1]} : vector<16x8xf32> to vector<8x8xf32>
    %59 = vector.extract_strided_slice %29 {offsets = [8, 0], sizes = [8, 8], strides = [1, 1]} : vector<16x8xf32> to vector<8x8xf32>
    %cst_37 = arith.constant dense<0.000000e+00> : vector<8x8xf32>
    %60 = tpu.matmul %57, %58, %cst_37 {dimension_numbers = #tpu.dot_dimension_numbers<[1], [1], [0], [0], [0, 0, 1, 0], [], []>} : vector<8x8xf32>, vector<8x8xf32>, vector<8x8xf32> -> vector<8x8xf32>
    %cst_38 = arith.constant 0.353553385 : f32
    %61 = vector.broadcast %cst_38 : f32 to vector<8x8xf32>
    %62 = arith.mulf %60, %61 : vector<8x8xf32>
    %63 = arith.addf %62, %16 : vector<8x8xf32>
    %cst_39 = arith.constant dense<0xFF800000> : vector<8xf32>
    %64 = vector.multi_reduction <maximumf>, %63, %cst_39 [1] : vector<8x8xf32> to vector<8xf32>
    %65 = vector.shape_cast %64 : vector<8xf32> to vector<8x1xf32>
    %66 = vector.broadcast %65 : vector<8x1xf32> to vector<8x8xf32>
    %67 = arith.subf %63, %66 : vector<8x8xf32>
    %68 = math.exp %67 : vector<8x8xf32>
    %cst_40 = arith.constant dense<0.000000e+00> : vector<8xf32>
    %69 = vector.multi_reduction <add>, %68, %cst_40 [1] : vector<8x8xf32> to vector<8xf32>
    %70 = vector.shape_cast %69 : vector<8xf32> to vector<8x1xf32>
    %71 = tpu.reciprocal %70 {approx = true} : vector<8x1xf32> -> vector<8x1xf32>
    %72 = vector.broadcast %71 : vector<8x1xf32> to vector<8x8xf32>
    %73 = arith.mulf %68, %72 : vector<8x8xf32>
    %cst_41 = arith.constant dense<0.000000e+00> : vector<8x8xf32>
    %74 = tpu.matmul %73, %59, %cst_41 {dimension_numbers = #tpu.dot_dimension_numbers<[1], [0], [0], [1], [0, 0, 1, 1], [], []>} : vector<8x8xf32>, vector<8x8xf32>, vector<8x8xf32> -> vector<8x8xf32>
    %75 = tpu.concatenate %56, %74 in 0 : vector<8x8xf32>, vector<8x8xf32> -> vector<16x8xf32>
    %c0_42 = arith.constant 0 : index
    %c0_43 = arith.constant 0 : index
    %c0_44 = arith.constant 0 : index
    %76 = vector.load %arg8[%c0_42, %c0_43, %c0_44] : memref<4x8x128xf32, #tpu.memory_space<vmem>>, vector<1x8x128xf32>
    %77 = vector.shape_cast %76 : vector<1x8x128xf32> to vector<8x128xf32>
    %cst_45 = arith.constant dense<0.000000e+00> : vector<16x128xf32>
    %78 = tpu.matmul %75, %77, %cst_45 {dimension_numbers = #tpu.dot_dimension_numbers<[1], [0], [0], [1], [0, 0, 1, 1], [], []>} : vector<16x8xf32>, vector<8x128xf32>, vector<16x128xf32> -> vector<16x128xf32>
    %79 = arith.addf %17, %78 : vector<16x128xf32>
    %c1 = arith.constant 1 : index
    %c0_46 = arith.constant 0 : index
    %c0_47 = arith.constant 0 : index
    %80 = vector.load %arg3[%c1, %c0_46, %c0_47] : memref<4x128x8xf32, #tpu.memory_space<vmem>>, vector<1x128x8xf32>
    %81 = vector.shape_cast %80 : vector<1x128x8xf32> to vector<128x8xf32>
    %cst_48 = arith.constant dense<0.000000e+00> : vector<16x8xf32>
    %82 = tpu.matmul %13, %81, %cst_48 {dimension_numbers = #tpu.dot_dimension_numbers<[1], [0], [0], [1], [0, 0, 1, 1], [], []>} : vector<16x128xf32>, vector<128x8xf32>, vector<16x8xf32> -> vector<16x8xf32>
    %c1_49 = arith.constant 1 : index
    %c0_50 = arith.constant 0 : index
    %c0_51 = arith.constant 0 : index
    %83 = vector.load %arg4[%c1_49, %c0_50, %c0_51] : memref<4x128x8xf32, #tpu.memory_space<vmem>>, vector<1x128x8xf32>
    %84 = vector.shape_cast %83 : vector<1x128x8xf32> to vector<128x8xf32>
    %cst_52 = arith.constant dense<0.000000e+00> : vector<16x8xf32>
    %85 = tpu.matmul %13, %84, %cst_52 {dimension_numbers = #tpu.dot_dimension_numbers<[1], [0], [0], [1], [0, 0, 1, 1], [], []>} : vector<16x128xf32>, vector<128x8xf32>, vector<16x8xf32> -> vector<16x8xf32>
    %86 = arith.mulf %82, %14 : vector<16x8xf32>
    %87 = arith.mulf %85, %15 : vector<16x8xf32>
    %88 = arith.addf %86, %87 : vector<16x8xf32>
    %89 = vector.extract_strided_slice %88 {offsets = [0, 0], sizes = [8, 8], strides = [1, 1]} : vector<16x8xf32> to vector<8x8xf32>
    %90 = vector.extract_strided_slice %26 {offsets = [0, 0], sizes = [8, 8], strides = [1, 1]} : vector<16x8xf32> to vector<8x8xf32>
    %91 = vector.extract_strided_slice %29 {offsets = [0, 0], sizes = [8, 8], strides = [1, 1]} : vector<16x8xf32> to vector<8x8xf32>
    %cst_53 = arith.constant dense<0.000000e+00> : vector<8x8xf32>
    %92 = tpu.matmul %89, %90, %cst_53 {dimension_numbers = #tpu.dot_dimension_numbers<[1], [1], [0], [0], [0, 0, 1, 0], [], []>} : vector<8x8xf32>, vector<8x8xf32>, vector<8x8xf32> -> vector<8x8xf32>
    %cst_54 = arith.constant 0.353553385 : f32
    %93 = vector.broadcast %cst_54 : f32 to vector<8x8xf32>
    %94 = arith.mulf %92, %93 : vector<8x8xf32>
    %95 = arith.addf %94, %16 : vector<8x8xf32>
    %cst_55 = arith.constant dense<0xFF800000> : vector<8xf32>
    %96 = vector.multi_reduction <maximumf>, %95, %cst_55 [1] : vector<8x8xf32> to vector<8xf32>
    %97 = vector.shape_cast %96 : vector<8xf32> to vector<8x1xf32>
    %98 = vector.broadcast %97 : vector<8x1xf32> to vector<8x8xf32>
    %99 = arith.subf %95, %98 : vector<8x8xf32>
    %100 = math.exp %99 : vector<8x8xf32>
    %cst_56 = arith.constant dense<0.000000e+00> : vector<8xf32>
    %101 = vector.multi_reduction <add>, %100, %cst_56 [1] : vector<8x8xf32> to vector<8xf32>
    %102 = vector.shape_cast %101 : vector<8xf32> to vector<8x1xf32>
    %103 = tpu.reciprocal %102 {approx = true} : vector<8x1xf32> -> vector<8x1xf32>
    %104 = vector.broadcast %103 : vector<8x1xf32> to vector<8x8xf32>
    %105 = arith.mulf %100, %104 : vector<8x8xf32>
    %cst_57 = arith.constant dense<0.000000e+00> : vector<8x8xf32>
    %106 = tpu.matmul %105, %91, %cst_57 {dimension_numbers = #tpu.dot_dimension_numbers<[1], [0], [0], [1], [0, 0, 1, 1], [], []>} : vector<8x8xf32>, vector<8x8xf32>, vector<8x8xf32> -> vector<8x8xf32>
    %107 = vector.extract_strided_slice %88 {offsets = [8, 0], sizes = [8, 8], strides = [1, 1]} : vector<16x8xf32> to vector<8x8xf32>
    %108 = vector.extract_strided_slice %26 {offsets = [8, 0], sizes = [8, 8], strides = [1, 1]} : vector<16x8xf32> to vector<8x8xf32>
    %109 = vector.extract_strided_slice %29 {offsets = [8, 0], sizes = [8, 8], strides = [1, 1]} : vector<16x8xf32> to vector<8x8xf32>
    %cst_58 = arith.constant dense<0.000000e+00> : vector<8x8xf32>
    %110 = tpu.matmul %107, %108, %cst_58 {dimension_numbers = #tpu.dot_dimension_numbers<[1], [1], [0], [0], [0, 0, 1, 0], [], []>} : vector<8x8xf32>, vector<8x8xf32>, vector<8x8xf32> -> vector<8x8xf32>
    %cst_59 = arith.constant 0.353553385 : f32
    %111 = vector.broadcast %cst_59 : f32 to vector<8x8xf32>
    %112 = arith.mulf %110, %111 : vector<8x8xf32>
    %113 = arith.addf %112, %16 : vector<8x8xf32>
    %cst_60 = arith.constant dense<0xFF800000> : vector<8xf32>
    %114 = vector.multi_reduction <maximumf>, %113, %cst_60 [1] : vector<8x8xf32> to vector<8xf32>
    %115 = vector.shape_cast %114 : vector<8xf32> to vector<8x1xf32>
    %116 = vector.broadcast %115 : vector<8x1xf32> to vector<8x8xf32>
    %117 = arith.subf %113, %116 : vector<8x8xf32>
    %118 = math.exp %117 : vector<8x8xf32>
    %cst_61 = arith.constant dense<0.000000e+00> : vector<8xf32>
    %119 = vector.multi_reduction <add>, %118, %cst_61 [1] : vector<8x8xf32> to vector<8xf32>
    %120 = vector.shape_cast %119 : vector<8xf32> to vector<8x1xf32>
    %121 = tpu.reciprocal %120 {approx = true} : vector<8x1xf32> -> vector<8x1xf32>
    %122 = vector.broadcast %121 : vector<8x1xf32> to vector<8x8xf32>
    %123 = arith.mulf %118, %122 : vector<8x8xf32>
    %cst_62 = arith.constant dense<0.000000e+00> : vector<8x8xf32>
    %124 = tpu.matmul %123, %109, %cst_62 {dimension_numbers = #tpu.dot_dimension_numbers<[1], [0], [0], [1], [0, 0, 1, 1], [], []>} : vector<8x8xf32>, vector<8x8xf32>, vector<8x8xf32> -> vector<8x8xf32>
    %125 = tpu.concatenate %106, %124 in 0 : vector<8x8xf32>, vector<8x8xf32> -> vector<16x8xf32>
    %c1_63 = arith.constant 1 : index
    %c0_64 = arith.constant 0 : index
    %c0_65 = arith.constant 0 : index
    %126 = vector.load %arg8[%c1_63, %c0_64, %c0_65] : memref<4x8x128xf32, #tpu.memory_space<vmem>>, vector<1x8x128xf32>
    %127 = vector.shape_cast %126 : vector<1x8x128xf32> to vector<8x128xf32>
    %cst_66 = arith.constant dense<0.000000e+00> : vector<16x128xf32>
    %128 = tpu.matmul %125, %127, %cst_66 {dimension_numbers = #tpu.dot_dimension_numbers<[1], [0], [0], [1], [0, 0, 1, 1], [], []>} : vector<16x8xf32>, vector<8x128xf32>, vector<16x128xf32> -> vector<16x128xf32>
    %129 = arith.addf %79, %128 : vector<16x128xf32>
    %c1_67 = arith.constant 1 : index
    %c0_68 = arith.constant 0 : index
    %c0_69 = arith.constant 0 : index
    %130 = vector.load %arg5[%c1_67, %c0_68, %c0_69] : memref<2x128x8xf32, #tpu.memory_space<vmem>>, vector<1x128x8xf32>
    %131 = vector.shape_cast %130 : vector<1x128x8xf32> to vector<128x8xf32>
    %cst_70 = arith.constant dense<0.000000e+00> : vector<16x8xf32>
    %132 = tpu.matmul %13, %131, %cst_70 {dimension_numbers = #tpu.dot_dimension_numbers<[1], [0], [0], [1], [0, 0, 1, 1], [], []>} : vector<16x128xf32>, vector<128x8xf32>, vector<16x8xf32> -> vector<16x8xf32>
    %c1_71 = arith.constant 1 : index
    %c0_72 = arith.constant 0 : index
    %c0_73 = arith.constant 0 : index
    %133 = vector.load %arg6[%c1_71, %c0_72, %c0_73] : memref<2x128x8xf32, #tpu.memory_space<vmem>>, vector<1x128x8xf32>
    %134 = vector.shape_cast %133 : vector<1x128x8xf32> to vector<128x8xf32>
    %cst_74 = arith.constant dense<0.000000e+00> : vector<16x8xf32>
    %135 = tpu.matmul %13, %134, %cst_74 {dimension_numbers = #tpu.dot_dimension_numbers<[1], [0], [0], [1], [0, 0, 1, 1], [], []>} : vector<16x128xf32>, vector<128x8xf32>, vector<16x8xf32> -> vector<16x8xf32>
    %136 = arith.mulf %132, %14 : vector<16x8xf32>
    %137 = arith.mulf %135, %15 : vector<16x8xf32>
    %138 = arith.addf %136, %137 : vector<16x8xf32>
    %c1_75 = arith.constant 1 : index
    %c0_76 = arith.constant 0 : index
    %c0_77 = arith.constant 0 : index
    %139 = vector.load %arg7[%c1_75, %c0_76, %c0_77] : memref<2x128x8xf32, #tpu.memory_space<vmem>>, vector<1x128x8xf32>
    %140 = vector.shape_cast %139 : vector<1x128x8xf32> to vector<128x8xf32>
    %cst_78 = arith.constant dense<0.000000e+00> : vector<16x8xf32>
    %141 = tpu.matmul %13, %140, %cst_78 {dimension_numbers = #tpu.dot_dimension_numbers<[1], [0], [0], [1], [0, 0, 1, 1], [], []>} : vector<16x128xf32>, vector<128x8xf32>, vector<16x8xf32> -> vector<16x8xf32>
    %c2 = arith.constant 2 : index
    %c0_79 = arith.constant 0 : index
    %c0_80 = arith.constant 0 : index
    %142 = vector.load %arg3[%c2, %c0_79, %c0_80] : memref<4x128x8xf32, #tpu.memory_space<vmem>>, vector<1x128x8xf32>
    %143 = vector.shape_cast %142 : vector<1x128x8xf32> to vector<128x8xf32>
    %cst_81 = arith.constant dense<0.000000e+00> : vector<16x8xf32>
    %144 = tpu.matmul %13, %143, %cst_81 {dimension_numbers = #tpu.dot_dimension_numbers<[1], [0], [0], [1], [0, 0, 1, 1], [], []>} : vector<16x128xf32>, vector<128x8xf32>, vector<16x8xf32> -> vector<16x8xf32>
    %c2_82 = arith.constant 2 : index
    %c0_83 = arith.constant 0 : index
    %c0_84 = arith.constant 0 : index
    %145 = vector.load %arg4[%c2_82, %c0_83, %c0_84] : memref<4x128x8xf32, #tpu.memory_space<vmem>>, vector<1x128x8xf32>
    %146 = vector.shape_cast %145 : vector<1x128x8xf32> to vector<128x8xf32>
    %cst_85 = arith.constant dense<0.000000e+00> : vector<16x8xf32>
    %147 = tpu.matmul %13, %146, %cst_85 {dimension_numbers = #tpu.dot_dimension_numbers<[1], [0], [0], [1], [0, 0, 1, 1], [], []>} : vector<16x128xf32>, vector<128x8xf32>, vector<16x8xf32> -> vector<16x8xf32>
    %148 = arith.mulf %144, %14 : vector<16x8xf32>
    %149 = arith.mulf %147, %15 : vector<16x8xf32>
    %150 = arith.addf %148, %149 : vector<16x8xf32>
    %151 = vector.extract_strided_slice %150 {offsets = [0, 0], sizes = [8, 8], strides = [1, 1]} : vector<16x8xf32> to vector<8x8xf32>
    %152 = vector.extract_strided_slice %138 {offsets = [0, 0], sizes = [8, 8], strides = [1, 1]} : vector<16x8xf32> to vector<8x8xf32>
    %153 = vector.extract_strided_slice %141 {offsets = [0, 0], sizes = [8, 8], strides = [1, 1]} : vector<16x8xf32> to vector<8x8xf32>
    %cst_86 = arith.constant dense<0.000000e+00> : vector<8x8xf32>
    %154 = tpu.matmul %151, %152, %cst_86 {dimension_numbers = #tpu.dot_dimension_numbers<[1], [1], [0], [0], [0, 0, 1, 0], [], []>} : vector<8x8xf32>, vector<8x8xf32>, vector<8x8xf32> -> vector<8x8xf32>
    %cst_87 = arith.constant 0.353553385 : f32
    %155 = vector.broadcast %cst_87 : f32 to vector<8x8xf32>
    %156 = arith.mulf %154, %155 : vector<8x8xf32>
    %157 = arith.addf %156, %16 : vector<8x8xf32>
    %cst_88 = arith.constant dense<0xFF800000> : vector<8xf32>
    %158 = vector.multi_reduction <maximumf>, %157, %cst_88 [1] : vector<8x8xf32> to vector<8xf32>
    %159 = vector.shape_cast %158 : vector<8xf32> to vector<8x1xf32>
    %160 = vector.broadcast %159 : vector<8x1xf32> to vector<8x8xf32>
    %161 = arith.subf %157, %160 : vector<8x8xf32>
    %162 = math.exp %161 : vector<8x8xf32>
    %cst_89 = arith.constant dense<0.000000e+00> : vector<8xf32>
    %163 = vector.multi_reduction <add>, %162, %cst_89 [1] : vector<8x8xf32> to vector<8xf32>
    %164 = vector.shape_cast %163 : vector<8xf32> to vector<8x1xf32>
    %165 = tpu.reciprocal %164 {approx = true} : vector<8x1xf32> -> vector<8x1xf32>
    %166 = vector.broadcast %165 : vector<8x1xf32> to vector<8x8xf32>
    %167 = arith.mulf %162, %166 : vector<8x8xf32>
    %cst_90 = arith.constant dense<0.000000e+00> : vector<8x8xf32>
    %168 = tpu.matmul %167, %153, %cst_90 {dimension_numbers = #tpu.dot_dimension_numbers<[1], [0], [0], [1], [0, 0, 1, 1], [], []>} : vector<8x8xf32>, vector<8x8xf32>, vector<8x8xf32> -> vector<8x8xf32>
    %169 = vector.extract_strided_slice %150 {offsets = [8, 0], sizes = [8, 8], strides = [1, 1]} : vector<16x8xf32> to vector<8x8xf32>
    %170 = vector.extract_strided_slice %138 {offsets = [8, 0], sizes = [8, 8], strides = [1, 1]} : vector<16x8xf32> to vector<8x8xf32>
    %171 = vector.extract_strided_slice %141 {offsets = [8, 0], sizes = [8, 8], strides = [1, 1]} : vector<16x8xf32> to vector<8x8xf32>
    %cst_91 = arith.constant dense<0.000000e+00> : vector<8x8xf32>
    %172 = tpu.matmul %169, %170, %cst_91 {dimension_numbers = #tpu.dot_dimension_numbers<[1], [1], [0], [0], [0, 0, 1, 0], [], []>} : vector<8x8xf32>, vector<8x8xf32>, vector<8x8xf32> -> vector<8x8xf32>
    %cst_92 = arith.constant 0.353553385 : f32
    %173 = vector.broadcast %cst_92 : f32 to vector<8x8xf32>
    %174 = arith.mulf %172, %173 : vector<8x8xf32>
    %175 = arith.addf %174, %16 : vector<8x8xf32>
    %cst_93 = arith.constant dense<0xFF800000> : vector<8xf32>
    %176 = vector.multi_reduction <maximumf>, %175, %cst_93 [1] : vector<8x8xf32> to vector<8xf32>
    %177 = vector.shape_cast %176 : vector<8xf32> to vector<8x1xf32>
    %178 = vector.broadcast %177 : vector<8x1xf32> to vector<8x8xf32>
    %179 = arith.subf %175, %178 : vector<8x8xf32>
    %180 = math.exp %179 : vector<8x8xf32>
    %cst_94 = arith.constant dense<0.000000e+00> : vector<8xf32>
    %181 = vector.multi_reduction <add>, %180, %cst_94 [1] : vector<8x8xf32> to vector<8xf32>
    %182 = vector.shape_cast %181 : vector<8xf32> to vector<8x1xf32>
    %183 = tpu.reciprocal %182 {approx = true} : vector<8x1xf32> -> vector<8x1xf32>
    %184 = vector.broadcast %183 : vector<8x1xf32> to vector<8x8xf32>
    %185 = arith.mulf %180, %184 : vector<8x8xf32>
    %cst_95 = arith.constant dense<0.000000e+00> : vector<8x8xf32>
    %186 = tpu.matmul %185, %171, %cst_95 {dimension_numbers = #tpu.dot_dimension_numbers<[1], [0], [0], [1], [0, 0, 1, 1], [], []>} : vector<8x8xf32>, vector<8x8xf32>, vector<8x8xf32> -> vector<8x8xf32>
    %187 = tpu.concatenate %168, %186 in 0 : vector<8x8xf32>, vector<8x8xf32> -> vector<16x8xf32>
    %c2_96 = arith.constant 2 : index
    %c0_97 = arith.constant 0 : index
    %c0_98 = arith.constant 0 : index
    %188 = vector.load %arg8[%c2_96, %c0_97, %c0_98] : memref<4x8x128xf32, #tpu.memory_space<vmem>>, vector<1x8x128xf32>
    %189 = vector.shape_cast %188 : vector<1x8x128xf32> to vector<8x128xf32>
    %cst_99 = arith.constant dense<0.000000e+00> : vector<16x128xf32>
    %190 = tpu.matmul %187, %189, %cst_99 {dimension_numbers = #tpu.dot_dimension_numbers<[1], [0], [0], [1], [0, 0, 1, 1], [], []>} : vector<16x8xf32>, vector<8x128xf32>, vector<16x128xf32> -> vector<16x128xf32>
    %191 = arith.addf %129, %190 : vector<16x128xf32>
    %c3 = arith.constant 3 : index
    %c0_100 = arith.constant 0 : index
    %c0_101 = arith.constant 0 : index
    %192 = vector.load %arg3[%c3, %c0_100, %c0_101] : memref<4x128x8xf32, #tpu.memory_space<vmem>>, vector<1x128x8xf32>
    %193 = vector.shape_cast %192 : vector<1x128x8xf32> to vector<128x8xf32>
    %cst_102 = arith.constant dense<0.000000e+00> : vector<16x8xf32>
    %194 = tpu.matmul %13, %193, %cst_102 {dimension_numbers = #tpu.dot_dimension_numbers<[1], [0], [0], [1], [0, 0, 1, 1], [], []>} : vector<16x128xf32>, vector<128x8xf32>, vector<16x8xf32> -> vector<16x8xf32>
    %c3_103 = arith.constant 3 : index
    %c0_104 = arith.constant 0 : index
    %c0_105 = arith.constant 0 : index
    %195 = vector.load %arg4[%c3_103, %c0_104, %c0_105] : memref<4x128x8xf32, #tpu.memory_space<vmem>>, vector<1x128x8xf32>
    %196 = vector.shape_cast %195 : vector<1x128x8xf32> to vector<128x8xf32>
    %cst_106 = arith.constant dense<0.000000e+00> : vector<16x8xf32>
    %197 = tpu.matmul %13, %196, %cst_106 {dimension_numbers = #tpu.dot_dimension_numbers<[1], [0], [0], [1], [0, 0, 1, 1], [], []>} : vector<16x128xf32>, vector<128x8xf32>, vector<16x8xf32> -> vector<16x8xf32>
    %198 = arith.mulf %194, %14 : vector<16x8xf32>
    %199 = arith.mulf %197, %15 : vector<16x8xf32>
    %200 = arith.addf %198, %199 : vector<16x8xf32>
    %201 = vector.extract_strided_slice %200 {offsets = [0, 0], sizes = [8, 8], strides = [1, 1]} : vector<16x8xf32> to vector<8x8xf32>
    %202 = vector.extract_strided_slice %138 {offsets = [0, 0], sizes = [8, 8], strides = [1, 1]} : vector<16x8xf32> to vector<8x8xf32>
    %203 = vector.extract_strided_slice %141 {offsets = [0, 0], sizes = [8, 8], strides = [1, 1]} : vector<16x8xf32> to vector<8x8xf32>
    %cst_107 = arith.constant dense<0.000000e+00> : vector<8x8xf32>
    %204 = tpu.matmul %201, %202, %cst_107 {dimension_numbers = #tpu.dot_dimension_numbers<[1], [1], [0], [0], [0, 0, 1, 0], [], []>} : vector<8x8xf32>, vector<8x8xf32>, vector<8x8xf32> -> vector<8x8xf32>
    %cst_108 = arith.constant 0.353553385 : f32
    %205 = vector.broadcast %cst_108 : f32 to vector<8x8xf32>
    %206 = arith.mulf %204, %205 : vector<8x8xf32>
    %207 = arith.addf %206, %16 : vector<8x8xf32>
    %cst_109 = arith.constant dense<0xFF800000> : vector<8xf32>
    %208 = vector.multi_reduction <maximumf>, %207, %cst_109 [1] : vector<8x8xf32> to vector<8xf32>
    %209 = vector.shape_cast %208 : vector<8xf32> to vector<8x1xf32>
    %210 = vector.broadcast %209 : vector<8x1xf32> to vector<8x8xf32>
    %211 = arith.subf %207, %210 : vector<8x8xf32>
    %212 = math.exp %211 : vector<8x8xf32>
    %cst_110 = arith.constant dense<0.000000e+00> : vector<8xf32>
    %213 = vector.multi_reduction <add>, %212, %cst_110 [1] : vector<8x8xf32> to vector<8xf32>
    %214 = vector.shape_cast %213 : vector<8xf32> to vector<8x1xf32>
    %215 = tpu.reciprocal %214 {approx = true} : vector<8x1xf32> -> vector<8x1xf32>
    %216 = vector.broadcast %215 : vector<8x1xf32> to vector<8x8xf32>
    %217 = arith.mulf %212, %216 : vector<8x8xf32>
    %cst_111 = arith.constant dense<0.000000e+00> : vector<8x8xf32>
    %218 = tpu.matmul %217, %203, %cst_111 {dimension_numbers = #tpu.dot_dimension_numbers<[1], [0], [0], [1], [0, 0, 1, 1], [], []>} : vector<8x8xf32>, vector<8x8xf32>, vector<8x8xf32> -> vector<8x8xf32>
    %219 = vector.extract_strided_slice %200 {offsets = [8, 0], sizes = [8, 8], strides = [1, 1]} : vector<16x8xf32> to vector<8x8xf32>
    %220 = vector.extract_strided_slice %138 {offsets = [8, 0], sizes = [8, 8], strides = [1, 1]} : vector<16x8xf32> to vector<8x8xf32>
    %221 = vector.extract_strided_slice %141 {offsets = [8, 0], sizes = [8, 8], strides = [1, 1]} : vector<16x8xf32> to vector<8x8xf32>
    %cst_112 = arith.constant dense<0.000000e+00> : vector<8x8xf32>
    %222 = tpu.matmul %219, %220, %cst_112 {dimension_numbers = #tpu.dot_dimension_numbers<[1], [1], [0], [0], [0, 0, 1, 0], [], []>} : vector<8x8xf32>, vector<8x8xf32>, vector<8x8xf32> -> vector<8x8xf32>
    %cst_113 = arith.constant 0.353553385 : f32
    %223 = vector.broadcast %cst_113 : f32 to vector<8x8xf32>
    %224 = arith.mulf %222, %223 : vector<8x8xf32>
    %225 = arith.addf %224, %16 : vector<8x8xf32>
    %cst_114 = arith.constant dense<0xFF800000> : vector<8xf32>
    %226 = vector.multi_reduction <maximumf>, %225, %cst_114 [1] : vector<8x8xf32> to vector<8xf32>
    %227 = vector.shape_cast %226 : vector<8xf32> to vector<8x1xf32>
    %228 = vector.broadcast %227 : vector<8x1xf32> to vector<8x8xf32>
    %229 = arith.subf %225, %228 : vector<8x8xf32>
    %230 = math.exp %229 : vector<8x8xf32>
    %cst_115 = arith.constant dense<0.000000e+00> : vector<8xf32>
    %231 = vector.multi_reduction <add>, %230, %cst_115 [1] : vector<8x8xf32> to vector<8xf32>
    %232 = vector.shape_cast %231 : vector<8xf32> to vector<8x1xf32>
    %233 = tpu.reciprocal %232 {approx = true} : vector<8x1xf32> -> vector<8x1xf32>
    %234 = vector.broadcast %233 : vector<8x1xf32> to vector<8x8xf32>
    %235 = arith.mulf %230, %234 : vector<8x8xf32>
    %cst_116 = arith.constant dense<0.000000e+00> : vector<8x8xf32>
    %236 = tpu.matmul %235, %221, %cst_116 {dimension_numbers = #tpu.dot_dimension_numbers<[1], [0], [0], [1], [0, 0, 1, 1], [], []>} : vector<8x8xf32>, vector<8x8xf32>, vector<8x8xf32> -> vector<8x8xf32>
    %237 = tpu.concatenate %218, %236 in 0 : vector<8x8xf32>, vector<8x8xf32> -> vector<16x8xf32>
    %c3_117 = arith.constant 3 : index
    %c0_118 = arith.constant 0 : index
    %c0_119 = arith.constant 0 : index
    %238 = vector.load %arg8[%c3_117, %c0_118, %c0_119] : memref<4x8x128xf32, #tpu.memory_space<vmem>>, vector<1x8x128xf32>
    %239 = vector.shape_cast %238 : vector<1x8x128xf32> to vector<8x128xf32>
    %cst_120 = arith.constant dense<0.000000e+00> : vector<16x128xf32>
    %240 = tpu.matmul %237, %239, %cst_120 {dimension_numbers = #tpu.dot_dimension_numbers<[1], [0], [0], [1], [0, 0, 1, 1], [], []>} : vector<16x8xf32>, vector<8x128xf32>, vector<16x128xf32> -> vector<16x128xf32>
    %241 = arith.addf %191, %240 : vector<16x128xf32>
    %242 = arith.addf %0, %241 : vector<16x128xf32>
    %243 = arith.mulf %242, %242 : vector<16x128xf32>
    %cst_121 = arith.constant dense<0.000000e+00> : vector<16xf32>
    %244 = vector.multi_reduction <add>, %243, %cst_121 [1] : vector<16x128xf32> to vector<16xf32>
    %245 = vector.shape_cast %244 : vector<16xf32> to vector<16x1xf32>
    %cst_122 = arith.constant 3.125000e-02 : f32
    %246 = vector.broadcast %cst_122 : f32 to vector<16x1xf32>
    %247 = arith.mulf %245, %246 : vector<16x1xf32>
    %cst_123 = arith.constant 9.99999997E-7 : f32
    %248 = vector.broadcast %cst_123 : f32 to vector<16x1xf32>
    %249 = arith.addf %247, %248 : vector<16x1xf32>
    %250 = math.rsqrt %249 : vector<16x1xf32>
    %251 = vector.broadcast %250 : vector<16x1xf32> to vector<16x128xf32>
    %252 = arith.mulf %242, %251 : vector<16x128xf32>
    %c0_124 = arith.constant 0 : index
    %c0_125 = arith.constant 0 : index
    %253 = vector.load %arg9[%c0_124, %c0_125] : memref<1x128xf32, #tpu.memory_space<vmem>>, vector<1x128xf32>
    %254 = vector.broadcast %253 : vector<1x128xf32> to vector<16x128xf32>
    %255 = arith.mulf %252, %254 : vector<16x128xf32>
    %c0_126 = arith.constant 0 : index
    %c0_127 = arith.constant 0 : index
    %256 = vector.load %arg10[%c0_126, %c0_127] : memref<128x128xf32, #tpu.memory_space<vmem>>, vector<128x128xf32>
    %cst_128 = arith.constant dense<0.000000e+00> : vector<16x128xf32>
    %257 = tpu.matmul %255, %256, %cst_128 {dimension_numbers = #tpu.dot_dimension_numbers<[1], [0], [0], [1], [0, 0, 1, 1], [], []>} : vector<16x128xf32>, vector<128x128xf32>, vector<16x128xf32> -> vector<16x128xf32>
    %258 = arith.negf %257 : vector<16x128xf32>
    %259 = math.exp %258 : vector<16x128xf32>
    %cst_129 = arith.constant 1.000000e+00 : f32
    %260 = vector.broadcast %cst_129 : f32 to vector<16x128xf32>
    %261 = arith.addf %260, %259 : vector<16x128xf32>
    %262 = arith.divf %260, %261 : vector<16x128xf32>
    %263 = arith.mulf %257, %262 : vector<16x128xf32>
    %c0_130 = arith.constant 0 : index
    %c0_131 = arith.constant 0 : index
    %264 = vector.load %arg11[%c0_130, %c0_131] : memref<128x128xf32, #tpu.memory_space<vmem>>, vector<128x128xf32>
    %cst_132 = arith.constant dense<0.000000e+00> : vector<16x128xf32>
    %265 = tpu.matmul %255, %264, %cst_132 {dimension_numbers = #tpu.dot_dimension_numbers<[1], [0], [0], [1], [0, 0, 1, 1], [], []>} : vector<16x128xf32>, vector<128x128xf32>, vector<16x128xf32> -> vector<16x128xf32>
    %266 = arith.mulf %263, %265 : vector<16x128xf32>
    %c0_133 = arith.constant 0 : index
    %c0_134 = arith.constant 0 : index
    %267 = vector.load %arg12[%c0_133, %c0_134] : memref<128x128xf32, #tpu.memory_space<vmem>>, vector<128x128xf32>
    %cst_135 = arith.constant dense<0.000000e+00> : vector<16x128xf32>
    %268 = tpu.matmul %266, %267, %cst_135 {dimension_numbers = #tpu.dot_dimension_numbers<[1], [0], [0], [1], [0, 0, 1, 1], [], []>} : vector<16x128xf32>, vector<128x128xf32>, vector<16x128xf32> -> vector<16x128xf32>
    %269 = arith.addf %242, %268 : vector<16x128xf32>
    %c0_136 = arith.constant 0 : index
    %c0_137 = arith.constant 0 : index
    %270 = vector.load %arg16[%c0_136, %c0_137] : memref<16x128xf32, #tpu.memory_space<vmem>>, vector<16x128xf32>
    tpu.vector_store %arg16[%c0_136, %c0_137], %269 {strides = array<i32>} : memref<16x128xf32, #tpu.memory_space<vmem>>, vector<16x128xf32>,
    return
  }
  func.func @transform_0(%arg0: i32) -> (i32, i32) {
    %c0_i32 = arith.constant 0 : i32
    %c0_i32_0 = arith.constant 0 : i32
    %c0_i32_1 = arith.constant 0 : i32
    return %c0_i32, %c0_i32_0 : i32, i32
  }
  func.func @transform_1(%arg0: i32) -> (i32, i32) {
    %c0_i32 = arith.constant 0 : i32
    %c0_i32_0 = arith.constant 0 : i32
    %c0_i32_1 = arith.constant 0 : i32
    return %c0_i32, %c0_i32_0 : i32, i32
  }
  func.func @transform_2(%arg0: i32) -> (i32, i32, i32) {
    %c0_i32 = arith.constant 0 : i32
    %c0_i32_0 = arith.constant 0 : i32
    %c0_i32_1 = arith.constant 0 : i32
    %c0_i32_2 = arith.constant 0 : i32
    return %c0_i32, %c0_i32_0, %c0_i32_1 : i32, i32, i32
  }
  func.func @transform_3(%arg0: i32) -> (i32, i32, i32) {
    %c0_i32 = arith.constant 0 : i32
    %c0_i32_0 = arith.constant 0 : i32
    %c0_i32_1 = arith.constant 0 : i32
    %c0_i32_2 = arith.constant 0 : i32
    return %c0_i32, %c0_i32_0, %c0_i32_1 : i32, i32, i32
  }
  func.func @transform_4(%arg0: i32) -> (i32, i32, i32) {
    %c0_i32 = arith.constant 0 : i32
    %c0_i32_0 = arith.constant 0 : i32
    %c0_i32_1 = arith.constant 0 : i32
    %c0_i32_2 = arith.constant 0 : i32
    return %c0_i32, %c0_i32_0, %c0_i32_1 : i32, i32, i32
  }
  func.func @transform_5(%arg0: i32) -> (i32, i32, i32) {
    %c0_i32 = arith.constant 0 : i32
    %c0_i32_0 = arith.constant 0 : i32
    %c0_i32_1 = arith.constant 0 : i32
    %c0_i32_2 = arith.constant 0 : i32
    return %c0_i32, %c0_i32_0, %c0_i32_1 : i32, i32, i32
  }
  func.func @transform_6(%arg0: i32) -> (i32, i32, i32) {
    %c0_i32 = arith.constant 0 : i32
    %c0_i32_0 = arith.constant 0 : i32
    %c0_i32_1 = arith.constant 0 : i32
    %c0_i32_2 = arith.constant 0 : i32
    return %c0_i32, %c0_i32_0, %c0_i32_1 : i32, i32, i32
  }
  func.func @transform_7(%arg0: i32) -> (i32, i32, i32) {
    %c0_i32 = arith.constant 0 : i32
    %c0_i32_0 = arith.constant 0 : i32
    %c0_i32_1 = arith.constant 0 : i32
    %c0_i32_2 = arith.constant 0 : i32
    return %c0_i32, %c0_i32_0, %c0_i32_1 : i32, i32, i32
  }
  func.func @transform_8(%arg0: i32) -> (i32, i32) {
    %c0_i32 = arith.constant 0 : i32
    %c0_i32_0 = arith.constant 0 : i32
    %c0_i32_1 = arith.constant 0 : i32
    return %c0_i32, %c0_i32_0 : i32, i32
  }
  func.func @transform_9(%arg0: i32) -> (i32, i32) {
    %c0_i32 = arith.constant 0 : i32
    %c0_i32_0 = arith.constant 0 : i32
    %c0_i32_1 = arith.constant 0 : i32
    return %c0_i32, %c0_i32_0 : i32, i32
  }
  func.func @transform_10(%arg0: i32) -> (i32, i32) {
    %c0_i32 = arith.constant 0 : i32
    %c0_i32_0 = arith.constant 0 : i32
    %c0_i32_1 = arith.constant 0 : i32
    return %c0_i32, %c0_i32_0 : i32, i32
  }
  func.func @transform_11(%arg0: i32) -> (i32, i32) {
    %c0_i32 = arith.constant 0 : i32
    %c0_i32_0 = arith.constant 0 : i32
    %c0_i32_1 = arith.constant 0 : i32
    return %c0_i32, %c0_i32_0 : i32, i32
  }
  func.func @transform_12(%arg0: i32) -> (i32, i32) {
    %c0_i32 = arith.constant 0 : i32
    %c0_i32_0 = arith.constant 0 : i32
    %c0_i32_1 = arith.constant 0 : i32
    return %c0_i32, %c0_i32_0 : i32, i32
  }
  func.func @transform_13(%arg0: i32) -> (i32, i32) {
    %c0_i32 = arith.constant 0 : i32
    %c0_i32_0 = arith.constant 0 : i32
    %c0_i32_1 = arith.constant 0 : i32
    return %c0_i32, %c0_i32_0 : i32, i32
  }
  func.func @transform_14(%arg0: i32) -> (i32, i32) {
    %c0_i32 = arith.constant 0 : i32
    %c0_i32_0 = arith.constant 0 : i32
    %c0_i32_1 = arith.constant 0 : i32
    return %c0_i32, %c0_i32_0 : i32, i32
  }
  func.func @transform_15(%arg0: i32) -> (i32, i32) {
    %c0_i32 = arith.constant 0 : i32
    %c0_i32_0 = arith.constant 0 : i32
    %c0_i32_1 = arith.constant 0 : i32
    return %c0_i32, %c0_i32_0 : i32, i32
  }
}

</mosaic_0001>

<llo_original>
// kernel: tpu_custom_call.1
$region0: #{tpu_custom_call.1}
  #allocation0 [shape = 'u32[]', space=smem, size = 0x4, offset = 0x4, fixed_abs, tag = 'smem constant byte address 0x4 - core index']
  #allocation1 [shape = 'u32[144,128]{1,0:T(1,128)}', space=vmem, size = 0x12000, scoped, tag = 'internal scratch']
  %s0 = inlined_call_operand.vmem [shape: f32[16,128], index: 0, kind: input, shape index: {}]
  %s1 = inlined_call_operand.vmem [shape: f32[1,128], index: 1, kind: input, shape index: {}]
  %s2 = inlined_call_operand.vmem [shape: f32[4,128,8], index: 2, kind: input, shape index: {}]
  %s3 = inlined_call_operand.vmem [shape: f32[4,128,8], index: 3, kind: input, shape index: {}]
  %s4 = inlined_call_operand.vmem [shape: f32[2,128,8], index: 4, kind: input, shape index: {}]
  %s5 = inlined_call_operand.vmem [shape: f32[2,128,8], index: 5, kind: input, shape index: {}]
  %s6 = inlined_call_operand.vmem [shape: f32[2,128,8], index: 6, kind: input, shape index: {}]
  %s7 = inlined_call_operand.vmem [shape: f32[4,8,128], index: 7, kind: input, shape index: {}]
  %s8 = inlined_call_operand.vmem [shape: f32[1,128], index: 8, kind: input, shape index: {}]
  %s9 = inlined_call_operand.vmem [shape: f32[128,128], index: 9, kind: input, shape index: {}]
  %s10 = inlined_call_operand.vmem [shape: f32[128,128], index: 10, kind: input, shape index: {}]
  %s11 = inlined_call_operand.vmem [shape: f32[128,128], index: 11, kind: input, shape index: {}]
  %s12 = inlined_call_operand.vmem [shape: f32[16,8], index: 12, kind: input, shape index: {}]
  %s13 = inlined_call_operand.vmem [shape: f32[16,8], index: 13, kind: input, shape index: {}]
  %s14 = inlined_call_operand.vmem [shape: f32[8,8], index: 14, kind: input, shape index: {}]
  %s15 = inlined_call_operand.hbm [shape: f32[16,128], index: 15, kind: output, shape index: {}]
  %s16 = sld [smem:[#allocation0]]
  $region70: #{tpu_custom_call.1} parent=0
    _
  %s18 = ssub.s32 1, %s16
  %s19 = scalar_select 0, %s18, %s16
  $region1: #{tpu_custom_call.1} parent=0
    #allocation2 [shape = 'u8[8192]{0}', space=vmem, size = 0x2000, scoped, tag = 'output window, operand 0, single buffered']
    #allocation3 [shape = 's32[1]{0}', space=sflag, size = 0x4, scoped, tag = 'scoped memory for tpu_custom_call.1']
    %20 = vsyncpa [#allocation3], 0
    // Predicated region
    $region2: #{tpu_custom_call.1} parent=1 // pred_check
      _
    $region3: #{tpu_custom_call.1} parent=1 // pred_check_branch
      %22 = sbr.rel (0) target = $region5
    $region4: #{tpu_custom_call.1} parent=1 // pred_region
      _
    $region5: #{tpu_custom_call.1} parent=1 // pred_fallthru
      _
    // Predicated region
    $region6: #{tpu_custom_call.1} parent=1 // pred_check
      _
    $region7: #{tpu_custom_call.1} parent=1 // pred_check_branch
      %24 = sbr.rel (0) target = $region9
    $region8: #{tpu_custom_call.1} parent=1 // pred_region
      _
    $region9: #{tpu_custom_call.1} parent=1 // pred_fallthru
      _
    // Predicated region
    $region10: #{tpu_custom_call.1} parent=1 // pred_check
      _
    $region11: #{tpu_custom_call.1} parent=1 // pred_check_branch
      %26 = sbr.rel (0) target = $region13
    $region12: #{tpu_custom_call.1} parent=1 // pred_region
      _
    $region13: #{tpu_custom_call.1} parent=1 // pred_fallthru
      _
    // Predicated region
    $region14: #{tpu_custom_call.1} parent=1 // pred_check
      _
    $region15: #{tpu_custom_call.1} parent=1 // pred_check_branch
      %28 = sbr.rel (0) target = $region17
    $region16: #{tpu_custom_call.1} parent=1 // pred_region
      _
    $region17: #{tpu_custom_call.1} parent=1 // pred_fallthru
      _
    // Predicated region
    $region18: #{tpu_custom_call.1} parent=1 // pred_check
      _
    $region19: #{tpu_custom_call.1} parent=1 // pred_check_branch
      %30 = sbr.rel (0) target = $region21
    $region20: #{tpu_custom_call.1} parent=1 // pred_region
      _
    $region21: #{tpu_custom_call.1} parent=1 // pred_fallthru
      _
    // Predicated region
    $region22: #{tpu_custom_call.1} parent=1 // pred_check
      _
    $region23: #{tpu_custom_call.1} parent=1 // pred_check_branch
      %32 = sbr.rel (0) target = $region25
    $region24: #{tpu_custom_call.1} parent=1 // pred_region
      _
    $region25: #{tpu_custom_call.1} parent=1 // pred_fallthru
      _
    // Predicated region
    $region26: #{tpu_custom_call.1} parent=1 // pred_check
      _
    $region27: #{tpu_custom_call.1} parent=1 // pred_check_branch
      %34 = sbr.rel (0) target = $region29
    $region28: #{tpu_custom_call.1} parent=1 // pred_region
      _
    $region29: #{tpu_custom_call.1} parent=1 // pred_fallthru
      _
    // Predicated region
    $region30: #{tpu_custom_call.1} parent=1 // pred_check
      _
    $region31: #{tpu_custom_call.1} parent=1 // pred_check_branch
      %36 = sbr.rel (0) target = $region33
    $region32: #{tpu_custom_call.1} parent=1 // pred_region
      _
    $region33: #{tpu_custom_call.1} parent=1 // pred_fallthru
      _
    // Predicated region
    $region34: #{tpu_custom_call.1} parent=1 // pred_check
      _
    $region35: #{tpu_custom_call.1} parent=1 // pred_check_branch
      %38 = sbr.rel (0) target = $region37
    $region36: #{tpu_custom_call.1} parent=1 // pred_region
      _
    $region37: #{tpu_custom_call.1} parent=1 // pred_fallthru
      _
    // Predicated region
    $region38: #{tpu_custom_call.1} parent=1 // pred_check
      _
    $region39: #{tpu_custom_call.1} parent=1 // pred_check_branch
      %40 = sbr.rel (0) target = $region41
    $region40: #{tpu_custom_call.1} parent=1 // pred_region
      _
    $region41: #{tpu_custom_call.1} parent=1 // pred_fallthru
      _
    // Predicated region
    $region42: #{tpu_custom_call.1} parent=1 // pred_check
      _
    $region43: #{tpu_custom_call.1} parent=1 // pred_check_branch
      %42 = sbr.rel (0) target = $region45
    $region44: #{tpu_custom_call.1} parent=1 // pred_region
      _
    $region45: #{tpu_custom_call.1} parent=1 // pred_fallthru
      _
    // Predicated region
    $region46: #{tpu_custom_call.1} parent=1 // pred_check
      _
    $region47: #{tpu_custom_call.1} parent=1 // pred_check_branch
      %44 = sbr.rel (0) target = $region49
    $region48: #{tpu_custom_call.1} parent=1 // pred_region
      _
    $region49: #{tpu_custom_call.1} parent=1 // pred_fallthru
      _
    // Predicated region
    $region50: #{tpu_custom_call.1} parent=1 // pred_check
      _
    $region51: #{tpu_custom_call.1} parent=1 // pred_check_branch
      %46 = sbr.rel (0) target = $region53
    $region52: #{tpu_custom_call.1} parent=1 // pred_region
      _
    $region53: #{tpu_custom_call.1} parent=1 // pred_fallthru
      _
    // Predicated region
    $region54: #{tpu_custom_call.1} parent=1 // pred_check
      _
    $region55: #{tpu_custom_call.1} parent=1 // pred_check_branch
      %48 = sbr.rel (0) target = $region57
    $region56: #{tpu_custom_call.1} parent=1 // pred_region
      _
    $region57: #{tpu_custom_call.1} parent=1 // pred_fallthru
      _
    // Predicated region
    $region58: #{tpu_custom_call.1} parent=1 // pred_check
      _
    $region59: #{tpu_custom_call.1} parent=1 // pred_check_branch
      %50 = sbr.rel (0) target = $region61
    $region60: #{tpu_custom_call.1} parent=1 // pred_region
      _
    $region61: #{tpu_custom_call.1} parent=1 // pred_fallthru
      _
    %v51 = vld [vmem:[%s0] sm:$0xff]
    %v52 = vld [vmem:[%s0 + $0x8] sm:$0xff]
    %v53 = vmul.f32 %v51, %v51
    %v54 = vmul.f32 %v52, %v52
    %55 = vadd.xlane.f32.xlu0 %v53
    %v56 = vpop.xlane.xlu0 %55
    %57 = vadd.xlane.f32.xlu0 %v54
    %v58 = vpop.xlane.xlu0 %57
    %v59 = vmul.f32 %v56, 0.03125
    %v60 = vmul.f32 %v58, 0.03125
    %v61 = vadd.f32 %v59, 1e-06
    %v62 = vadd.f32 %v60, 1e-06
    %v63 = vrsqrt.pop %v61
    %v64 = vrsqrt.pop %v62
    %v65 = vmul.f32 %v51, %v63
    %v66 = vmul.f32 %v52, %v64
    %v67 = vld [vmem:[%s1] sm:$0x1]
    %v69 = vlaneseq
    %v70 = vshrl.u32 %v69, 7
    %v71 = vsub.s32 0, %v70
    %v72 = vrot.slane %v67, %v71
    %v74 = vmul.f32 %v65, %v72
    %v75 = vmul.f32 %v66, %v72
    %v76 = vld [vmem:[%s12] sm:$0xff]
    %v77 = vld [vmem:[%s12 + $0x8] sm:$0xff]
    %v78 = vld [vmem:[%s13] sm:$0xff]
    %v79 = vld [vmem:[%s13 + $0x8] sm:$0xff]
    %v80 = vld [vmem:[%s14] sm:$0xff]
    %v81 = vld [vmem:[%s4] sm:$0xff]
    %v82 = vld [vmem:[%s4 + $0x8] sm:$0xff]
    %v83 = vld [vmem:[%s4 + $0x10] sm:$0xff]
    %v84 = vld [vmem:[%s4 + $0x18] sm:$0xff]
    %v85 = vld [vmem:[%s4 + $0x20] sm:$0xff]
    %v86 = vld [vmem:[%s4 + $0x28] sm:$0xff]
    %v87 = vld [vmem:[%s4 + $0x30] sm:$0xff]
    %v88 = vld [vmem:[%s4 + $0x38] sm:$0xff]
    %v89 = vld [vmem:[%s4 + $0x40] sm:$0xff]
    %v90 = vld [vmem:[%s4 + $0x48] sm:$0xff]
    %v91 = vld [vmem:[%s4 + $0x50] sm:$0xff]
    %v92 = vld [vmem:[%s4 + $0x58] sm:$0xff]
    %v93 = vld [vmem:[%s4 + $0x60] sm:$0xff]
    %v94 = vld [vmem:[%s4 + $0x68] sm:$0xff]
    %v95 = vld [vmem:[%s4 + $0x70] sm:$0xff]
    %v96 = vld [vmem:[%s4 + $0x78] sm:$0xff]
    %97 = vmatprep.subr.mxu0 0.0
    %98 = vmatpush1.msra.mxu0 %v96
    %99 = vmatprep.subr.mxu0 0.0
    %100 = vmatpush1.msra.mxu0 %v95
    %101 = vmatprep.subr.mxu0 0.0
    %102 = vmatpush1.msra.mxu0 %v94
    %103 = vmatprep.subr.mxu0 0.0
    %104 = vmatpush1.msra.mxu0 %v93
    %105 = vmatprep.subr.mxu0 0.0
    %106 = vmatpush1.msra.mxu0 %v92
    %107 = vmatprep.subr.mxu0 0.0
    %108 = vmatpush1.msra.mxu0 %v91
    %109 = vmatprep.subr.mxu0 0.0
    %110 = vmatpush1.msra.mxu0 %v90
    %111 = vmatprep.subr.mxu0 0.0
    %112 = vmatpush1.msra.mxu0 %v89
    %113 = vmatprep.subr.mxu0 0.0
    %114 = vmatpush1.msra.mxu0 %v88
    %115 = vmatprep.subr.mxu0 0.0
    %116 = vmatpush1.msra.mxu0 %v87
    %117 = vmatprep.subr.mxu0 0.0
    %118 = vmatpush1.msra.mxu0 %v86
    %119 = vmatprep.subr.mxu0 0.0
    %120 = vmatpush1.msra.mxu0 %v85
    %121 = vmatprep.subr.mxu0 0.0
    %122 = vmatpush1.msra.mxu0 %v84
    %123 = vmatprep.subr.mxu0 0.0
    %124 = vmatpush1.msra.mxu0 %v83
    %125 = vmatprep.subr.mxu0 0.0
    %126 = vmatpush1.msra.mxu0 %v82
    %127 = vmatprep.subr.mxu0 0.0
    %128 = vmatpush1.msra.mxu0 %v81
    %129 = vmatprep.subr.mxu0 0.0
    %130 = vmatpush2.msra.mxu0 0.0
    %131 = vmatprep.subr.mxu0 0.0
    %132 = vmatpush2.msra.mxu0 0.0
    %133 = vmatprep.subr.mxu0 0.0
    %134 = vmatpush2.msra.mxu0 0.0
    %135 = vmatprep.subr.mxu0 0.0
    %136 = vmatpush2.msra.mxu0 0.0
    %137 = vmatprep.subr.mxu0 0.0
    %138 = vmatpush2.msra.mxu0 0.0
    %139 = vmatprep.subr.mxu0 0.0
    %140 = vmatpush2.msra.mxu0 0.0
    %141 = vmatprep.subr.mxu0 0.0
    %142 = vmatpush2.msra.mxu0 0.0
    %143 = vmatprep.subr.mxu0 0.0
    %144 = vmatpush2.msra.mxu0 0.0
    %145 = vmatprep.subr.mxu0 0.0
    %146 = vmatpush2.msra.mxu0 0.0
    %147 = vmatprep.subr.mxu0 0.0
    %148 = vmatpush2.msra.mxu0 0.0
    %149 = vmatprep.subr.mxu0 0.0
    %150 = vmatpush2.msra.mxu0 0.0
    %151 = vmatprep.subr.mxu0 0.0
    %152 = vmatpush2.msra.mxu0 0.0
    %153 = vmatprep.subr.mxu0 0.0
    %154 = vmatpush2.msra.mxu0 0.0
    %155 = vmatprep.subr.mxu0 0.0
    %156 = vmatpush2.msra.mxu0 0.0
    %157 = vmatprep.subr.mxu0 0.0
    %158 = vmatpush2.msra.mxu0 0.0
    %159 = vmatprep.subr.mxu0 0.0
    %160 = vmatpush2.msra.mxu0 0.0
    %161 = vmatprep.mubr.f32.mxu0 0.0
    %162 = vmatmul.mubr.f32.gmra.mxu0 %v74
    %v163 = vpop.f32.mrf.mxu0
    %v164 = vadd.f32 0.0, %v163
    %v165 = vpop.f32.mrf.mxu0
    %166 = vmatprep.mubr.f32.mxu0 0.0
    %167 = vmatmul.mubr.f32.gmra.mxu0 %v75
    %v168 = vpop.f32.mrf.mxu0
    %v169 = vadd.f32 0.0, %v168
    %v170 = vpop.f32.mrf.mxu0
    %171 = vdwg.mxu0
    %v172 = vld [vmem:[%s5] sm:$0xff]
    %v173 = vld [vmem:[%s5 + $0x8] sm:$0xff]
    %v174 = vld [vmem:[%s5 + $0x10] sm:$0xff]
    %v175 = vld [vmem:[%s5 + $0x18] sm:$0xff]
    %v176 = vld [vmem:[%s5 + $0x20] sm:$0xff]
    %v177 = vld [vmem:[%s5 + $0x28] sm:$0xff]
    %v178 = vld [vmem:[%s5 + $0x30] sm:$0xff]
    %v179 = vld [vmem:[%s5 + $0x38] sm:$0xff]
    %v180 = vld [vmem:[%s5 + $0x40] sm:$0xff]
    %v181 = vld [vmem:[%s5 + $0x48] sm:$0xff]
    %v182 = vld [vmem:[%s5 + $0x50] sm:$0xff]
    %v183 = vld [vmem:[%s5 + $0x58] sm:$0xff]
    %v184 = vld [vmem:[%s5 + $0x60] sm:$0xff]
    %v185 = vld [vmem:[%s5 + $0x68] sm:$0xff]
    %v186 = vld [vmem:[%s5 + $0x70] sm:$0xff]
    %v187 = vld [vmem:[%s5 + $0x78] sm:$0xff]
    %188 = vmatprep.subr.mxu0 0.0
    %189 = vmatpush1.msra.mxu0 %v187
    %190 = vmatprep.subr.mxu0 0.0
    %191 = vmatpush1.msra.mxu0 %v186
    %192 = vmatprep.subr.mxu0 0.0
    %193 = vmatpush1.msra.mxu0 %v185
    %194 = vmatprep.subr.mxu0 0.0
    %195 = vmatpush1.msra.mxu0 %v184
    %196 = vmatprep.subr.mxu0 0.0
    %197 = vmatpush1.msra.mxu0 %v183
    %198 = vmatprep.subr.mxu0 0.0
    %199 = vmatpush1.msra.mxu0 %v182
    %200 = vmatprep.subr.mxu0 0.0
    %201 = vmatpush1.msra.mxu0 %v181
    %202 = vmatprep.subr.mxu0 0.0
    %203 = vmatpush1.msra.mxu0 %v180
    %204 = vmatprep.subr.mxu0 0.0
    %205 = vmatpush1.msra.mxu0 %v179
    %206 = vmatprep.subr.mxu0 0.0
    %207 = vmatpush1.msra.mxu0 %v178
    %208 = vmatprep.subr.mxu0 0.0
    %209 = vmatpush1.msra.mxu0 %v177
    %210 = vmatprep.subr.mxu0 0.0
    %211 = vmatpush1.msra.mxu0 %v176
    %212 = vmatprep.subr.mxu0 0.0
    %213 = vmatpush1.msra.mxu0 %v175
    %214 = vmatprep.subr.mxu0 0.0
    %215 = vmatpush1.msra.mxu0 %v174
    %216 = vmatprep.subr.mxu0 0.0
    %217 = vmatpush1.msra.mxu0 %v173
    %218 = vmatprep.subr.mxu0 0.0
    %219 = vmatpush1.msra.mxu0 %v172
    %220 = vmatprep.subr.mxu0 0.0
    %221 = vmatpush2.msra.mxu0 0.0
    %222 = vmatprep.subr.mxu0 0.0
    %223 = vmatpush2.msra.mxu0 0.0
    %224 = vmatprep.subr.mxu0 0.0
    %225 = vmatpush2.msra.mxu0 0.0
    %226 = vmatprep.subr.mxu0 0.0
    %227 = vmatpush2.msra.mxu0 0.0
    %228 = vmatprep.subr.mxu0 0.0
    %229 = vmatpush2.msra.mxu0 0.0
    %230 = vmatprep.subr.mxu0 0.0
    %231 = vmatpush2.msra.mxu0 0.0
    %232 = vmatprep.subr.mxu0 0.0
    %233 = vmatpush2.msra.mxu0 0.0
    %234 = vmatprep.subr.mxu0 0.0
    %235 = vmatpush2.msra.mxu0 0.0
    %236 = vmatprep.subr.mxu0 0.0
    %237 = vmatpush2.msra.mxu0 0.0
    %238 = vmatprep.subr.mxu0 0.0
    %239 = vmatpush2.msra.mxu0 0.0
    %240 = vmatprep.subr.mxu0 0.0
    %241 = vmatpush2.msra.mxu0 0.0
    %242 = vmatprep.subr.mxu0 0.0
    %243 = vmatpush2.msra.mxu0 0.0
    %244 = vmatprep.subr.mxu0 0.0
    %245 = vmatpush2.msra.mxu0 0.0
    %246 = vmatprep.subr.mxu0 0.0
    %247 = vmatpush2.msra.mxu0 0.0
    %248 = vmatprep.subr.mxu0 0.0
    %249 = vmatpush2.msra.mxu0 0.0
    %250 = vmatprep.subr.mxu0 0.0
    %251 = vmatpush2.msra.mxu0 0.0
    %252 = vmatprep.mubr.f32.mxu0 0.0
    %253 = vmatmul.mubr.f32.gmra.mxu0 %v74
    %v254 = vpop.f32.mrf.mxu0
    %v255 = vadd.f32 0.0, %v254
    %v256 = vpop.f32.mrf.mxu0
    %257 = vmatprep.mubr.f32.mxu0 0.0
    %258 = vmatmul.mubr.f32.gmra.mxu0 %v75
    %v259 = vpop.f32.mrf.mxu0
    %v260 = vadd.f32 0.0, %v259
    %v261 = vpop.f32.mrf.mxu0
    %262 = vdwg.mxu0
    %v263 = vmul.f32 %v164, %v76
    %v264 = vmul.f32 %v169, %v77
    %v265 = vmul.f32 %v255, %v78
    %v266 = vmul.f32 %v260, %v79
    %v267 = vadd.f32 %v263, %v265
    %v268 = vadd.f32 %v264, %v266
    %v269 = vld [vmem:[%s6] sm:$0xff]
    %v270 = vld [vmem:[%s6 + $0x8] sm:$0xff]
    %v271 = vld [vmem:[%s6 + $0x10] sm:$0xff]
    %v272 = vld [vmem:[%s6 + $0x18] sm:$0xff]
    %v273 = vld [vmem:[%s6 + $0x20] sm:$0xff]
    %v274 = vld [vmem:[%s6 + $0x28] sm:$0xff]
    %v275 = vld [vmem:[%s6 + $0x30] sm:$0xff]
    %v276 = vld [vmem:[%s6 + $0x38] sm:$0xff]
    %v277 = vld [vmem:[%s6 + $0x40] sm:$0xff]
    %v278 = vld [vmem:[%s6 + $0x48] sm:$0xff]
    %v279 = vld [vmem:[%s6 + $0x50] sm:$0xff]
    %v280 = vld [vmem:[%s6 + $0x58] sm:$0xff]
    %v281 = vld [vmem:[%s6 + $0x60] sm:$0xff]
    %v282 = vld [vmem:[%s6 + $0x68] sm:$0xff]
    %v283 = vld [vmem:[%s6 + $0x70] sm:$0xff]
    %v284 = vld [vmem:[%s6 + $0x78] sm:$0xff]
    %285 = vmatprep.subr.mxu0 0.0
    %286 = vmatpush1.msra.mxu0 %v284
    %287 = vmatprep.subr.mxu0 0.0
    %288 = vmatpush1.msra.mxu0 %v283
    %289 = vmatprep.subr.mxu0 0.0
    %290 = vmatpush1.msra.mxu0 %v282
    %291 = vmatprep.subr.mxu0 0.0
    %292 = vmatpush1.msra.mxu0 %v281
    %293 = vmatprep.subr.mxu0 0.0
    %294 = vmatpush1.msra.mxu0 %v280
    %295 = vmatprep.subr.mxu0 0.0
    %296 = vmatpush1.msra.mxu0 %v279
    %297 = vmatprep.subr.mxu0 0.0
    %298 = vmatpush1.msra.mxu0 %v278
    %299 = vmatprep.subr.mxu0 0.0
    %300 = vmatpush1.msra.mxu0 %v277
    %301 = vmatprep.subr.mxu0 0.0
    %302 = vmatpush1.msra.mxu0 %v276
    %303 = vmatprep.subr.mxu0 0.0
    %304 = vmatpush1.msra.mxu0 %v275
    %305 = vmatprep.subr.mxu0 0.0
    %306 = vmatpush1.msra.mxu0 %v274
    %307 = vmatprep.subr.mxu0 0.0
    %308 = vmatpush1.msra.mxu0 %v273
    %309 = vmatprep.subr.mxu0 0.0
    %310 = vmatpush1.msra.mxu0 %v272
    %311 = vmatprep.subr.mxu0 0.0
    %312 = vmatpush1.msra.mxu0 %v271
    %313 = vmatprep.subr.mxu0 0.0
    %314 = vmatpush1.msra.mxu0 %v270
    %315 = vmatprep.subr.mxu0 0.0
    %316 = vmatpush1.msra.mxu0 %v269
    %317 = vmatprep.subr.mxu0 0.0
    %318 = vmatpush2.msra.mxu0 0.0
    %319 = vmatprep.subr.mxu0 0.0
    %320 = vmatpush2.msra.mxu0 0.0
    %321 = vmatprep.subr.mxu0 0.0
    %322 = vmatpush2.msra.mxu0 0.0
    %323 = vmatprep.subr.mxu0 0.0
    %324 = vmatpush2.msra.mxu0 0.0
    %325 = vmatprep.subr.mxu0 0.0
    %326 = vmatpush2.msra.mxu0 0.0
    %327 = vmatprep.subr.mxu0 0.0
    %328 = vmatpush2.msra.mxu0 0.0
    %329 = vmatprep.subr.mxu0 0.0
    %330 = vmatpush2.msra.mxu0 0.0
    %331 = vmatprep.subr.mxu0 0.0
    %332 = vmatpush2.msra.mxu0 0.0
    %333 = vmatprep.subr.mxu0 0.0
    %334 = vmatpush2.msra.mxu0 0.0
    %335 = vmatprep.subr.mxu0 0.0
    %336 = vmatpush2.msra.mxu0 0.0
    %337 = vmatprep.subr.mxu0 0.0
    %338 = vmatpush2.msra.mxu0 0.0
    %339 = vmatprep.subr.mxu0 0.0
    %340 = vmatpush2.msra.mxu0 0.0
    %341 = vmatprep.subr.mxu0 0.0
    %342 = vmatpush2.msra.mxu0 0.0
    %343 = vmatprep.subr.mxu0 0.0
    %344 = vmatpush2.msra.mxu0 0.0
    %345 = vmatprep.subr.mxu0 0.0
    %346 = vmatpush2.msra.mxu0 0.0
    %347 = vmatprep.subr.mxu0 0.0
    %348 = vmatpush2.msra.mxu0 0.0
    %349 = vmatprep.mubr.f32.mxu0 0.0
    %350 = vmatmul.mubr.f32.gmra.mxu0 %v74
    %v351 = vpop.f32.mrf.mxu0
    %v352 = vadd.f32 0.0, %v351
    %v353 = vpop.f32.mrf.mxu0
    %354 = vmatprep.mubr.f32.mxu0 0.0
    %355 = vmatmul.mubr.f32.gmra.mxu0 %v75
    %v356 = vpop.f32.mrf.mxu0
    %v357 = vadd.f32 0.0, %v356
    %v358 = vpop.f32.mrf.mxu0
    %359 = vdwg.mxu0
    %v360 = vld [vmem:[%s2] sm:$0xff]
    %v361 = vld [vmem:[%s2 + $0x8] sm:$0xff]
    %v362 = vld [vmem:[%s2 + $0x10] sm:$0xff]
    %v363 = vld [vmem:[%s2 + $0x18] sm:$0xff]
    %v364 = vld [vmem:[%s2 + $0x20] sm:$0xff]
    %v365 = vld [vmem:[%s2 + $0x28] sm:$0xff]
    %v366 = vld [vmem:[%s2 + $0x30] sm:$0xff]
    %v367 = vld [vmem:[%s2 + $0x38] sm:$0xff]
    %v368 = vld [vmem:[%s2 + $0x40] sm:$0xff]
    %v369 = vld [vmem:[%s2 + $0x48] sm:$0xff]
    %v370 = vld [vmem:[%s2 + $0x50] sm:$0xff]
    %v371 = vld [vmem:[%s2 + $0x58] sm:$0xff]
    %v372 = vld [vmem:[%s2 + $0x60] sm:$0xff]
    %v373 = vld [vmem:[%s2 + $0x68] sm:$0xff]
    %v374 = vld [vmem:[%s2 + $0x70] sm:$0xff]
    %v375 = vld [vmem:[%s2 + $0x78] sm:$0xff]
    %376 = vmatprep.subr.mxu0 0.0
    %377 = vmatpush1.msra.mxu0 %v375
    %378 = vmatprep.subr.mxu0 0.0
    %379 = vmatpush1.msra.mxu0 %v374
    %380 = vmatprep.subr.mxu0 0.0
    %381 = vmatpush1.msra.mxu0 %v373
    %382 = vmatprep.subr.mxu0 0.0
    %383 = vmatpush1.msra.mxu0 %v372
    %384 = vmatprep.subr.mxu0 0.0
    %385 = vmatpush1.msra.mxu0 %v371
    %386 = vmatprep.subr.mxu0 0.0
    %387 = vmatpush1.msra.mxu0 %v370
    %388 = vmatprep.subr.mxu0 0.0
    %389 = vmatpush1.msra.mxu0 %v369
    %390 = vmatprep.subr.mxu0 0.0
    %391 = vmatpush1.msra.mxu0 %v368
    %392 = vmatprep.subr.mxu0 0.0
    %393 = vmatpush1.msra.mxu0 %v367
    %394 = vmatprep.subr.mxu0 0.0
    %395 = vmatpush1.msra.mxu0 %v366
    %396 = vmatprep.subr.mxu0 0.0
    %397 = vmatpush1.msra.mxu0 %v365
    %398 = vmatprep.subr.mxu0 0.0
    %399 = vmatpush1.msra.mxu0 %v364
    %400 = vmatprep.subr.mxu0 0.0
    %401 = vmatpush1.msra.mxu0 %v363
    %402 = vmatprep.subr.mxu0 0.0
    %403 = vmatpush1.msra.mxu0 %v362
    %404 = vmatprep.subr.mxu0 0.0
    %405 = vmatpush1.msra.mxu0 %v361
    %406 = vmatprep.subr.mxu0 0.0
    %407 = vmatpush1.msra.mxu0 %v360
    %408 = vmatprep.subr.mxu0 0.0
    %409 = vmatpush2.msra.mxu0 0.0
    %410 = vmatprep.subr.mxu0 0.0
    %411 = vmatpush2.msra.mxu0 0.0
    %412 = vmatprep.subr.mxu0 0.0
    %413 = vmatpush2.msra.mxu0 0.0
    %414 = vmatprep.subr.mxu0 0.0
    %415 = vmatpush2.msra.mxu0 0.0
    %416 = vmatprep.subr.mxu0 0.0
    %417 = vmatpush2.msra.mxu0 0.0
    %418 = vmatprep.subr.mxu0 0.0
    %419 = vmatpush2.msra.mxu0 0.0
    %420 = vmatprep.subr.mxu0 0.0
    %421 = vmatpush2.msra.mxu0 0.0
    %422 = vmatprep.subr.mxu0 0.0
    %423 = vmatpush2.msra.mxu0 0.0
    %424 = vmatprep.subr.mxu0 0.0
    %425 = vmatpush2.msra.mxu0 0.0
    %426 = vmatprep.subr.mxu0 0.0
    %427 = vmatpush2.msra.mxu0 0.0
    %428 = vmatprep.subr.mxu0 0.0
    %429 = vmatpush2.msra.mxu0 0.0
    %430 = vmatprep.subr.mxu0 0.0
    %431 = vmatpush2.msra.mxu0 0.0
    %432 = vmatprep.subr.mxu0 0.0
    %433 = vmatpush2.msra.mxu0 0.0
    %434 = vmatprep.subr.mxu0 0.0
    %435 = vmatpush2.msra.mxu0 0.0
    %436 = vmatprep.subr.mxu0 0.0
    %437 = vmatpush2.msra.mxu0 0.0
    %438 = vmatprep.subr.mxu0 0.0
    %439 = vmatpush2.msra.mxu0 0.0
    %440 = vmatprep.mubr.f32.mxu0 0.0
    %441 = vmatmul.mubr.f32.gmra.mxu0 %v74
    %v442 = vpop.f32.mrf.mxu0
    %v443 = vadd.f32 0.0, %v442
    %v444 = vpop.f32.mrf.mxu0
    %445 = vmatprep.mubr.f32.mxu0 0.0
    %446 = vmatmul.mubr.f32.gmra.mxu0 %v75
    %v447 = vpop.f32.mrf.mxu0
    %v448 = vadd.f32 0.0, %v447
    %v449 = vpop.f32.mrf.mxu0
    %450 = vdwg.mxu0
    %v451 = vld [vmem:[%s3] sm:$0xff]
    %v452 = vld [vmem:[%s3 + $0x8] sm:$0xff]
    %v453 = vld [vmem:[%s3 + $0x10] sm:$0xff]
    %v454 = vld [vmem:[%s3 + $0x18] sm:$0xff]
    %v455 = vld [vmem:[%s3 + $0x20] sm:$0xff]
    %v456 = vld [vmem:[%s3 + $0x28] sm:$0xff]
    %v457 = vld [vmem:[%s3 + $0x30] sm:$0xff]
    %v458 = vld [vmem:[%s3 + $0x38] sm:$0xff]
    %v459 = vld [vmem:[%s3 + $0x40] sm:$0xff]
    %v460 = vld [vmem:[%s3 + $0x48] sm:$0xff]
    %v461 = vld [vmem:[%s3 + $0x50] sm:$0xff]
    %v462 = vld [vmem:[%s3 + $0x58] sm:$0xff]
    %v463 = vld [vmem:[%s3 + $0x60] sm:$0xff]
    %v464 = vld [vmem:[%s3 + $0x68] sm:$0xff]
    %v465 = vld [vmem:[%s3 + $0x70] sm:$0xff]
    %v466 = vld [vmem:[%s3 + $0x78] sm:$0xff]
    %467 = vmatprep.subr.mxu0 0.0
    %468 = vmatpush1.msra.mxu0 %v466
    %469 = vmatprep.subr.mxu0 0.0
    %470 = vmatpush1.msra.mxu0 %v465
    %471 = vmatprep.subr.mxu0 0.0
    %472 = vmatpush1.msra.mxu0 %v464
    %473 = vmatprep.subr.mxu0 0.0
    %474 = vmatpush1.msra.mxu0 %v463
    %475 = vmatprep.subr.mxu0 0.0
    %476 = vmatpush1.msra.mxu0 %v462
    %477 = vmatprep.subr.mxu0 0.0
    %478 = vmatpush1.msra.mxu0 %v461
    %479 = vmatprep.subr.mxu0 0.0
    %480 = vmatpush1.msra.mxu0 %v460
    %481 = vmatprep.subr.mxu0 0.0
    %482 = vmatpush1.msra.mxu0 %v459
    %483 = vmatprep.subr.mxu0 0.0
    %484 = vmatpush1.msra.mxu0 %v458
    %485 = vmatprep.subr.mxu0 0.0
    %486 = vmatpush1.msra.mxu0 %v457
    %487 = vmatprep.subr.mxu0 0.0
    %488 = vmatpush1.msra.mxu0 %v456
    %489 = vmatprep.subr.mxu0 0.0
    %490 = vmatpush1.msra.mxu0 %v455
    %491 = vmatprep.subr.mxu0 0.0
    %492 = vmatpush1.msra.mxu0 %v454
    %493 = vmatprep.subr.mxu0 0.0
    %494 = vmatpush1.msra.mxu0 %v453
    %495 = vmatprep.subr.mxu0 0.0
    %496 = vmatpush1.msra.mxu0 %v452
    %497 = vmatprep.subr.mxu0 0.0
    %498 = vmatpush1.msra.mxu0 %v451
    %499 = vmatprep.subr.mxu0 0.0
    %500 = vmatpush2.msra.mxu0 0.0
    %501 = vmatprep.subr.mxu0 0.0
    %502 = vmatpush2.msra.mxu0 0.0
    %503 = vmatprep.subr.mxu0 0.0
    %504 = vmatpush2.msra.mxu0 0.0
    %505 = vmatprep.subr.mxu0 0.0
    %506 = vmatpush2.msra.mxu0 0.0
    %507 = vmatprep.subr.mxu0 0.0
    %508 = vmatpush2.msra.mxu0 0.0
    %509 = vmatprep.subr.mxu0 0.0
    %510 = vmatpush2.msra.mxu0 0.0
    %511 = vmatprep.subr.mxu0 0.0
    %512 = vmatpush2.msra.mxu0 0.0
    %513 = vmatprep.subr.mxu0 0.0
    %514 = vmatpush2.msra.mxu0 0.0
    %515 = vmatprep.subr.mxu0 0.0
    %516 = vmatpush2.msra.mxu0 0.0
    %517 = vmatprep.subr.mxu0 0.0
    %518 = vmatpush2.msra.mxu0 0.0
    %519 = vmatprep.subr.mxu0 0.0
    %520 = vmatpush2.msra.mxu0 0.0
    %521 = vmatprep.subr.mxu0 0.0
    %522 = vmatpush2.msra.mxu0 0.0
    %523 = vmatprep.subr.mxu0 0.0
    %524 = vmatpush2.msra.mxu0 0.0
    %525 = vmatprep.subr.mxu0 0.0
    %526 = vmatpush2.msra.mxu0 0.0
    %527 = vmatprep.subr.mxu0 0.0
    %528 = vmatpush2.msra.mxu0 0.0
    %529 = vmatprep.subr.mxu0 0.0
    %530 = vmatpush2.msra.mxu0 0.0
    %531 = vmatprep.mubr.f32.mxu0 0.0
    %532 = vmatmul.mubr.f32.gmra.mxu0 %v74
    %v533 = vpop.f32.mrf.mxu0
    %v534 = vadd.f32 0.0, %v533
    %v535 = vpop.f32.mrf.mxu0
    %536 = vmatprep.mubr.f32.mxu0 0.0
    %537 = vmatmul.mubr.f32.gmra.mxu0 %v75
    %v538 = vpop.f32.mrf.mxu0
    %v539 = vadd.f32 0.0, %v538
    %v540 = vpop.f32.mrf.mxu0
    %541 = vdwg.mxu0
    %v542 = vmul.f32 %v443, %v76
    %v543 = vmul.f32 %v448, %v77
    %v544 = vmul.f32 %v534, %v78
    %v545 = vmul.f32 %v539, %v79
    %v546 = vadd.f32 %v542, %v544
    %v547 = vadd.f32 %v543, %v545
    %vm548 = vcmask 64512
    %v550 = vsel %vm548, %v546, 0
    %v553 = vsel %vm548, %v267, 0
    %555 = vmatprep.subr.mxu0 0.0
    %556 = vmatpush1.xpose.msra.mxu0 0.0
    %557 = vmatprep.subr.mxu0 0.0
    %558 = vmatpush1.xpose.msra.mxu0 0.0
    %559 = vmatprep.subr.mxu0 0.0
    %560 = vmatpush1.xpose.msra.mxu0 0.0
    %561 = vmatprep.subr.mxu0 0.0
    %562 = vmatpush1.xpose.msra.mxu0 0.0
    %563 = vmatprep.subr.mxu0 0.0
    %564 = vmatpush1.xpose.msra.mxu0 0.0
    %565 = vmatprep.subr.mxu0 0.0
    %566 = vmatpush1.xpose.msra.mxu0 0.0
    %567 = vmatprep.subr.mxu0 0.0
    %568 = vmatpush1.xpose.msra.mxu0 0.0
    %569 = vmatprep.subr.mxu0 0.0
    %570 = vmatpush1.xpose.msra.mxu0 0.0
    %571 = vmatprep.subr.mxu0 0.0
    %572 = vmatpush1.xpose.msra.mxu0 0.0
    %573 = vmatprep.subr.mxu0 0.0
    %574 = vmatpush1.xpose.msra.mxu0 0.0
    %575 = vmatprep.subr.mxu0 0.0
    %576 = vmatpush1.xpose.msra.mxu0 0.0
    %577 = vmatprep.subr.mxu0 0.0
    %578 = vmatpush1.xpose.msra.mxu0 0.0
    %579 = vmatprep.subr.mxu0 0.0
    %580 = vmatpush1.xpose.msra.mxu0 0.0
    %581 = vmatprep.subr.mxu0 0.0
    %582 = vmatpush1.xpose.msra.mxu0 0.0
    %583 = vmatprep.subr.mxu0 0.0
    %584 = vmatpush1.xpose.msra.mxu0 0.0
    %585 = vmatprep.subr.mxu0 0.0
    %586 = vmatpush1.xpose.msra.mxu0 %v553
    %587 = vmatprep.subr.mxu0 0.0
    %588 = vmatpush2.xpose.msra.mxu0 0.0
    %589 = vmatprep.subr.mxu0 0.0
    %590 = vmatpush2.xpose.msra.mxu0 0.0
    %591 = vmatprep.subr.mxu0 0.0
    %592 = vmatpush2.xpose.msra.mxu0 0.0
    %593 = vmatprep.subr.mxu0 0.0
    %594 = vmatpush2.xpose.msra.mxu0 0.0
    %595 = vmatprep.subr.mxu0 0.0
    %596 = vmatpush2.xpose.msra.mxu0 0.0
    %597 = vmatprep.subr.mxu0 0.0
    %598 = vmatpush2.xpose.msra.mxu0 0.0
    %599 = vmatprep.subr.mxu0 0.0
    %600 = vmatpush2.xpose.msra.mxu0 0.0
    %601 = vmatprep.subr.mxu0 0.0
    %602 = vmatpush2.xpose.msra.mxu0 0.0
    %603 = vmatprep.subr.mxu0 0.0
    %604 = vmatpush2.xpose.msra.mxu0 0.0
    %605 = vmatprep.subr.mxu0 0.0
    %606 = vmatpush2.xpose.msra.mxu0 0.0
    %607 = vmatprep.subr.mxu0 0.0
    %608 = vmatpush2.xpose.msra.mxu0 0.0
    %609 = vmatprep.subr.mxu0 0.0
    %610 = vmatpush2.xpose.msra.mxu0 0.0
    %611 = vmatprep.subr.mxu0 0.0
    %612 = vmatpush2.xpose.msra.mxu0 0.0
    %613 = vmatprep.subr.mxu0 0.0
    %614 = vmatpush2.xpose.msra.mxu0 0.0
    %615 = vmatprep.subr.mxu0 0.0
    %616 = vmatpush2.xpose.msra.mxu0 0.0
    %617 = vmatprep.subr.mxu0 0.0
    %618 = vmatpush2.xpose.msra.mxu0 0.0
    %619 = vmatprep.mubr.f32.mxu0 0.0
    %620 = vmatmul.mubr.f32.gmra.mxu0 %v550
    %v621 = vpop.f32.mrf.mxu0
    %v622 = vadd.f32 0.0, %v621
    %v623 = vpop.f32.mrf.mxu0
    %624 = vdwg.mxu0
    %v625 = vmul.f32 %v622, 0.35355338
    %v626 = vadd.f32 %v625, %v80
    %v627 = vsel %vm548, %v626, -inf
    %628 = vmax.xlane.f32.xlu0 %v627
    %v629 = vpop.xlane.xlu0 %628
    %v630 = vsub.f32 %v626, %v629
    %v631 = vmul.f32 %v630, 1.442695
    %v632 = vpow.pop %v631
    %v633 = vsel %vm548, %v632, 0.0
    %634 = vadd.xlane.f32.xlu0 %v633
    %v635 = vpop.xlane.xlu0 %634
    %v636 = vrcp.pop %v635
    %v637 = vmul.f32 %v632, %v636
    %v639 = vsel %vm548, %v637, 0
    %641 = vmatprep.subr.mxu0 0.0
    %642 = vmatpush1.msra.mxu0 0.0
    %643 = vmatprep.subr.mxu0 0.0
    %644 = vmatpush1.msra.mxu0 0.0
    %645 = vmatprep.subr.mxu0 0.0
    %646 = vmatpush1.msra.mxu0 0.0
    %647 = vmatprep.subr.mxu0 0.0
    %648 = vmatpush1.msra.mxu0 0.0
    %649 = vmatprep.subr.mxu0 0.0
    %650 = vmatpush1.msra.mxu0 0.0
    %651 = vmatprep.subr.mxu0 0.0
    %652 = vmatpush1.msra.mxu0 0.0
    %653 = vmatprep.subr.mxu0 0.0
    %654 = vmatpush1.msra.mxu0 0.0
    %655 = vmatprep.subr.mxu0 0.0
    %656 = vmatpush1.msra.mxu0 0.0
    %657 = vmatprep.subr.mxu0 0.0
    %658 = vmatpush1.msra.mxu0 0.0
    %659 = vmatprep.subr.mxu0 0.0
    %660 = vmatpush1.msra.mxu0 0.0
    %661 = vmatprep.subr.mxu0 0.0
    %662 = vmatpush1.msra.mxu0 0.0
    %663 = vmatprep.subr.mxu0 0.0
    %664 = vmatpush1.msra.mxu0 0.0
    %665 = vmatprep.subr.mxu0 0.0
    %666 = vmatpush1.msra.mxu0 0.0
    %667 = vmatprep.subr.mxu0 0.0
    %668 = vmatpush1.msra.mxu0 0.0
    %669 = vmatprep.subr.mxu0 0.0
    %670 = vmatpush1.msra.mxu0 0.0
    %671 = vmatprep.subr.mxu0 0.0
    %672 = vmatpush1.msra.mxu0 %v352
    %673 = vmatprep.subr.mxu0 0.0
    %674 = vmatpush2.msra.mxu0 0.0
    %675 = vmatprep.subr.mxu0 0.0
    %676 = vmatpush2.msra.mxu0 0.0
    %677 = vmatprep.subr.mxu0 0.0
    %678 = vmatpush2.msra.mxu0 0.0
    %679 = vmatprep.subr.mxu0 0.0
    %680 = vmatpush2.msra.mxu0 0.0
    %681 = vmatprep.subr.mxu0 0.0
    %682 = vmatpush2.msra.mxu0 0.0
    %683 = vmatprep.subr.mxu0 0.0
    %684 = vmatpush2.msra.mxu0 0.0
    %685 = vmatprep.subr.mxu0 0.0
    %686 = vmatpush2.msra.mxu0 0.0
    %687 = vmatprep.subr.mxu0 0.0
    %688 = vmatpush2.msra.mxu0 0.0
    %689 = vmatprep.subr.mxu0 0.0
    %690 = vmatpush2.msra.mxu0 0.0
    %691 = vmatprep.subr.mxu0 0.0
    %692 = vmatpush2.msra.mxu0 0.0
    %693 = vmatprep.subr.mxu0 0.0
    %694 = vmatpush2.msra.mxu0 0.0
    %695 = vmatprep.subr.mxu0 0.0
    %696 = vmatpush2.msra.mxu0 0.0
    %697 = vmatprep.subr.mxu0 0.0
    %698 = vmatpush2.msra.mxu0 0.0
    %699 = vmatprep.subr.mxu0 0.0
    %700 = vmatpush2.msra.mxu0 0.0
    %701 = vmatprep.subr.mxu0 0.0
    %702 = vmatpush2.msra.mxu0 0.0
    %703 = vmatprep.subr.mxu0 0.0
    %704 = vmatpush2.msra.mxu0 0.0
    %705 = vmatprep.mubr.f32.mxu0 0.0
    %706 = vmatmul.mubr.f32.gmra.mxu0 %v639
    %v707 = vpop.f32.mrf.mxu0
    %v708 = vadd.f32 0.0, %v707
    %v709 = vpop.f32.mrf.mxu0
    %710 = vdwg.mxu0
    %v712 = vsel %vm548, %v547, 0
    %v715 = vsel %vm548, %v268, 0
    %717 = vmatprep.subr.mxu0 0.0
    %718 = vmatpush1.xpose.msra.mxu0 0.0
    %719 = vmatprep.subr.mxu0 0.0
    %720 = vmatpush1.xpose.msra.mxu0 0.0
    %721 = vmatprep.subr.mxu0 0.0
    %722 = vmatpush1.xpose.msra.mxu0 0.0
    %723 = vmatprep.subr.mxu0 0.0
    %724 = vmatpush1.xpose.msra.mxu0 0.0
    %725 = vmatprep.subr.mxu0 0.0
    %726 = vmatpush1.xpose.msra.mxu0 0.0
    %727 = vmatprep.subr.mxu0 0.0
    %728 = vmatpush1.xpose.msra.mxu0 0.0
    %729 = vmatprep.subr.mxu0 0.0
    %730 = vmatpush1.xpose.msra.mxu0 0.0
    %731 = vmatprep.subr.mxu0 0.0
    %732 = vmatpush1.xpose.msra.mxu0 0.0
    %733 = vmatprep.subr.mxu0 0.0
    %734 = vmatpush1.xpose.msra.mxu0 0.0
    %735 = vmatprep.subr.mxu0 0.0
    %736 = vmatpush1.xpose.msra.mxu0 0.0
    %737 = vmatprep.subr.mxu0 0.0
    %738 = vmatpush1.xpose.msra.mxu0 0.0
    %739 = vmatprep.subr.mxu0 0.0
    %740 = vmatpush1.xpose.msra.mxu0 0.0
    %741 = vmatprep.subr.mxu0 0.0
    %742 = vmatpush1.xpose.msra.mxu0 0.0
    %743 = vmatprep.subr.mxu0 0.0
    %744 = vmatpush1.xpose.msra.mxu0 0.0
    %745 = vmatprep.subr.mxu0 0.0
    %746 = vmatpush1.xpose.msra.mxu0 0.0
    %747 = vmatprep.subr.mxu0 0.0
    %748 = vmatpush1.xpose.msra.mxu0 %v715
    %749 = vmatprep.subr.mxu0 0.0
    %750 = vmatpush2.xpose.msra.mxu0 0.0
    %751 = vmatprep.subr.mxu0 0.0
    %752 = vmatpush2.xpose.msra.mxu0 0.0
    %753 = vmatprep.subr.mxu0 0.0
    %754 = vmatpush2.xpose.msra.mxu0 0.0
    %755 = vmatprep.subr.mxu0 0.0
    %756 = vmatpush2.xpose.msra.mxu0 0.0
    %757 = vmatprep.subr.mxu0 0.0
    %758 = vmatpush2.xpose.msra.mxu0 0.0
    %759 = vmatprep.subr.mxu0 0.0
    %760 = vmatpush2.xpose.msra.mxu0 0.0
    %761 = vmatprep.subr.mxu0 0.0
    %762 = vmatpush2.xpose.msra.mxu0 0.0
    %763 = vmatprep.subr.mxu0 0.0
    %764 = vmatpush2.xpose.msra.mxu0 0.0
    %765 = vmatprep.subr.mxu0 0.0
    %766 = vmatpush2.xpose.msra.mxu0 0.0
    %767 = vmatprep.subr.mxu0 0.0
    %768 = vmatpush2.xpose.msra.mxu0 0.0
    %769 = vmatprep.subr.mxu0 0.0
    %770 = vmatpush2.xpose.msra.mxu0 0.0
    %771 = vmatprep.subr.mxu0 0.0
    %772 = vmatpush2.xpose.msra.mxu0 0.0
    %773 = vmatprep.subr.mxu0 0.0
    %774 = vmatpush2.xpose.msra.mxu0 0.0
    %775 = vmatprep.subr.mxu0 0.0
    %776 = vmatpush2.xpose.msra.mxu0 0.0
    %777 = vmatprep.subr.mxu0 0.0
    %778 = vmatpush2.xpose.msra.mxu0 0.0
    %779 = vmatprep.subr.mxu0 0.0
    %780 = vmatpush2.xpose.msra.mxu0 0.0
    %781 = vmatprep.mubr.f32.mxu0 0.0
    %782 = vmatmul.mubr.f32.gmra.mxu0 %v712
    %v783 = vpop.f32.mrf.mxu0
    %v784 = vadd.f32 0.0, %v783
    %v785 = vpop.f32.mrf.mxu0
    %786 = vdwg.mxu0
    %v787 = vmul.f32 %v784, 0.35355338
    %v788 = vadd.f32 %v787, %v80
    %v789 = vsel %vm548, %v788, -inf
    %790 = vmax.xlane.f32.xlu0 %v789
    %v791 = vpop.xlane.xlu0 %790
    %v792 = vsub.f32 %v788, %v791
    %v793 = vmul.f32 %v792, 1.442695
    %v794 = vpow.pop %v793
    %v795 = vsel %vm548, %v794, 0.0
    %796 = vadd.xlane.f32.xlu0 %v795
    %v797 = vpop.xlane.xlu0 %796
    %v798 = vrcp.pop %v797
    %v799 = vmul.f32 %v794, %v798
    %v801 = vsel %vm548, %v799, 0
    %803 = vmatprep.subr.mxu0 0.0
    %804 = vmatpush1.msra.mxu0 0.0
    %805 = vmatprep.subr.mxu0 0.0
    %806 = vmatpush1.msra.mxu0 0.0
    %807 = vmatprep.subr.mxu0 0.0
    %808 = vmatpush1.msra.mxu0 0.0
    %809 = vmatprep.subr.mxu0 0.0
    %810 = vmatpush1.msra.mxu0 0.0
    %811 = vmatprep.subr.mxu0 0.0
    %812 = vmatpush1.msra.mxu0 0.0
    %813 = vmatprep.subr.mxu0 0.0
    %814 = vmatpush1.msra.mxu0 0.0
    %815 = vmatprep.subr.mxu0 0.0
    %816 = vmatpush1.msra.mxu0 0.0
    %817 = vmatprep.subr.mxu0 0.0
    %818 = vmatpush1.msra.mxu0 0.0
    %819 = vmatprep.subr.mxu0 0.0
    %820 = vmatpush1.msra.mxu0 0.0
    %821 = vmatprep.subr.mxu0 0.0
    %822 = vmatpush1.msra.mxu0 0.0
    %823 = vmatprep.subr.mxu0 0.0
    %824 = vmatpush1.msra.mxu0 0.0
    %825 = vmatprep.subr.mxu0 0.0
    %826 = vmatpush1.msra.mxu0 0.0
    %827 = vmatprep.subr.mxu0 0.0
    %828 = vmatpush1.msra.mxu0 0.0
    %829 = vmatprep.subr.mxu0 0.0
    %830 = vmatpush1.msra.mxu0 0.0
    %831 = vmatprep.subr.mxu0 0.0
    %832 = vmatpush1.msra.mxu0 0.0
    %833 = vmatprep.subr.mxu0 0.0
    %834 = vmatpush1.msra.mxu0 %v357
    %835 = vmatprep.subr.mxu0 0.0
    %836 = vmatpush2.msra.mxu0 0.0
    %837 = vmatprep.subr.mxu0 0.0
    %838 = vmatpush2.msra.mxu0 0.0
    %839 = vmatprep.subr.mxu0 0.0
    %840 = vmatpush2.msra.mxu0 0.0
    %841 = vmatprep.subr.mxu0 0.0
    %842 = vmatpush2.msra.mxu0 0.0
    %843 = vmatprep.subr.mxu0 0.0
    %844 = vmatpush2.msra.mxu0 0.0
    %845 = vmatprep.subr.mxu0 0.0
    %846 = vmatpush2.msra.mxu0 0.0
    %847 = vmatprep.subr.mxu0 0.0
    %848 = vmatpush2.msra.mxu0 0.0
    %849 = vmatprep.subr.mxu0 0.0
    %850 = vmatpush2.msra.mxu0 0.0
    %851 = vmatprep.subr.mxu0 0.0
    %852 = vmatpush2.msra.mxu0 0.0
    %853 = vmatprep.subr.mxu0 0.0
    %854 = vmatpush2.msra.mxu0 0.0
    %855 = vmatprep.subr.mxu0 0.0
    %856 = vmatpush2.msra.mxu0 0.0
    %857 = vmatprep.subr.mxu0 0.0
    %858 = vmatpush2.msra.mxu0 0.0
    %859 = vmatprep.subr.mxu0 0.0
    %860 = vmatpush2.msra.mxu0 0.0
    %861 = vmatprep.subr.mxu0 0.0
    %862 = vmatpush2.msra.mxu0 0.0
    %863 = vmatprep.subr.mxu0 0.0
    %864 = vmatpush2.msra.mxu0 0.0
    %865 = vmatprep.subr.mxu0 0.0
    %866 = vmatpush2.msra.mxu0 0.0
    %867 = vmatprep.mubr.f32.mxu0 0.0
    %868 = vmatmul.mubr.f32.gmra.mxu0 %v801
    %v869 = vpop.f32.mrf.mxu0
    %v870 = vadd.f32 0.0, %v869
    %v871 = vpop.f32.mrf.mxu0
    %872 = vdwg.mxu0
    %v873 = vld [vmem:[%s7] sm:$0xff]
    %s874 = scalar_lea.vmem %s2, 128
    %v875 = vld [vmem:[%s874] sm:$0xff]
    %v876 = vld [vmem:[%s874 + $0x8] sm:$0xff]
    %v877 = vld [vmem:[%s874 + $0x10] sm:$0xff]
    %v878 = vld [vmem:[%s874 + $0x18] sm:$0xff]
    %v879 = vld [vmem:[%s874 + $0x20] sm:$0xff]
    %v880 = vld [vmem:[%s874 + $0x28] sm:$0xff]
    %v881 = vld [vmem:[%s874 + $0x30] sm:$0xff]
    %v882 = vld [vmem:[%s874 + $0x38] sm:$0xff]
    %v883 = vld [vmem:[%s874 + $0x40] sm:$0xff]
    %v884 = vld [vmem:[%s874 + $0x48] sm:$0xff]
    %v885 = vld [vmem:[%s874 + $0x50] sm:$0xff]
    %v886 = vld [vmem:[%s874 + $0x58] sm:$0xff]
    %v887 = vld [vmem:[%s874 + $0x60] sm:$0xff]
    %v888 = vld [vmem:[%s874 + $0x68] sm:$0xff]
    %v889 = vld [vmem:[%s874 + $0x70] sm:$0xff]
    %v890 = vld [vmem:[%s874 + $0x78] sm:$0xff]
    %891 = vmatprep.subr.mxu0 0.0
    %892 = vmatpush1.msra.mxu0 %v890
    %893 = vmatprep.subr.mxu0 0.0
    %894 = vmatpush1.msra.mxu0 %v889
    %895 = vmatprep.subr.mxu0 0.0
    %896 = vmatpush1.msra.mxu0 %v888
    %897 = vmatprep.subr.mxu0 0.0
    %898 = vmatpush1.msra.mxu0 %v887
    %899 = vmatprep.subr.mxu0 0.0
    %900 = vmatpush1.msra.mxu0 %v886
    %901 = vmatprep.subr.mxu0 0.0
    %902 = vmatpush1.msra.mxu0 %v885
    %903 = vmatprep.subr.mxu0 0.0
    %904 = vmatpush1.msra.mxu0 %v884
    %905 = vmatprep.subr.mxu0 0.0
    %906 = vmatpush1.msra.mxu0 %v883
    %907 = vmatprep.subr.mxu0 0.0
    %908 = vmatpush1.msra.mxu0 %v882
    %909 = vmatprep.subr.mxu0 0.0
    %910 = vmatpush1.msra.mxu0 %v881
    %911 = vmatprep.subr.mxu0 0.0
    %912 = vmatpush1.msra.mxu0 %v880
    %913 = vmatprep.subr.mxu0 0.0
    %914 = vmatpush1.msra.mxu0 %v879
    %915 = vmatprep.subr.mxu0 0.0
    %916 = vmatpush1.msra.mxu0 %v878
    %917 = vmatprep.subr.mxu0 0.0
    %918 = vmatpush1.msra.mxu0 %v877
    %919 = vmatprep.subr.mxu0 0.0
    %920 = vmatpush1.msra.mxu0 %v876
    %921 = vmatprep.subr.mxu0 0.0
    %922 = vmatpush1.msra.mxu0 %v875
    %923 = vmatprep.subr.mxu0 0.0
    %924 = vmatpush2.msra.mxu0 0.0
    %925 = vmatprep.subr.mxu0 0.0
    %926 = vmatpush2.msra.mxu0 0.0
    %927 = vmatprep.subr.mxu0 0.0
    %928 = vmatpush2.msra.mxu0 0.0
    %929 = vmatprep.subr.mxu0 0.0
    %930 = vmatpush2.msra.mxu0 0.0
    %931 = vmatprep.subr.mxu0 0.0
    %932 = vmatpush2.msra.mxu0 0.0
    %933 = vmatprep.subr.mxu0 0.0
    %934 = vmatpush2.msra.mxu0 0.0
    %935 = vmatprep.subr.mxu0 0.0
    %936 = vmatpush2.msra.mxu0 0.0
    %937 = vmatprep.subr.mxu0 0.0
    %938 = vmatpush2.msra.mxu0 0.0
    %939 = vmatprep.subr.mxu0 0.0
    %940 = vmatpush2.msra.mxu0 0.0
    %941 = vmatprep.subr.mxu0 0.0
    %942 = vmatpush2.msra.mxu0 0.0
    %943 = vmatprep.subr.mxu0 0.0
    %944 = vmatpush2.msra.mxu0 0.0
    %945 = vmatprep.subr.mxu0 0.0
    %946 = vmatpush2.msra.mxu0 0.0
    %947 = vmatprep.subr.mxu0 0.0
    %948 = vmatpush2.msra.mxu0 0.0
    %949 = vmatprep.subr.mxu0 0.0
    %950 = vmatpush2.msra.mxu0 0.0
    %951 = vmatprep.subr.mxu0 0.0
    %952 = vmatpush2.msra.mxu0 0.0
    %953 = vmatprep.subr.mxu0 0.0
    %954 = vmatpush2.msra.mxu0 0.0
    %955 = vmatprep.mubr.f32.mxu0 0.0
    %956 = vmatmul.mubr.f32.gmra.mxu0 %v74
    %v957 = vpop.f32.mrf.mxu0
    %v958 = vadd.f32 0.0, %v957
    %v959 = vpop.f32.mrf.mxu0
    %960 = vmatprep.mubr.f32.mxu0 0.0
    %961 = vmatmul.mubr.f32.gmra.mxu0 %v75
    %v962 = vpop.f32.mrf.mxu0
    %v963 = vadd.f32 0.0, %v962
    %v964 = vpop.f32.mrf.mxu0
    %965 = vdwg.mxu0
    %s966 = scalar_lea.vmem %s3, 128
    %v967 = vld [vmem:[%s966] sm:$0xff]
    %v968 = vld [vmem:[%s966 + $0x8] sm:$0xff]
    %v969 = vld [vmem:[%s966 + $0x10] sm:$0xff]
    %v970 = vld [vmem:[%s966 + $0x18] sm:$0xff]
    %v971 = vld [vmem:[%s966 + $0x20] sm:$0xff]
    %v972 = vld [vmem:[%s966 + $0x28] sm:$0xff]
    %v973 = vld [vmem:[%s966 + $0x30] sm:$0xff]
    %v974 = vld [vmem:[%s966 + $0x38] sm:$0xff]
    %v975 = vld [vmem:[%s966 + $0x40] sm:$0xff]
    %v976 = vld [vmem:[%s966 + $0x48] sm:$0xff]
    %v977 = vld [vmem:[%s966 + $0x50] sm:$0xff]
    %v978 = vld [vmem:[%s966 + $0x58] sm:$0xff]
    %v979 = vld [vmem:[%s966 + $0x60] sm:$0xff]
    %v980 = vld [vmem:[%s966 + $0x68] sm:$0xff]
    %v981 = vld [vmem:[%s966 + $0x70] sm:$0xff]
    %v982 = vld [vmem:[%s966 + $0x78] sm:$0xff]
    %983 = vmatprep.subr.mxu0 0.0
    %984 = vmatpush1.msra.mxu0 %v982
    %985 = vmatprep.subr.mxu0 0.0
    %986 = vmatpush1.msra.mxu0 %v981
    %987 = vmatprep.subr.mxu0 0.0
    %988 = vmatpush1.msra.mxu0 %v980
    %989 = vmatprep.subr.mxu0 0.0
    %990 = vmatpush1.msra.mxu0 %v979
    %991 = vmatprep.subr.mxu0 0.0
    %992 = vmatpush1.msra.mxu0 %v978
    %993 = vmatprep.subr.mxu0 0.0
    %994 = vmatpush1.msra.mxu0 %v977
    %995 = vmatprep.subr.mxu0 0.0
    %996 = vmatpush1.msra.mxu0 %v976
    %997 = vmatprep.subr.mxu0 0.0
    %998 = vmatpush1.msra.mxu0 %v975
    %999 = vmatprep.subr.mxu0 0.0
    %1000 = vmatpush1.msra.mxu0 %v974
    %1001 = vmatprep.subr.mxu0 0.0
    %1002 = vmatpush1.msra.mxu0 %v973
    %1003 = vmatprep.subr.mxu0 0.0
    %1004 = vmatpush1.msra.mxu0 %v972
    %1005 = vmatprep.subr.mxu0 0.0
    %1006 = vmatpush1.msra.mxu0 %v971
    %1007 = vmatprep.subr.mxu0 0.0
    %1008 = vmatpush1.msra.mxu0 %v970
    %1009 = vmatprep.subr.mxu0 0.0
    %1010 = vmatpush1.msra.mxu0 %v969
    %1011 = vmatprep.subr.mxu0 0.0
    %1012 = vmatpush1.msra.mxu0 %v968
    %1013 = vmatprep.subr.mxu0 0.0
    %1014 = vmatpush1.msra.mxu0 %v967
    %1015 = vmatprep.subr.mxu0 0.0
    %1016 = vmatpush2.msra.mxu0 0.0
    %1017 = vmatprep.subr.mxu0 0.0
    %1018 = vmatpush2.msra.mxu0 0.0
    %1019 = vmatprep.subr.mxu0 0.0
    %1020 = vmatpush2.msra.mxu0 0.0
    %1021 = vmatprep.subr.mxu0 0.0
    %1022 = vmatpush2.msra.mxu0 0.0
    %1023 = vmatprep.subr.mxu0 0.0
    %1024 = vmatpush2.msra.mxu0 0.0
    %1025 = vmatprep.subr.mxu0 0.0
    %1026 = vmatpush2.msra.mxu0 0.0
    %1027 = vmatprep.subr.mxu0 0.0
    %1028 = vmatpush2.msra.mxu0 0.0
    %1029 = vmatprep.subr.mxu0 0.0
    %1030 = vmatpush2.msra.mxu0 0.0
    %1031 = vmatprep.subr.mxu0 0.0
    %1032 = vmatpush2.msra.mxu0 0.0
    %1033 = vmatprep.subr.mxu0 0.0
    %1034 = vmatpush2.msra.mxu0 0.0
    %1035 = vmatprep.subr.mxu0 0.0
    %1036 = vmatpush2.msra.mxu0 0.0
    %1037 = vmatprep.subr.mxu0 0.0
    %1038 = vmatpush2.msra.mxu0 0.0
    %1039 = vmatprep.subr.mxu0 0.0
    %1040 = vmatpush2.msra.mxu0 0.0
    %1041 = vmatprep.subr.mxu0 0.0
    %1042 = vmatpush2.msra.mxu0 0.0
    %1043 = vmatprep.subr.mxu0 0.0
    %1044 = vmatpush2.msra.mxu0 0.0
    %1045 = vmatprep.subr.mxu0 0.0
    %1046 = vmatpush2.msra.mxu0 0.0
    %1047 = vmatprep.mubr.f32.mxu0 0.0
    %1048 = vmatmul.mubr.f32.gmra.mxu0 %v74
    %v1049 = vpop.f32.mrf.mxu0
    %v1050 = vadd.f32 0.0, %v1049
    %v1051 = vpop.f32.mrf.mxu0
    %1052 = vmatprep.mubr.f32.mxu0 0.0
    %1053 = vmatmul.mubr.f32.gmra.mxu0 %v75
    %v1054 = vpop.f32.mrf.mxu0
    %v1055 = vadd.f32 0.0, %v1054
    %v1056 = vpop.f32.mrf.mxu0
    %1057 = vdwg.mxu0
    %v1058 = vmul.f32 %v958, %v76
    %v1059 = vmul.f32 %v963, %v77
    %v1060 = vmul.f32 %v1050, %v78
    %v1061 = vmul.f32 %v1055, %v79
    %v1062 = vadd.f32 %v1058, %v1060
    %v1063 = vadd.f32 %v1059, %v1061
    %v1065 = vsel %vm548, %v1062, 0
    %1067 = vmatprep.subr.mxu0 0.0
    %1068 = vmatpush1.xpose.msra.mxu0 0.0
    %1069 = vmatprep.subr.mxu0 0.0
    %1070 = vmatpush1.xpose.msra.mxu0 0.0
    %1071 = vmatprep.subr.mxu0 0.0
    %1072 = vmatpush1.xpose.msra.mxu0 0.0
    %1073 = vmatprep.subr.mxu0 0.0
    %1074 = vmatpush1.xpose.msra.mxu0 0.0
    %1075 = vmatprep.subr.mxu0 0.0
    %1076 = vmatpush1.xpose.msra.mxu0 0.0
    %1077 = vmatprep.subr.mxu0 0.0
    %1078 = vmatpush1.xpose.msra.mxu0 0.0
    %1079 = vmatprep.subr.mxu0 0.0
    %1080 = vmatpush1.xpose.msra.mxu0 0.0
    %1081 = vmatprep.subr.mxu0 0.0
    %1082 = vmatpush1.xpose.msra.mxu0 0.0
    %1083 = vmatprep.subr.mxu0 0.0
    %1084 = vmatpush1.xpose.msra.mxu0 0.0
    %1085 = vmatprep.subr.mxu0 0.0
    %1086 = vmatpush1.xpose.msra.mxu0 0.0
    %1087 = vmatprep.subr.mxu0 0.0
    %1088 = vmatpush1.xpose.msra.mxu0 0.0
    %1089 = vmatprep.subr.mxu0 0.0
    %1090 = vmatpush1.xpose.msra.mxu0 0.0
    %1091 = vmatprep.subr.mxu0 0.0
    %1092 = vmatpush1.xpose.msra.mxu0 0.0
    %1093 = vmatprep.subr.mxu0 0.0
    %1094 = vmatpush1.xpose.msra.mxu0 0.0
    %1095 = vmatprep.subr.mxu0 0.0
    %1096 = vmatpush1.xpose.msra.mxu0 0.0
    %1097 = vmatprep.subr.mxu0 0.0
    %1098 = vmatpush1.xpose.msra.mxu0 %v553
    %1099 = vmatprep.subr.mxu0 0.0
    %1100 = vmatpush2.xpose.msra.mxu0 0.0
    %1101 = vmatprep.subr.mxu0 0.0
    %1102 = vmatpush2.xpose.msra.mxu0 0.0
    %1103 = vmatprep.subr.mxu0 0.0
    %1104 = vmatpush2.xpose.msra.mxu0 0.0
    %1105 = vmatprep.subr.mxu0 0.0
    %1106 = vmatpush2.xpose.msra.mxu0 0.0
    %1107 = vmatprep.subr.mxu0 0.0
    %1108 = vmatpush2.xpose.msra.mxu0 0.0
    %1109 = vmatprep.subr.mxu0 0.0
    %1110 = vmatpush2.xpose.msra.mxu0 0.0
    %1111 = vmatprep.subr.mxu0 0.0
    %1112 = vmatpush2.xpose.msra.mxu0 0.0
    %1113 = vmatprep.subr.mxu0 0.0
    %1114 = vmatpush2.xpose.msra.mxu0 0.0
    %1115 = vmatprep.subr.mxu0 0.0
    %1116 = vmatpush2.xpose.msra.mxu0 0.0
    %1117 = vmatprep.subr.mxu0 0.0
    %1118 = vmatpush2.xpose.msra.mxu0 0.0
    %1119 = vmatprep.subr.mxu0 0.0
    %1120 = vmatpush2.xpose.msra.mxu0 0.0
    %1121 = vmatprep.subr.mxu0 0.0
    %1122 = vmatpush2.xpose.msra.mxu0 0.0
    %1123 = vmatprep.subr.mxu0 0.0
    %1124 = vmatpush2.xpose.msra.mxu0 0.0
    %1125 = vmatprep.subr.mxu0 0.0
    %1126 = vmatpush2.xpose.msra.mxu0 0.0
    %1127 = vmatprep.subr.mxu0 0.0
    %1128 = vmatpush2.xpose.msra.mxu0 0.0
    %1129 = vmatprep.subr.mxu0 0.0
    %1130 = vmatpush2.xpose.msra.mxu0 0.0
    %1131 = vmatprep.mubr.f32.mxu0 0.0
    %1132 = vmatmul.mubr.f32.gmra.mxu0 %v1065
    %v1133 = vpop.f32.mrf.mxu0
    %v1134 = vadd.f32 0.0, %v1133
    %v1135 = vpop.f32.mrf.mxu0
    %1136 = vdwg.mxu0
    %v1137 = vmul.f32 %v1134, 0.35355338
    %v1138 = vadd.f32 %v1137, %v80
    %v1139 = vsel %vm548, %v1138, -inf
    %1140 = vmax.xlane.f32.xlu0 %v1139
    %v1141 = vpop.xlane.xlu0 %1140
    %v1142 = vsub.f32 %v1138, %v1141
    %v1143 = vmul.f32 %v1142, 1.442695
    %v1144 = vpow.pop %v1143
    %v1145 = vsel %vm548, %v1144, 0.0
    %1146 = vadd.xlane.f32.xlu0 %v1145
    %v1147 = vpop.xlane.xlu0 %1146
    %v1148 = vrcp.pop %v1147
    %v1149 = vmul.f32 %v1144, %v1148
    %v1151 = vsel %vm548, %v1149, 0
    %1153 = vmatprep.subr.mxu0 0.0
    %1154 = vmatpush1.msra.mxu0 0.0
    %1155 = vmatprep.subr.mxu0 0.0
    %1156 = vmatpush1.msra.mxu0 0.0
    %1157 = vmatprep.subr.mxu0 0.0
    %1158 = vmatpush1.msra.mxu0 0.0
    %1159 = vmatprep.subr.mxu0 0.0
    %1160 = vmatpush1.msra.mxu0 0.0
    %1161 = vmatprep.subr.mxu0 0.0
    %1162 = vmatpush1.msra.mxu0 0.0
    %1163 = vmatprep.subr.mxu0 0.0
    %1164 = vmatpush1.msra.mxu0 0.0
    %1165 = vmatprep.subr.mxu0 0.0
    %1166 = vmatpush1.msra.mxu0 0.0
    %1167 = vmatprep.subr.mxu0 0.0
    %1168 = vmatpush1.msra.mxu0 0.0
    %1169 = vmatprep.subr.mxu0 0.0
    %1170 = vmatpush1.msra.mxu0 0.0
    %1171 = vmatprep.subr.mxu0 0.0
    %1172 = vmatpush1.msra.mxu0 0.0
    %1173 = vmatprep.subr.mxu0 0.0
    %1174 = vmatpush1.msra.mxu0 0.0
    %1175 = vmatprep.subr.mxu0 0.0
    %1176 = vmatpush1.msra.mxu0 0.0
    %1177 = vmatprep.subr.mxu0 0.0
    %1178 = vmatpush1.msra.mxu0 0.0
    %1179 = vmatprep.subr.mxu0 0.0
    %1180 = vmatpush1.msra.mxu0 0.0
    %1181 = vmatprep.subr.mxu0 0.0
    %1182 = vmatpush1.msra.mxu0 0.0
    %1183 = vmatprep.subr.mxu0 0.0
    %1184 = vmatpush1.msra.mxu0 %v352
    %1185 = vmatprep.subr.mxu0 0.0
    %1186 = vmatpush2.msra.mxu0 0.0
    %1187 = vmatprep.subr.mxu0 0.0
    %1188 = vmatpush2.msra.mxu0 0.0
    %1189 = vmatprep.subr.mxu0 0.0
    %1190 = vmatpush2.msra.mxu0 0.0
    %1191 = vmatprep.subr.mxu0 0.0
    %1192 = vmatpush2.msra.mxu0 0.0
    %1193 = vmatprep.subr.mxu0 0.0
    %1194 = vmatpush2.msra.mxu0 0.0
    %1195 = vmatprep.subr.mxu0 0.0
    %1196 = vmatpush2.msra.mxu0 0.0
    %1197 = vmatprep.subr.mxu0 0.0
    %1198 = vmatpush2.msra.mxu0 0.0
    %1199 = vmatprep.subr.mxu0 0.0
    %1200 = vmatpush2.msra.mxu0 0.0
    %1201 = vmatprep.subr.mxu0 0.0
    %1202 = vmatpush2.msra.mxu0 0.0
    %1203 = vmatprep.subr.mxu0 0.0
    %1204 = vmatpush2.msra.mxu0 0.0
    %1205 = vmatprep.subr.mxu0 0.0
    %1206 = vmatpush2.msra.mxu0 0.0
    %1207 = vmatprep.subr.mxu0 0.0
    %1208 = vmatpush2.msra.mxu0 0.0
    %1209 = vmatprep.subr.mxu0 0.0
    %1210 = vmatpush2.msra.mxu0 0.0
    %1211 = vmatprep.subr.mxu0 0.0
    %1212 = vmatpush2.msra.mxu0 0.0
    %1213 = vmatprep.subr.mxu0 0.0
    %1214 = vmatpush2.msra.mxu0 0.0
    %1215 = vmatprep.subr.mxu0 0.0
    %1216 = vmatpush2.msra.mxu0 0.0
    %1217 = vmatprep.mubr.f32.mxu0 0.0
    %1218 = vmatmul.mubr.f32.gmra.mxu0 %v1151
    %v1219 = vpop.f32.mrf.mxu0
    %v1220 = vadd.f32 0.0, %v1219
    %v1221 = vpop.f32.mrf.mxu0
    %1222 = vdwg.mxu0
    %v1224 = vsel %vm548, %v1063, 0
    %1226 = vmatprep.subr.mxu0 0.0
    %1227 = vmatpush1.xpose.msra.mxu0 0.0
    %1228 = vmatprep.subr.mxu0 0.0
    %1229 = vmatpush1.xpose.msra.mxu0 0.0
    %1230 = vmatprep.subr.mxu0 0.0
    %1231 = vmatpush1.xpose.msra.mxu0 0.0
    %1232 = vmatprep.subr.mxu0 0.0
    %1233 = vmatpush1.xpose.msra.mxu0 0.0
    %1234 = vmatprep.subr.mxu0 0.0
    %1235 = vmatpush1.xpose.msra.mxu0 0.0
    %1236 = vmatprep.subr.mxu0 0.0
    %1237 = vmatpush1.xpose.msra.mxu0 0.0
    %1238 = vmatprep.subr.mxu0 0.0
    %1239 = vmatpush1.xpose.msra.mxu0 0.0
    %1240 = vmatprep.subr.mxu0 0.0
    %1241 = vmatpush1.xpose.msra.mxu0 0.0
    %1242 = vmatprep.subr.mxu0 0.0
    %1243 = vmatpush1.xpose.msra.mxu0 0.0
    %1244 = vmatprep.subr.mxu0 0.0
    %1245 = vmatpush1.xpose.msra.mxu0 0.0
    %1246 = vmatprep.subr.mxu0 0.0
    %1247 = vmatpush1.xpose.msra.mxu0 0.0
    %1248 = vmatprep.subr.mxu0 0.0
    %1249 = vmatpush1.xpose.msra.mxu0 0.0
    %1250 = vmatprep.subr.mxu0 0.0
    %1251 = vmatpush1.xpose.msra.mxu0 0.0
    %1252 = vmatprep.subr.mxu0 0.0
    %1253 = vmatpush1.xpose.msra.mxu0 0.0
    %1254 = vmatprep.subr.mxu0 0.0
    %1255 = vmatpush1.xpose.msra.mxu0 0.0
    %1256 = vmatprep.subr.mxu0 0.0
    %1257 = vmatpush1.xpose.msra.mxu0 %v715
    %1258 = vmatprep.subr.mxu0 0.0
    %1259 = vmatpush2.xpose.msra.mxu0 0.0
    %1260 = vmatprep.subr.mxu0 0.0
    %1261 = vmatpush2.xpose.msra.mxu0 0.0
    %1262 = vmatprep.subr.mxu0 0.0
    %1263 = vmatpush2.xpose.msra.mxu0 0.0
    %1264 = vmatprep.subr.mxu0 0.0
    %1265 = vmatpush2.xpose.msra.mxu0 0.0
    %1266 = vmatprep.subr.mxu0 0.0
    %1267 = vmatpush2.xpose.msra.mxu0 0.0
    %1268 = vmatprep.subr.mxu0 0.0
    %1269 = vmatpush2.xpose.msra.mxu0 0.0
    %1270 = vmatprep.subr.mxu0 0.0
    %1271 = vmatpush2.xpose.msra.mxu0 0.0
    %1272 = vmatprep.subr.mxu0 0.0
    %1273 = vmatpush2.xpose.msra.mxu0 0.0
    %1274 = vmatprep.subr.mxu0 0.0
    %1275 = vmatpush2.xpose.msra.mxu0 0.0
    %1276 = vmatprep.subr.mxu0 0.0
    %1277 = vmatpush2.xpose.msra.mxu0 0.0
    %1278 = vmatprep.subr.mxu0 0.0
    %1279 = vmatpush2.xpose.msra.mxu0 0.0
    %1280 = vmatprep.subr.mxu0 0.0
    %1281 = vmatpush2.xpose.msra.mxu0 0.0
    %1282 = vmatprep.subr.mxu0 0.0
    %1283 = vmatpush2.xpose.msra.mxu0 0.0
    %1284 = vmatprep.subr.mxu0 0.0
    %1285 = vmatpush2.xpose.msra.mxu0 0.0
    %1286 = vmatprep.subr.mxu0 0.0
    %1287 = vmatpush2.xpose.msra.mxu0 0.0
    %1288 = vmatprep.subr.mxu0 0.0
    %1289 = vmatpush2.xpose.msra.mxu0 0.0
    %1290 = vmatprep.mubr.f32.mxu0 0.0
    %1291 = vmatmul.mubr.f32.gmra.mxu0 %v1224
    %v1292 = vpop.f32.mrf.mxu0
    %v1293 = vadd.f32 0.0, %v1292
    %v1294 = vpop.f32.mrf.mxu0
    %1295 = vdwg.mxu0
    %v1296 = vmul.f32 %v1293, 0.35355338
    %v1297 = vadd.f32 %v1296, %v80
    %v1298 = vsel %vm548, %v1297, -inf
    %1299 = vmax.xlane.f32.xlu0 %v1298
    %v1300 = vpop.xlane.xlu0 %1299
    %v1301 = vsub.f32 %v1297, %v1300
    %v1302 = vmul.f32 %v1301, 1.442695
    %v1303 = vpow.pop %v1302
    %v1304 = vsel %vm548, %v1303, 0.0
    %1305 = vadd.xlane.f32.xlu0 %v1304
    %v1306 = vpop.xlane.xlu0 %1305
    %v1307 = vrcp.pop %v1306
    %v1308 = vmul.f32 %v1303, %v1307
    %v1310 = vsel %vm548, %v1308, 0
    %1312 = vmatprep.subr.mxu0 0.0
    %1313 = vmatpush1.msra.mxu0 0.0
    %1314 = vmatprep.subr.mxu0 0.0
    %1315 = vmatpush1.msra.mxu0 0.0
    %1316 = vmatprep.subr.mxu0 0.0
    %1317 = vmatpush1.msra.mxu0 0.0
    %1318 = vmatprep.subr.mxu0 0.0
    %1319 = vmatpush1.msra.mxu0 0.0
    %1320 = vmatprep.subr.mxu0 0.0
    %1321 = vmatpush1.msra.mxu0 0.0
    %1322 = vmatprep.subr.mxu0 0.0
    %1323 = vmatpush1.msra.mxu0 0.0
    %1324 = vmatprep.subr.mxu0 0.0
    %1325 = vmatpush1.msra.mxu0 0.0
    %1326 = vmatprep.subr.mxu0 0.0
    %1327 = vmatpush1.msra.mxu0 0.0
    %1328 = vmatprep.subr.mxu0 0.0
    %1329 = vmatpush1.msra.mxu0 0.0
    %1330 = vmatprep.subr.mxu0 0.0
    %1331 = vmatpush1.msra.mxu0 0.0
    %1332 = vmatprep.subr.mxu0 0.0
    %1333 = vmatpush1.msra.mxu0 0.0
    %1334 = vmatprep.subr.mxu0 0.0
    %1335 = vmatpush1.msra.mxu0 0.0
    %1336 = vmatprep.subr.mxu0 0.0
    %1337 = vmatpush1.msra.mxu0 0.0
    %1338 = vmatprep.subr.mxu0 0.0
    %1339 = vmatpush1.msra.mxu0 0.0
    %1340 = vmatprep.subr.mxu0 0.0
    %1341 = vmatpush1.msra.mxu0 0.0
    %1342 = vmatprep.subr.mxu0 0.0
    %1343 = vmatpush1.msra.mxu0 %v357
    %1344 = vmatprep.subr.mxu0 0.0
    %1345 = vmatpush2.msra.mxu0 0.0
    %1346 = vmatprep.subr.mxu0 0.0
    %1347 = vmatpush2.msra.mxu0 0.0
    %1348 = vmatprep.subr.mxu0 0.0
    %1349 = vmatpush2.msra.mxu0 0.0
    %1350 = vmatprep.subr.mxu0 0.0
    %1351 = vmatpush2.msra.mxu0 0.0
    %1352 = vmatprep.subr.mxu0 0.0
    %1353 = vmatpush2.msra.mxu0 0.0
    %1354 = vmatprep.subr.mxu0 0.0
    %1355 = vmatpush2.msra.mxu0 0.0
    %1356 = vmatprep.subr.mxu0 0.0
    %1357 = vmatpush2.msra.mxu0 0.0
    %1358 = vmatprep.subr.mxu0 0.0
    %1359 = vmatpush2.msra.mxu0 0.0
    %1360 = vmatprep.subr.mxu0 0.0
    %1361 = vmatpush2.msra.mxu0 0.0
    %1362 = vmatprep.subr.mxu0 0.0
    %1363 = vmatpush2.msra.mxu0 0.0
    %1364 = vmatprep.subr.mxu0 0.0
    %1365 = vmatpush2.msra.mxu0 0.0
    %1366 = vmatprep.subr.mxu0 0.0
    %1367 = vmatpush2.msra.mxu0 0.0
    %1368 = vmatprep.subr.mxu0 0.0
    %1369 = vmatpush2.msra.mxu0 0.0
    %1370 = vmatprep.subr.mxu0 0.0
    %1371 = vmatpush2.msra.mxu0 0.0
    %1372 = vmatprep.subr.mxu0 0.0
    %1373 = vmatpush2.msra.mxu0 0.0
    %1374 = vmatprep.subr.mxu0 0.0
    %1375 = vmatpush2.msra.mxu0 0.0
    %1376 = vmatprep.mubr.f32.mxu0 0.0
    %1377 = vmatmul.mubr.f32.gmra.mxu0 %v1310
    %v1378 = vpop.f32.mrf.mxu0
    %v1379 = vadd.f32 0.0, %v1378
    %v1380 = vpop.f32.mrf.mxu0
    %1381 = vdwg.mxu0
    %s1382 = scalar_lea.vmem %s7, 8
    %v1383 = vld [vmem:[%s1382] sm:$0xff]
    %v1385 = vsel %vm548, %v1220, 0
    %v1388 = vsel %vm548, %v1379, 0
    %1390 = vmatprep.subr.mxu0 0.0
    %1391 = vmatpush1.msra.mxu0 0.0
    %1392 = vmatprep.subr.mxu0 0.0
    %1393 = vmatpush1.msra.mxu0 0.0
    %1394 = vmatprep.subr.mxu0 0.0
    %1395 = vmatpush1.msra.mxu0 0.0
    %1396 = vmatprep.subr.mxu0 0.0
    %1397 = vmatpush1.msra.mxu0 0.0
    %1398 = vmatprep.subr.mxu0 0.0
    %1399 = vmatpush1.msra.mxu0 0.0
    %1400 = vmatprep.subr.mxu0 0.0
    %1401 = vmatpush1.msra.mxu0 0.0
    %1402 = vmatprep.subr.mxu0 0.0
    %1403 = vmatpush1.msra.mxu0 0.0
    %1404 = vmatprep.subr.mxu0 0.0
    %1405 = vmatpush1.msra.mxu0 0.0
    %1406 = vmatprep.subr.mxu0 0.0
    %1407 = vmatpush1.msra.mxu0 0.0
    %1408 = vmatprep.subr.mxu0 0.0
    %1409 = vmatpush1.msra.mxu0 0.0
    %1410 = vmatprep.subr.mxu0 0.0
    %1411 = vmatpush1.msra.mxu0 0.0
    %1412 = vmatprep.subr.mxu0 0.0
    %1413 = vmatpush1.msra.mxu0 0.0
    %1414 = vmatprep.subr.mxu0 0.0
    %1415 = vmatpush1.msra.mxu0 0.0
    %1416 = vmatprep.subr.mxu0 0.0
    %1417 = vmatpush1.msra.mxu0 0.0
    %1418 = vmatprep.subr.mxu0 0.0
    %1419 = vmatpush1.msra.mxu0 0.0
    %1420 = vmatprep.subr.mxu0 0.0
    %1421 = vmatpush1.msra.mxu0 %v1383
    %1422 = vmatprep.subr.mxu0 0.0
    %1423 = vmatpush2.msra.mxu0 0.0
    %1424 = vmatprep.subr.mxu0 0.0
    %1425 = vmatpush2.msra.mxu0 0.0
    %1426 = vmatprep.subr.mxu0 0.0
    %1427 = vmatpush2.msra.mxu0 0.0
    %1428 = vmatprep.subr.mxu0 0.0
    %1429 = vmatpush2.msra.mxu0 0.0
    %1430 = vmatprep.subr.mxu0 0.0
    %1431 = vmatpush2.msra.mxu0 0.0
    %1432 = vmatprep.subr.mxu0 0.0
    %1433 = vmatpush2.msra.mxu0 0.0
    %1434 = vmatprep.subr.mxu0 0.0
    %1435 = vmatpush2.msra.mxu0 0.0
    %1436 = vmatprep.subr.mxu0 0.0
    %1437 = vmatpush2.msra.mxu0 0.0
    %1438 = vmatprep.subr.mxu0 0.0
    %1439 = vmatpush2.msra.mxu0 0.0
    %1440 = vmatprep.subr.mxu0 0.0
    %1441 = vmatpush2.msra.mxu0 0.0
    %1442 = vmatprep.subr.mxu0 0.0
    %1443 = vmatpush2.msra.mxu0 0.0
    %1444 = vmatprep.subr.mxu0 0.0
    %1445 = vmatpush2.msra.mxu0 0.0
    %1446 = vmatprep.subr.mxu0 0.0
    %1447 = vmatpush2.msra.mxu0 0.0
    %1448 = vmatprep.subr.mxu0 0.0
    %1449 = vmatpush2.msra.mxu0 0.0
    %1450 = vmatprep.subr.mxu0 0.0
    %1451 = vmatpush2.msra.mxu0 0.0
    %1452 = vmatprep.subr.mxu0 0.0
    %1453 = vmatpush2.msra.mxu0 0.0
    %1454 = vmatprep.mubr.f32.mxu0 0.0
    %1455 = vmatmul.mubr.f32.gmra.mxu0 %v1385
    %v1456 = vpop.f32.mrf.mxu0
    %v1457 = vadd.f32 0.0, %v1456
    %v1458 = vpop.f32.mrf.mxu0
    %1459 = vmatprep.mubr.f32.mxu0 0.0
    %1460 = vmatmul.mubr.f32.gmra.mxu0 %v1388
    %v1461 = vpop.f32.mrf.mxu0
    %v1462 = vadd.f32 0.0, %v1461
    %v1463 = vpop.f32.mrf.mxu0
    %1464 = vdwg.mxu0
    %v1466 = vsel %vm548, %v708, 0
    %v1469 = vsel %vm548, %v870, 0
    %1471 = vmatprep.subr.mxu0 0.0
    %1472 = vmatpush1.msra.mxu0 0.0
    %1473 = vmatprep.subr.mxu0 0.0
    %1474 = vmatpush1.msra.mxu0 0.0
    %1475 = vmatprep.subr.mxu0 0.0
    %1476 = vmatpush1.msra.mxu0 0.0
    %1477 = vmatprep.subr.mxu0 0.0
    %1478 = vmatpush1.msra.mxu0 0.0
    %1479 = vmatprep.subr.mxu0 0.0
    %1480 = vmatpush1.msra.mxu0 0.0
    %1481 = vmatprep.subr.mxu0 0.0
    %1482 = vmatpush1.msra.mxu0 0.0
    %1483 = vmatprep.subr.mxu0 0.0
    %1484 = vmatpush1.msra.mxu0 0.0
    %1485 = vmatprep.subr.mxu0 0.0
    %1486 = vmatpush1.msra.mxu0 0.0
    %1487 = vmatprep.subr.mxu0 0.0
    %1488 = vmatpush1.msra.mxu0 0.0
    %1489 = vmatprep.subr.mxu0 0.0
    %1490 = vmatpush1.msra.mxu0 0.0
    %1491 = vmatprep.subr.mxu0 0.0
    %1492 = vmatpush1.msra.mxu0 0.0
    %1493 = vmatprep.subr.mxu0 0.0
    %1494 = vmatpush1.msra.mxu0 0.0
    %1495 = vmatprep.subr.mxu0 0.0
    %1496 = vmatpush1.msra.mxu0 0.0
    %1497 = vmatprep.subr.mxu0 0.0
    %1498 = vmatpush1.msra.mxu0 0.0
    %1499 = vmatprep.subr.mxu0 0.0
    %1500 = vmatpush1.msra.mxu0 0.0
    %1501 = vmatprep.subr.mxu0 0.0
    %1502 = vmatpush1.msra.mxu0 %v873
    %1503 = vmatprep.subr.mxu0 0.0
    %1504 = vmatpush2.msra.mxu0 0.0
    %1505 = vmatprep.subr.mxu0 0.0
    %1506 = vmatpush2.msra.mxu0 0.0
    %1507 = vmatprep.subr.mxu0 0.0
    %1508 = vmatpush2.msra.mxu0 0.0
    %1509 = vmatprep.subr.mxu0 0.0
    %1510 = vmatpush2.msra.mxu0 0.0
    %1511 = vmatprep.subr.mxu0 0.0
    %1512 = vmatpush2.msra.mxu0 0.0
    %1513 = vmatprep.subr.mxu0 0.0
    %1514 = vmatpush2.msra.mxu0 0.0
    %1515 = vmatprep.subr.mxu0 0.0
    %1516 = vmatpush2.msra.mxu0 0.0
    %1517 = vmatprep.subr.mxu0 0.0
    %1518 = vmatpush2.msra.mxu0 0.0
    %1519 = vmatprep.subr.mxu0 0.0
    %1520 = vmatpush2.msra.mxu0 0.0
    %1521 = vmatprep.subr.mxu0 0.0
    %1522 = vmatpush2.msra.mxu0 0.0
    %1523 = vmatprep.subr.mxu0 0.0
    %1524 = vmatpush2.msra.mxu0 0.0
    %1525 = vmatprep.subr.mxu0 0.0
    %1526 = vmatpush2.msra.mxu0 0.0
    %1527 = vmatprep.subr.mxu0 0.0
    %1528 = vmatpush2.msra.mxu0 0.0
    %1529 = vmatprep.subr.mxu0 0.0
    %1530 = vmatpush2.msra.mxu0 0.0
    %1531 = vmatprep.subr.mxu0 0.0
    %1532 = vmatpush2.msra.mxu0 0.0
    %1533 = vmatprep.subr.mxu0 0.0
    %1534 = vmatpush2.msra.mxu0 0.0
    %1535 = vmatprep.mubr.f32.mxu0 0.0
    %1536 = vmatmul.mubr.f32.gmra.mxu0 %v1466
    %v1537 = vpop.f32.mrf.mxu0
    %v1538 = vadd.f32 %v1457, %v1537
    %v1539 = vpop.f32.mrf.mxu0
    %1540 = vmatprep.mubr.f32.mxu0 0.0
    %1541 = vmatmul.mubr.f32.gmra.mxu0 %v1469
    %v1542 = vpop.f32.mrf.mxu0
    %v1543 = vadd.f32 %v1462, %v1542
    %v1544 = vpop.f32.mrf.mxu0
    %1545 = vdwg.mxu0
    %s1546 = scalar_lea.vmem %s4, 128
    %v1547 = vld [vmem:[%s1546] sm:$0xff]
    %v1548 = vld [vmem:[%s1546 + $0x8] sm:$0xff]
    %v1549 = vld [vmem:[%s1546 + $0x10] sm:$0xff]
    %v1550 = vld [vmem:[%s1546 + $0x18] sm:$0xff]
    %v1551 = vld [vmem:[%s1546 + $0x20] sm:$0xff]
    %v1552 = vld [vmem:[%s1546 + $0x28] sm:$0xff]
    %v1553 = vld [vmem:[%s1546 + $0x30] sm:$0xff]
    %v1554 = vld [vmem:[%s1546 + $0x38] sm:$0xff]
    %v1555 = vld [vmem:[%s1546 + $0x40] sm:$0xff]
    %v1556 = vld [vmem:[%s1546 + $0x48] sm:$0xff]
    %v1557 = vld [vmem:[%s1546 + $0x50] sm:$0xff]
    %v1558 = vld [vmem:[%s1546 + $0x58] sm:$0xff]
    %v1559 = vld [vmem:[%s1546 + $0x60] sm:$0xff]
    %v1560 = vld [vmem:[%s1546 + $0x68] sm:$0xff]
    %v1561 = vld [vmem:[%s1546 + $0x70] sm:$0xff]
    %v1562 = vld [vmem:[%s1546 + $0x78] sm:$0xff]
    %1563 = vmatprep.subr.mxu0 0.0
    %1564 = vmatpush1.msra.mxu0 %v1562
    %1565 = vmatprep.subr.mxu0 0.0
    %1566 = vmatpush1.msra.mxu0 %v1561
    %1567 = vmatprep.subr.mxu0 0.0
    %1568 = vmatpush1.msra.mxu0 %v1560
    %1569 = vmatprep.subr.mxu0 0.0
    %1570 = vmatpush1.msra.mxu0 %v1559
    %1571 = vmatprep.subr.mxu0 0.0
    %1572 = vmatpush1.msra.mxu0 %v1558
    %1573 = vmatprep.subr.mxu0 0.0
    %1574 = vmatpush1.msra.mxu0 %v1557
    %1575 = vmatprep.subr.mxu0 0.0
    %1576 = vmatpush1.msra.mxu0 %v1556
    %1577 = vmatprep.subr.mxu0 0.0
    %1578 = vmatpush1.msra.mxu0 %v1555
    %1579 = vmatprep.subr.mxu0 0.0
    %1580 = vmatpush1.msra.mxu0 %v1554
    %1581 = vmatprep.subr.mxu0 0.0
    %1582 = vmatpush1.msra.mxu0 %v1553
    %1583 = vmatprep.subr.mxu0 0.0
    %1584 = vmatpush1.msra.mxu0 %v1552
    %1585 = vmatprep.subr.mxu0 0.0
    %1586 = vmatpush1.msra.mxu0 %v1551
    %1587 = vmatprep.subr.mxu0 0.0
    %1588 = vmatpush1.msra.mxu0 %v1550
    %1589 = vmatprep.subr.mxu0 0.0
    %1590 = vmatpush1.msra.mxu0 %v1549
    %1591 = vmatprep.subr.mxu0 0.0
    %1592 = vmatpush1.msra.mxu0 %v1548
    %1593 = vmatprep.subr.mxu0 0.0
    %1594 = vmatpush1.msra.mxu0 %v1547
    %1595 = vmatprep.subr.mxu0 0.0
    %1596 = vmatpush2.msra.mxu0 0.0
    %1597 = vmatprep.subr.mxu0 0.0
    %1598 = vmatpush2.msra.mxu0 0.0
    %1599 = vmatprep.subr.mxu0 0.0
    %1600 = vmatpush2.msra.mxu0 0.0
    %1601 = vmatprep.subr.mxu0 0.0
    %1602 = vmatpush2.msra.mxu0 0.0
    %1603 = vmatprep.subr.mxu0 0.0
    %1604 = vmatpush2.msra.mxu0 0.0
    %1605 = vmatprep.subr.mxu0 0.0
    %1606 = vmatpush2.msra.mxu0 0.0
    %1607 = vmatprep.subr.mxu0 0.0
    %1608 = vmatpush2.msra.mxu0 0.0
    %1609 = vmatprep.subr.mxu0 0.0
    %1610 = vmatpush2.msra.mxu0 0.0
    %1611 = vmatprep.subr.mxu0 0.0
    %1612 = vmatpush2.msra.mxu0 0.0
    %1613 = vmatprep.subr.mxu0 0.0
    %1614 = vmatpush2.msra.mxu0 0.0
    %1615 = vmatprep.subr.mxu0 0.0
    %1616 = vmatpush2.msra.mxu0 0.0
    %1617 = vmatprep.subr.mxu0 0.0
    %1618 = vmatpush2.msra.mxu0 0.0
    %1619 = vmatprep.subr.mxu0 0.0
    %1620 = vmatpush2.msra.mxu0 0.0
    %1621 = vmatprep.subr.mxu0 0.0
    %1622 = vmatpush2.msra.mxu0 0.0
    %1623 = vmatprep.subr.mxu0 0.0
    %1624 = vmatpush2.msra.mxu0 0.0
    %1625 = vmatprep.subr.mxu0 0.0
    %1626 = vmatpush2.msra.mxu0 0.0
    %1627 = vmatprep.mubr.f32.mxu0 0.0
    %1628 = vmatmul.mubr.f32.gmra.mxu0 %v74
    %v1629 = vpop.f32.mrf.mxu0
    %v1630 = vadd.f32 0.0, %v1629
    %v1631 = vpop.f32.mrf.mxu0
    %1632 = vmatprep.mubr.f32.mxu0 0.0
    %1633 = vmatmul.mubr.f32.gmra.mxu0 %v75
    %v1634 = vpop.f32.mrf.mxu0
    %v1635 = vadd.f32 0.0, %v1634
    %v1636 = vpop.f32.mrf.mxu0
    %1637 = vdwg.mxu0
    %s1638 = scalar_lea.vmem %s5, 128
    %v1639 = vld [vmem:[%s1638] sm:$0xff]
    %v1640 = vld [vmem:[%s1638 + $0x8] sm:$0xff]
    %v1641 = vld [vmem:[%s1638 + $0x10] sm:$0xff]
    %v1642 = vld [vmem:[%s1638 + $0x18] sm:$0xff]
    %v1643 = vld [vmem:[%s1638 + $0x20] sm:$0xff]
    %v1644 = vld [vmem:[%s1638 + $0x28] sm:$0xff]
    %v1645 = vld [vmem:[%s1638 + $0x30] sm:$0xff]
    %v1646 = vld [vmem:[%s1638 + $0x38] sm:$0xff]
    %v1647 = vld [vmem:[%s1638 + $0x40] sm:$0xff]
    %v1648 = vld [vmem:[%s1638 + $0x48] sm:$0xff]
    %v1649 = vld [vmem:[%s1638 + $0x50] sm:$0xff]
    %v1650 = vld [vmem:[%s1638 + $0x58] sm:$0xff]
    %v1651 = vld [vmem:[%s1638 + $0x60] sm:$0xff]
    %v1652 = vld [vmem:[%s1638 + $0x68] sm:$0xff]
    %v1653 = vld [vmem:[%s1638 + $0x70] sm:$0xff]
    %v1654 = vld [vmem:[%s1638 + $0x78] sm:$0xff]
    %1655 = vmatprep.subr.mxu0 0.0
    %1656 = vmatpush1.msra.mxu0 %v1654
    %1657 = vmatprep.subr.mxu0 0.0
    %1658 = vmatpush1.msra.mxu0 %v1653
    %1659 = vmatprep.subr.mxu0 0.0
    %1660 = vmatpush1.msra.mxu0 %v1652
    %1661 = vmatprep.subr.mxu0 0.0
    %1662 = vmatpush1.msra.mxu0 %v1651
    %1663 = vmatprep.subr.mxu0 0.0
    %1664 = vmatpush1.msra.mxu0 %v1650
    %1665 = vmatprep.subr.mxu0 0.0
    %1666 = vmatpush1.msra.mxu0 %v1649
    %1667 = vmatprep.subr.mxu0 0.0
    %1668 = vmatpush1.msra.mxu0 %v1648
    %1669 = vmatprep.subr.mxu0 0.0
    %1670 = vmatpush1.msra.mxu0 %v1647
    %1671 = vmatprep.subr.mxu0 0.0
    %1672 = vmatpush1.msra.mxu0 %v1646
    %1673 = vmatprep.subr.mxu0 0.0
    %1674 = vmatpush1.msra.mxu0 %v1645
    %1675 = vmatprep.subr.mxu0 0.0
    %1676 = vmatpush1.msra.mxu0 %v1644
    %1677 = vmatprep.subr.mxu0 0.0
    %1678 = vmatpush1.msra.mxu0 %v1643
    %1679 = vmatprep.subr.mxu0 0.0
    %1680 = vmatpush1.msra.mxu0 %v1642
    %1681 = vmatprep.subr.mxu0 0.0
    %1682 = vmatpush1.msra.mxu0 %v1641
    %1683 = vmatprep.subr.mxu0 0.0
    %1684 = vmatpush1.msra.mxu0 %v1640
    %1685 = vmatprep.subr.mxu0 0.0
    %1686 = vmatpush1.msra.mxu0 %v1639
    %1687 = vmatprep.subr.mxu0 0.0
    %1688 = vmatpush2.msra.mxu0 0.0
    %1689 = vmatprep.subr.mxu0 0.0
    %1690 = vmatpush2.msra.mxu0 0.0
    %1691 = vmatprep.subr.mxu0 0.0
    %1692 = vmatpush2.msra.mxu0 0.0
    %1693 = vmatprep.subr.mxu0 0.0
    %1694 = vmatpush2.msra.mxu0 0.0
    %1695 = vmatprep.subr.mxu0 0.0
    %1696 = vmatpush2.msra.mxu0 0.0
    %1697 = vmatprep.subr.mxu0 0.0
    %1698 = vmatpush2.msra.mxu0 0.0
    %1699 = vmatprep.subr.mxu0 0.0
    %1700 = vmatpush2.msra.mxu0 0.0
    %1701 = vmatprep.subr.mxu0 0.0
    %1702 = vmatpush2.msra.mxu0 0.0
    %1703 = vmatprep.subr.mxu0 0.0
    %1704 = vmatpush2.msra.mxu0 0.0
    %1705 = vmatprep.subr.mxu0 0.0
    %1706 = vmatpush2.msra.mxu0 0.0
    %1707 = vmatprep.subr.mxu0 0.0
    %1708 = vmatpush2.msra.mxu0 0.0
    %1709 = vmatprep.subr.mxu0 0.0
    %1710 = vmatpush2.msra.mxu0 0.0
    %1711 = vmatprep.subr.mxu0 0.0
    %1712 = vmatpush2.msra.mxu0 0.0
    %1713 = vmatprep.subr.mxu0 0.0
    %1714 = vmatpush2.msra.mxu0 0.0
    %1715 = vmatprep.subr.mxu0 0.0
    %1716 = vmatpush2.msra.mxu0 0.0
    %1717 = vmatprep.subr.mxu0 0.0
    %1718 = vmatpush2.msra.mxu0 0.0
    %1719 = vmatprep.mubr.f32.mxu0 0.0
    %1720 = vmatmul.mubr.f32.gmra.mxu0 %v74
    %v1721 = vpop.f32.mrf.mxu0
    %v1722 = vadd.f32 0.0, %v1721
    %v1723 = vpop.f32.mrf.mxu0
    %1724 = vmatprep.mubr.f32.mxu0 0.0
    %1725 = vmatmul.mubr.f32.gmra.mxu0 %v75
    %v1726 = vpop.f32.mrf.mxu0
    %v1727 = vadd.f32 0.0, %v1726
    %v1728 = vpop.f32.mrf.mxu0
    %1729 = vdwg.mxu0
    %v1730 = vmul.f32 %v1630, %v76
    %v1731 = vmul.f32 %v1635, %v77
    %v1732 = vmul.f32 %v1722, %v78
    %v1733 = vmul.f32 %v1727, %v79
    %v1734 = vadd.f32 %v1730, %v1732
    %v1735 = vadd.f32 %v1731, %v1733
    %s1736 = scalar_lea.vmem %s6, 128
    %v1737 = vld [vmem:[%s1736] sm:$0xff]
    %v1738 = vld [vmem:[%s1736 + $0x8] sm:$0xff]
    %v1739 = vld [vmem:[%s1736 + $0x10] sm:$0xff]
    %v1740 = vld [vmem:[%s1736 + $0x18] sm:$0xff]
    %v1741 = vld [vmem:[%s1736 + $0x20] sm:$0xff]
    %v1742 = vld [vmem:[%s1736 + $0x28] sm:$0xff]
    %v1743 = vld [vmem:[%s1736 + $0x30] sm:$0xff]
    %v1744 = vld [vmem:[%s1736 + $0x38] sm:$0xff]
    %v1745 = vld [vmem:[%s1736 + $0x40] sm:$0xff]
    %v1746 = vld [vmem:[%s1736 + $0x48] sm:$0xff]
    %v1747 = vld [vmem:[%s1736 + $0x50] sm:$0xff]
    %v1748 = vld [vmem:[%s1736 + $0x58] sm:$0xff]
    %v1749 = vld [vmem:[%s1736 + $0x60] sm:$0xff]
    %v1750 = vld [vmem:[%s1736 + $0x68] sm:$0xff]
    %v1751 = vld [vmem:[%s1736 + $0x70] sm:$0xff]
    %v1752 = vld [vmem:[%s1736 + $0x78] sm:$0xff]
    %1753 = vmatprep.subr.mxu0 0.0
    %1754 = vmatpush1.msra.mxu0 %v1752
    %1755 = vmatprep.subr.mxu0 0.0
    %1756 = vmatpush1.msra.mxu0 %v1751
    %1757 = vmatprep.subr.mxu0 0.0
    %1758 = vmatpush1.msra.mxu0 %v1750
    %1759 = vmatprep.subr.mxu0 0.0
    %1760 = vmatpush1.msra.mxu0 %v1749
    %1761 = vmatprep.subr.mxu0 0.0
    %1762 = vmatpush1.msra.mxu0 %v1748
    %1763 = vmatprep.subr.mxu0 0.0
    %1764 = vmatpush1.msra.mxu0 %v1747
    %1765 = vmatprep.subr.mxu0 0.0
    %1766 = vmatpush1.msra.mxu0 %v1746
    %1767 = vmatprep.subr.mxu0 0.0
    %1768 = vmatpush1.msra.mxu0 %v1745
    %1769 = vmatprep.subr.mxu0 0.0
    %1770 = vmatpush1.msra.mxu0 %v1744
    %1771 = vmatprep.subr.mxu0 0.0
    %1772 = vmatpush1.msra.mxu0 %v1743
    %1773 = vmatprep.subr.mxu0 0.0
    %1774 = vmatpush1.msra.mxu0 %v1742
    %1775 = vmatprep.subr.mxu0 0.0
    %1776 = vmatpush1.msra.mxu0 %v1741
    %1777 = vmatprep.subr.mxu0 0.0
    %1778 = vmatpush1.msra.mxu0 %v1740
    %1779 = vmatprep.subr.mxu0 0.0
    %1780 = vmatpush1.msra.mxu0 %v1739
    %1781 = vmatprep.subr.mxu0 0.0
    %1782 = vmatpush1.msra.mxu0 %v1738
    %1783 = vmatprep.subr.mxu0 0.0
    %1784 = vmatpush1.msra.mxu0 %v1737
    %1785 = vmatprep.subr.mxu0 0.0
    %1786 = vmatpush2.msra.mxu0 0.0
    %1787 = vmatprep.subr.mxu0 0.0
    %1788 = vmatpush2.msra.mxu0 0.0
    %1789 = vmatprep.subr.mxu0 0.0
    %1790 = vmatpush2.msra.mxu0 0.0
    %1791 = vmatprep.subr.mxu0 0.0
    %1792 = vmatpush2.msra.mxu0 0.0
    %1793 = vmatprep.subr.mxu0 0.0
    %1794 = vmatpush2.msra.mxu0 0.0
    %1795 = vmatprep.subr.mxu0 0.0
    %1796 = vmatpush2.msra.mxu0 0.0
    %1797 = vmatprep.subr.mxu0 0.0
    %1798 = vmatpush2.msra.mxu0 0.0
    %1799 = vmatprep.subr.mxu0 0.0
    %1800 = vmatpush2.msra.mxu0 0.0
    %1801 = vmatprep.subr.mxu0 0.0
    %1802 = vmatpush2.msra.mxu0 0.0
    %1803 = vmatprep.subr.mxu0 0.0
    %1804 = vmatpush2.msra.mxu0 0.0
    %1805 = vmatprep.subr.mxu0 0.0
    %1806 = vmatpush2.msra.mxu0 0.0
    %1807 = vmatprep.subr.mxu0 0.0
    %1808 = vmatpush2.msra.mxu0 0.0
    %1809 = vmatprep.subr.mxu0 0.0
    %1810 = vmatpush2.msra.mxu0 0.0
    %1811 = vmatprep.subr.mxu0 0.0
    %1812 = vmatpush2.msra.mxu0 0.0
    %1813 = vmatprep.subr.mxu0 0.0
    %1814 = vmatpush2.msra.mxu0 0.0
    %1815 = vmatprep.subr.mxu0 0.0
    %1816 = vmatpush2.msra.mxu0 0.0
    %1817 = vmatprep.mubr.f32.mxu0 0.0
    %1818 = vmatmul.mubr.f32.gmra.mxu0 %v74
    %v1819 = vpop.f32.mrf.mxu0
    %v1820 = vadd.f32 0.0, %v1819
    %v1821 = vpop.f32.mrf.mxu0
    %1822 = vmatprep.mubr.f32.mxu0 0.0
    %1823 = vmatmul.mubr.f32.gmra.mxu0 %v75
    %v1824 = vpop.f32.mrf.mxu0
    %v1825 = vadd.f32 0.0, %v1824
    %v1826 = vpop.f32.mrf.mxu0
    %1827 = vdwg.mxu0
    %s1828 = scalar_lea.vmem %s2, 256
    %v1829 = vld [vmem:[%s1828] sm:$0xff]
    %v1830 = vld [vmem:[%s1828 + $0x8] sm:$0xff]
    %v1831 = vld [vmem:[%s1828 + $0x10] sm:$0xff]
    %v1832 = vld [vmem:[%s1828 + $0x18] sm:$0xff]
    %v1833 = vld [vmem:[%s1828 + $0x20] sm:$0xff]
    %v1834 = vld [vmem:[%s1828 + $0x28] sm:$0xff]
    %v1835 = vld [vmem:[%s1828 + $0x30] sm:$0xff]
    %v1836 = vld [vmem:[%s1828 + $0x38] sm:$0xff]
    %v1837 = vld [vmem:[%s1828 + $0x40] sm:$0xff]
    %v1838 = vld [vmem:[%s1828 + $0x48] sm:$0xff]
    %v1839 = vld [vmem:[%s1828 + $0x50] sm:$0xff]
    %v1840 = vld [vmem:[%s1828 + $0x58] sm:$0xff]
    %v1841 = vld [vmem:[%s1828 + $0x60] sm:$0xff]
    %v1842 = vld [vmem:[%s1828 + $0x68] sm:$0xff]
    %v1843 = vld [vmem:[%s1828 + $0x70] sm:$0xff]
    %v1844 = vld [vmem:[%s1828 + $0x78] sm:$0xff]
    %1845 = vmatprep.subr.mxu0 0.0
    %1846 = vmatpush1.msra.mxu0 %v1844
    %1847 = vmatprep.subr.mxu0 0.0
    %1848 = vmatpush1.msra.mxu0 %v1843
    %1849 = vmatprep.subr.mxu0 0.0
    %1850 = vmatpush1.msra.mxu0 %v1842
    %1851 = vmatprep.subr.mxu0 0.0
    %1852 = vmatpush1.msra.mxu0 %v1841
    %1853 = vmatprep.subr.mxu0 0.0
    %1854 = vmatpush1.msra.mxu0 %v1840
    %1855 = vmatprep.subr.mxu0 0.0
    %1856 = vmatpush1.msra.mxu0 %v1839
    %1857 = vmatprep.subr.mxu0 0.0
    %1858 = vmatpush1.msra.mxu0 %v1838
    %1859 = vmatprep.subr.mxu0 0.0
    %1860 = vmatpush1.msra.mxu0 %v1837
    %1861 = vmatprep.subr.mxu0 0.0
    %1862 = vmatpush1.msra.mxu0 %v1836
    %1863 = vmatprep.subr.mxu0 0.0
    %1864 = vmatpush1.msra.mxu0 %v1835
    %1865 = vmatprep.subr.mxu0 0.0
    %1866 = vmatpush1.msra.mxu0 %v1834
    %1867 = vmatprep.subr.mxu0 0.0
    %1868 = vmatpush1.msra.mxu0 %v1833
    %1869 = vmatprep.subr.mxu0 0.0
    %1870 = vmatpush1.msra.mxu0 %v1832
    %1871 = vmatprep.subr.mxu0 0.0
    %1872 = vmatpush1.msra.mxu0 %v1831
    %1873 = vmatprep.subr.mxu0 0.0
    %1874 = vmatpush1.msra.mxu0 %v1830
    %1875 = vmatprep.subr.mxu0 0.0
    %1876 = vmatpush1.msra.mxu0 %v1829
    %1877 = vmatprep.subr.mxu0 0.0
    %1878 = vmatpush2.msra.mxu0 0.0
    %1879 = vmatprep.subr.mxu0 0.0
    %1880 = vmatpush2.msra.mxu0 0.0
    %1881 = vmatprep.subr.mxu0 0.0
    %1882 = vmatpush2.msra.mxu0 0.0
    %1883 = vmatprep.subr.mxu0 0.0
    %1884 = vmatpush2.msra.mxu0 0.0
    %1885 = vmatprep.subr.mxu0 0.0
    %1886 = vmatpush2.msra.mxu0 0.0
    %1887 = vmatprep.subr.mxu0 0.0
    %1888 = vmatpush2.msra.mxu0 0.0
    %1889 = vmatprep.subr.mxu0 0.0
    %1890 = vmatpush2.msra.mxu0 0.0
    %1891 = vmatprep.subr.mxu0 0.0
    %1892 = vmatpush2.msra.mxu0 0.0
    %1893 = vmatprep.subr.mxu0 0.0
    %1894 = vmatpush2.msra.mxu0 0.0
    %1895 = vmatprep.subr.mxu0 0.0
    %1896 = vmatpush2.msra.mxu0 0.0
    %1897 = vmatprep.subr.mxu0 0.0
    %1898 = vmatpush2.msra.mxu0 0.0
    %1899 = vmatprep.subr.mxu0 0.0
    %1900 = vmatpush2.msra.mxu0 0.0
    %1901 = vmatprep.subr.mxu0 0.0
    %1902 = vmatpush2.msra.mxu0 0.0
    %1903 = vmatprep.subr.mxu0 0.0
    %1904 = vmatpush2.msra.mxu0 0.0
    %1905 = vmatprep.subr.mxu0 0.0
    %1906 = vmatpush2.msra.mxu0 0.0
    %1907 = vmatprep.subr.mxu0 0.0
    %1908 = vmatpush2.msra.mxu0 0.0
    %1909 = vmatprep.mubr.f32.mxu0 0.0
    %1910 = vmatmul.mubr.f32.gmra.mxu0 %v74
    %v1911 = vpop.f32.mrf.mxu0
    %v1912 = vadd.f32 0.0, %v1911
    %v1913 = vpop.f32.mrf.mxu0
    %1914 = vmatprep.mubr.f32.mxu0 0.0
    %1915 = vmatmul.mubr.f32.gmra.mxu0 %v75
    %v1916 = vpop.f32.mrf.mxu0
    %v1917 = vadd.f32 0.0, %v1916
    %v1918 = vpop.f32.mrf.mxu0
    %1919 = vdwg.mxu0
    %s1920 = scalar_lea.vmem %s3, 256
    %v1921 = vld [vmem:[%s1920] sm:$0xff]
    %v1922 = vld [vmem:[%s1920 + $0x8] sm:$0xff]
    %v1923 = vld [vmem:[%s1920 + $0x10] sm:$0xff]
    %v1924 = vld [vmem:[%s1920 + $0x18] sm:$0xff]
    %v1925 = vld [vmem:[%s1920 + $0x20] sm:$0xff]
    %v1926 = vld [vmem:[%s1920 + $0x28] sm:$0xff]
    %v1927 = vld [vmem:[%s1920 + $0x30] sm:$0xff]
    %v1928 = vld [vmem:[%s1920 + $0x38] sm:$0xff]
    %v1929 = vld [vmem:[%s1920 + $0x40] sm:$0xff]
    %v1930 = vld [vmem:[%s1920 + $0x48] sm:$0xff]
    %v1931 = vld [vmem:[%s1920 + $0x50] sm:$0xff]
    %v1932 = vld [vmem:[%s1920 + $0x58] sm:$0xff]
    %v1933 = vld [vmem:[%s1920 + $0x60] sm:$0xff]
    %v1934 = vld [vmem:[%s1920 + $0x68] sm:$0xff]
    %v1935 = vld [vmem:[%s1920 + $0x70] sm:$0xff]
    %v1936 = vld [vmem:[%s1920 + $0x78] sm:$0xff]
    %1937 = vmatprep.subr.mxu0 0.0
    %1938 = vmatpush1.msra.mxu0 %v1936
    %1939 = vmatprep.subr.mxu0 0.0
    %1940 = vmatpush1.msra.mxu0 %v1935
    %1941 = vmatprep.subr.mxu0 0.0
    %1942 = vmatpush1.msra.mxu0 %v1934
    %1943 = vmatprep.subr.mxu0 0.0
    %1944 = vmatpush1.msra.mxu0 %v1933
    %1945 = vmatprep.subr.mxu0 0.0
    %1946 = vmatpush1.msra.mxu0 %v1932
    %1947 = vmatprep.subr.mxu0 0.0
    %1948 = vmatpush1.msra.mxu0 %v1931
    %1949 = vmatprep.subr.mxu0 0.0
    %1950 = vmatpush1.msra.mxu0 %v1930
    %1951 = vmatprep.subr.mxu0 0.0
    %1952 = vmatpush1.msra.mxu0 %v1929
    %1953 = vmatprep.subr.mxu0 0.0
    %1954 = vmatpush1.msra.mxu0 %v1928
    %1955 = vmatprep.subr.mxu0 0.0
    %1956 = vmatpush1.msra.mxu0 %v1927
    %1957 = vmatprep.subr.mxu0 0.0
    %1958 = vmatpush1.msra.mxu0 %v1926
    %1959 = vmatprep.subr.mxu0 0.0
    %1960 = vmatpush1.msra.mxu0 %v1925
    %1961 = vmatprep.subr.mxu0 0.0
    %1962 = vmatpush1.msra.mxu0 %v1924
    %1963 = vmatprep.subr.mxu0 0.0
    %1964 = vmatpush1.msra.mxu0 %v1923
    %1965 = vmatprep.subr.mxu0 0.0
    %1966 = vmatpush1.msra.mxu0 %v1922
    %1967 = vmatprep.subr.mxu0 0.0
    %1968 = vmatpush1.msra.mxu0 %v1921
    %1969 = vmatprep.subr.mxu0 0.0
    %1970 = vmatpush2.msra.mxu0 0.0
    %1971 = vmatprep.subr.mxu0 0.0
    %1972 = vmatpush2.msra.mxu0 0.0
    %1973 = vmatprep.subr.mxu0 0.0
    %1974 = vmatpush2.msra.mxu0 0.0
    %1975 = vmatprep.subr.mxu0 0.0
    %1976 = vmatpush2.msra.mxu0 0.0
    %1977 = vmatprep.subr.mxu0 0.0
    %1978 = vmatpush2.msra.mxu0 0.0
    %1979 = vmatprep.subr.mxu0 0.0
    %1980 = vmatpush2.msra.mxu0 0.0
    %1981 = vmatprep.subr.mxu0 0.0
    %1982 = vmatpush2.msra.mxu0 0.0
    %1983 = vmatprep.subr.mxu0 0.0
    %1984 = vmatpush2.msra.mxu0 0.0
    %1985 = vmatprep.subr.mxu0 0.0
    %1986 = vmatpush2.msra.mxu0 0.0
    %1987 = vmatprep.subr.mxu0 0.0
    %1988 = vmatpush2.msra.mxu0 0.0
    %1989 = vmatprep.subr.mxu0 0.0
    %1990 = vmatpush2.msra.mxu0 0.0
    %1991 = vmatprep.subr.mxu0 0.0
    %1992 = vmatpush2.msra.mxu0 0.0
    %1993 = vmatprep.subr.mxu0 0.0
    %1994 = vmatpush2.msra.mxu0 0.0
    %1995 = vmatprep.subr.mxu0 0.0
    %1996 = vmatpush2.msra.mxu0 0.0
    %1997 = vmatprep.subr.mxu0 0.0
    %1998 = vmatpush2.msra.mxu0 0.0
    %1999 = vmatprep.subr.mxu0 0.0
    %2000 = vmatpush2.msra.mxu0 0.0
    %2001 = vmatprep.mubr.f32.mxu0 0.0
    %2002 = vmatmul.mubr.f32.gmra.mxu0 %v74
    %v2003 = vpop.f32.mrf.mxu0
    %v2004 = vadd.f32 0.0, %v2003
    %v2005 = vpop.f32.mrf.mxu0
    %2006 = vmatprep.mubr.f32.mxu0 0.0
    %2007 = vmatmul.mubr.f32.gmra.mxu0 %v75
    %v2008 = vpop.f32.mrf.mxu0
    %v2009 = vadd.f32 0.0, %v2008
    %v2010 = vpop.f32.mrf.mxu0
    %2011 = vdwg.mxu0
    %v2012 = vmul.f32 %v1912, %v76
    %v2013 = vmul.f32 %v1917, %v77
    %v2014 = vmul.f32 %v2004, %v78
    %v2015 = vmul.f32 %v2009, %v79
    %v2016 = vadd.f32 %v2012, %v2014
    %v2017 = vadd.f32 %v2013, %v2015
    %v2019 = vsel %vm548, %v2016, 0
    %v2022 = vsel %vm548, %v1734, 0
    %2024 = vmatprep.subr.mxu0 0.0
    %2025 = vmatpush1.xpose.msra.mxu0 0.0
    %2026 = vmatprep.subr.mxu0 0.0
    %2027 = vmatpush1.xpose.msra.mxu0 0.0
    %2028 = vmatprep.subr.mxu0 0.0
    %2029 = vmatpush1.xpose.msra.mxu0 0.0
    %2030 = vmatprep.subr.mxu0 0.0
    %2031 = vmatpush1.xpose.msra.mxu0 0.0
    %2032 = vmatprep.subr.mxu0 0.0
    %2033 = vmatpush1.xpose.msra.mxu0 0.0
    %2034 = vmatprep.subr.mxu0 0.0
    %2035 = vmatpush1.xpose.msra.mxu0 0.0
    %2036 = vmatprep.subr.mxu0 0.0
    %2037 = vmatpush1.xpose.msra.mxu0 0.0
    %2038 = vmatprep.subr.mxu0 0.0
    %2039 = vmatpush1.xpose.msra.mxu0 0.0
    %2040 = vmatprep.subr.mxu0 0.0
    %2041 = vmatpush1.xpose.msra.mxu0 0.0
    %2042 = vmatprep.subr.mxu0 0.0
    %2043 = vmatpush1.xpose.msra.mxu0 0.0
    %2044 = vmatprep.subr.mxu0 0.0
    %2045 = vmatpush1.xpose.msra.mxu0 0.0
    %2046 = vmatprep.subr.mxu0 0.0
    %2047 = vmatpush1.xpose.msra.mxu0 0.0
    %2048 = vmatprep.subr.mxu0 0.0
    %2049 = vmatpush1.xpose.msra.mxu0 0.0
    %2050 = vmatprep.subr.mxu0 0.0
    %2051 = vmatpush1.xpose.msra.mxu0 0.0
    %2052 = vmatprep.subr.mxu0 0.0
    %2053 = vmatpush1.xpose.msra.mxu0 0.0
    %2054 = vmatprep.subr.mxu0 0.0
    %2055 = vmatpush1.xpose.msra.mxu0 %v2022
    %2056 = vmatprep.subr.mxu0 0.0
    %2057 = vmatpush2.xpose.msra.mxu0 0.0
    %2058 = vmatprep.subr.mxu0 0.0
    %2059 = vmatpush2.xpose.msra.mxu0 0.0
    %2060 = vmatprep.subr.mxu0 0.0
    %2061 = vmatpush2.xpose.msra.mxu0 0.0
    %2062 = vmatprep.subr.mxu0 0.0
    %2063 = vmatpush2.xpose.msra.mxu0 0.0
    %2064 = vmatprep.subr.mxu0 0.0
    %2065 = vmatpush2.xpose.msra.mxu0 0.0
    %2066 = vmatprep.subr.mxu0 0.0
    %2067 = vmatpush2.xpose.msra.mxu0 0.0
    %2068 = vmatprep.subr.mxu0 0.0
    %2069 = vmatpush2.xpose.msra.mxu0 0.0
    %2070 = vmatprep.subr.mxu0 0.0
    %2071 = vmatpush2.xpose.msra.mxu0 0.0
    %2072 = vmatprep.subr.mxu0 0.0
    %2073 = vmatpush2.xpose.msra.mxu0 0.0
    %2074 = vmatprep.subr.mxu0 0.0
    %2075 = vmatpush2.xpose.msra.mxu0 0.0
    %2076 = vmatprep.subr.mxu0 0.0
    %2077 = vmatpush2.xpose.msra.mxu0 0.0
    %2078 = vmatprep.subr.mxu0 0.0
    %2079 = vmatpush2.xpose.msra.mxu0 0.0
    %2080 = vmatprep.subr.mxu0 0.0
    %2081 = vmatpush2.xpose.msra.mxu0 0.0
    %2082 = vmatprep.subr.mxu0 0.0
    %2083 = vmatpush2.xpose.msra.mxu0 0.0
    %2084 = vmatprep.subr.mxu0 0.0
    %2085 = vmatpush2.xpose.msra.mxu0 0.0
    %2086 = vmatprep.subr.mxu0 0.0
    %2087 = vmatpush2.xpose.msra.mxu0 0.0
    %2088 = vmatprep.mubr.f32.mxu0 0.0
    %2089 = vmatmul.mubr.f32.gmra.mxu0 %v2019
    %v2090 = vpop.f32.mrf.mxu0
    %v2091 = vadd.f32 0.0, %v2090
    %v2092 = vpop.f32.mrf.mxu0
    %2093 = vdwg.mxu0
    %v2094 = vmul.f32 %v2091, 0.35355338
    %v2095 = vadd.f32 %v2094, %v80
    %v2096 = vsel %vm548, %v2095, -inf
    %2097 = vmax.xlane.f32.xlu0 %v2096
    %v2098 = vpop.xlane.xlu0 %2097
    %v2099 = vsub.f32 %v2095, %v2098
    %v2100 = vmul.f32 %v2099, 1.442695
    %v2101 = vpow.pop %v2100
    %v2102 = vsel %vm548, %v2101, 0.0
    %2103 = vadd.xlane.f32.xlu0 %v2102
    %v2104 = vpop.xlane.xlu0 %2103
    %v2105 = vrcp.pop %v2104
    %v2106 = vmul.f32 %v2101, %v2105
    %v2108 = vsel %vm548, %v2106, 0
    %2110 = vmatprep.subr.mxu0 0.0
    %2111 = vmatpush1.msra.mxu0 0.0
    %2112 = vmatprep.subr.mxu0 0.0
    %2113 = vmatpush1.msra.mxu0 0.0
    %2114 = vmatprep.subr.mxu0 0.0
    %2115 = vmatpush1.msra.mxu0 0.0
    %2116 = vmatprep.subr.mxu0 0.0
    %2117 = vmatpush1.msra.mxu0 0.0
    %2118 = vmatprep.subr.mxu0 0.0
    %2119 = vmatpush1.msra.mxu0 0.0
    %2120 = vmatprep.subr.mxu0 0.0
    %2121 = vmatpush1.msra.mxu0 0.0
    %2122 = vmatprep.subr.mxu0 0.0
    %2123 = vmatpush1.msra.mxu0 0.0
    %2124 = vmatprep.subr.mxu0 0.0
    %2125 = vmatpush1.msra.mxu0 0.0
    %2126 = vmatprep.subr.mxu0 0.0
    %2127 = vmatpush1.msra.mxu0 0.0
    %2128 = vmatprep.subr.mxu0 0.0
    %2129 = vmatpush1.msra.mxu0 0.0
    %2130 = vmatprep.subr.mxu0 0.0
    %2131 = vmatpush1.msra.mxu0 0.0
    %2132 = vmatprep.subr.mxu0 0.0
    %2133 = vmatpush1.msra.mxu0 0.0
    %2134 = vmatprep.subr.mxu0 0.0
    %2135 = vmatpush1.msra.mxu0 0.0
    %2136 = vmatprep.subr.mxu0 0.0
    %2137 = vmatpush1.msra.mxu0 0.0
    %2138 = vmatprep.subr.mxu0 0.0
    %2139 = vmatpush1.msra.mxu0 0.0
    %2140 = vmatprep.subr.mxu0 0.0
    %2141 = vmatpush1.msra.mxu0 %v1820
    %2142 = vmatprep.subr.mxu0 0.0
    %2143 = vmatpush2.msra.mxu0 0.0
    %2144 = vmatprep.subr.mxu0 0.0
    %2145 = vmatpush2.msra.mxu0 0.0
    %2146 = vmatprep.subr.mxu0 0.0
    %2147 = vmatpush2.msra.mxu0 0.0
    %2148 = vmatprep.subr.mxu0 0.0
    %2149 = vmatpush2.msra.mxu0 0.0
    %2150 = vmatprep.subr.mxu0 0.0
    %2151 = vmatpush2.msra.mxu0 0.0
    %2152 = vmatprep.subr.mxu0 0.0
    %2153 = vmatpush2.msra.mxu0 0.0
    %2154 = vmatprep.subr.mxu0 0.0
    %2155 = vmatpush2.msra.mxu0 0.0
    %2156 = vmatprep.subr.mxu0 0.0
    %2157 = vmatpush2.msra.mxu0 0.0
    %2158 = vmatprep.subr.mxu0 0.0
    %2159 = vmatpush2.msra.mxu0 0.0
    %2160 = vmatprep.subr.mxu0 0.0
    %2161 = vmatpush2.msra.mxu0 0.0
    %2162 = vmatprep.subr.mxu0 0.0
    %2163 = vmatpush2.msra.mxu0 0.0
    %2164 = vmatprep.subr.mxu0 0.0
    %2165 = vmatpush2.msra.mxu0 0.0
    %2166 = vmatprep.subr.mxu0 0.0
    %2167 = vmatpush2.msra.mxu0 0.0
    %2168 = vmatprep.subr.mxu0 0.0
    %2169 = vmatpush2.msra.mxu0 0.0
    %2170 = vmatprep.subr.mxu0 0.0
    %2171 = vmatpush2.msra.mxu0 0.0
    %2172 = vmatprep.subr.mxu0 0.0
    %2173 = vmatpush2.msra.mxu0 0.0
    %2174 = vmatprep.mubr.f32.mxu0 0.0
    %2175 = vmatmul.mubr.f32.gmra.mxu0 %v2108
    %v2176 = vpop.f32.mrf.mxu0
    %v2177 = vadd.f32 0.0, %v2176
    %v2178 = vpop.f32.mrf.mxu0
    %2179 = vdwg.mxu0
    %v2181 = vsel %vm548, %v2017, 0
    %v2184 = vsel %vm548, %v1735, 0
    %2186 = vmatprep.subr.mxu0 0.0
    %2187 = vmatpush1.xpose.msra.mxu0 0.0
    %2188 = vmatprep.subr.mxu0 0.0
    %2189 = vmatpush1.xpose.msra.mxu0 0.0
    %2190 = vmatprep.subr.mxu0 0.0
    %2191 = vmatpush1.xpose.msra.mxu0 0.0
    %2192 = vmatprep.subr.mxu0 0.0
    %2193 = vmatpush1.xpose.msra.mxu0 0.0
    %2194 = vmatprep.subr.mxu0 0.0
    %2195 = vmatpush1.xpose.msra.mxu0 0.0
    %2196 = vmatprep.subr.mxu0 0.0
    %2197 = vmatpush1.xpose.msra.mxu0 0.0
    %2198 = vmatprep.subr.mxu0 0.0
    %2199 = vmatpush1.xpose.msra.mxu0 0.0
    %2200 = vmatprep.subr.mxu0 0.0
    %2201 = vmatpush1.xpose.msra.mxu0 0.0
    %2202 = vmatprep.subr.mxu0 0.0
    %2203 = vmatpush1.xpose.msra.mxu0 0.0
    %2204 = vmatprep.subr.mxu0 0.0
    %2205 = vmatpush1.xpose.msra.mxu0 0.0
    %2206 = vmatprep.subr.mxu0 0.0
    %2207 = vmatpush1.xpose.msra.mxu0 0.0
    %2208 = vmatprep.subr.mxu0 0.0
    %2209 = vmatpush1.xpose.msra.mxu0 0.0
    %2210 = vmatprep.subr.mxu0 0.0
    %2211 = vmatpush1.xpose.msra.mxu0 0.0
    %2212 = vmatprep.subr.mxu0 0.0
    %2213 = vmatpush1.xpose.msra.mxu0 0.0
    %2214 = vmatprep.subr.mxu0 0.0
    %2215 = vmatpush1.xpose.msra.mxu0 0.0
    %2216 = vmatprep.subr.mxu0 0.0
    %2217 = vmatpush1.xpose.msra.mxu0 %v2184
    %2218 = vmatprep.subr.mxu0 0.0
    %2219 = vmatpush2.xpose.msra.mxu0 0.0
    %2220 = vmatprep.subr.mxu0 0.0
    %2221 = vmatpush2.xpose.msra.mxu0 0.0
    %2222 = vmatprep.subr.mxu0 0.0
    %2223 = vmatpush2.xpose.msra.mxu0 0.0
    %2224 = vmatprep.subr.mxu0 0.0
    %2225 = vmatpush2.xpose.msra.mxu0 0.0
    %2226 = vmatprep.subr.mxu0 0.0
    %2227 = vmatpush2.xpose.msra.mxu0 0.0
    %2228 = vmatprep.subr.mxu0 0.0
    %2229 = vmatpush2.xpose.msra.mxu0 0.0
    %2230 = vmatprep.subr.mxu0 0.0
    %2231 = vmatpush2.xpose.msra.mxu0 0.0
    %2232 = vmatprep.subr.mxu0 0.0
    %2233 = vmatpush2.xpose.msra.mxu0 0.0
    %2234 = vmatprep.subr.mxu0 0.0
    %2235 = vmatpush2.xpose.msra.mxu0 0.0
    %2236 = vmatprep.subr.mxu0 0.0
    %2237 = vmatpush2.xpose.msra.mxu0 0.0
    %2238 = vmatprep.subr.mxu0 0.0
    %2239 = vmatpush2.xpose.msra.mxu0 0.0
    %2240 = vmatprep.subr.mxu0 0.0
    %2241 = vmatpush2.xpose.msra.mxu0 0.0
    %2242 = vmatprep.subr.mxu0 0.0
    %2243 = vmatpush2.xpose.msra.mxu0 0.0
    %2244 = vmatprep.subr.mxu0 0.0
    %2245 = vmatpush2.xpose.msra.mxu0 0.0
    %2246 = vmatprep.subr.mxu0 0.0
    %2247 = vmatpush2.xpose.msra.mxu0 0.0
    %2248 = vmatprep.subr.mxu0 0.0
    %2249 = vmatpush2.xpose.msra.mxu0 0.0
    %2250 = vmatprep.mubr.f32.mxu0 0.0
    %2251 = vmatmul.mubr.f32.gmra.mxu0 %v2181
    %v2252 = vpop.f32.mrf.mxu0
    %v2253 = vadd.f32 0.0, %v2252
    %v2254 = vpop.f32.mrf.mxu0
    %2255 = vdwg.mxu0
    %v2256 = vmul.f32 %v2253, 0.35355338
    %v2257 = vadd.f32 %v2256, %v80
    %v2258 = vsel %vm548, %v2257, -inf
    %2259 = vmax.xlane.f32.xlu0 %v2258
    %v2260 = vpop.xlane.xlu0 %2259
    %v2261 = vsub.f32 %v2257, %v2260
    %v2262 = vmul.f32 %v2261, 1.442695
    %v2263 = vpow.pop %v2262
    %v2264 = vsel %vm548, %v2263, 0.0
    %2265 = vadd.xlane.f32.xlu0 %v2264
    %v2266 = vpop.xlane.xlu0 %2265
    %v2267 = vrcp.pop %v2266
    %v2268 = vmul.f32 %v2263, %v2267
    %v2270 = vsel %vm548, %v2268, 0
    %2272 = vmatprep.subr.mxu0 0.0
    %2273 = vmatpush1.msra.mxu0 0.0
    %2274 = vmatprep.subr.mxu0 0.0
    %2275 = vmatpush1.msra.mxu0 0.0
    %2276 = vmatprep.subr.mxu0 0.0
    %2277 = vmatpush1.msra.mxu0 0.0
    %2278 = vmatprep.subr.mxu0 0.0
    %2279 = vmatpush1.msra.mxu0 0.0
    %2280 = vmatprep.subr.mxu0 0.0
    %2281 = vmatpush1.msra.mxu0 0.0
    %2282 = vmatprep.subr.mxu0 0.0
    %2283 = vmatpush1.msra.mxu0 0.0
    %2284 = vmatprep.subr.mxu0 0.0
    %2285 = vmatpush1.msra.mxu0 0.0
    %2286 = vmatprep.subr.mxu0 0.0
    %2287 = vmatpush1.msra.mxu0 0.0
    %2288 = vmatprep.subr.mxu0 0.0
    %2289 = vmatpush1.msra.mxu0 0.0
    %2290 = vmatprep.subr.mxu0 0.0
    %2291 = vmatpush1.msra.mxu0 0.0
    %2292 = vmatprep.subr.mxu0 0.0
    %2293 = vmatpush1.msra.mxu0 0.0
    %2294 = vmatprep.subr.mxu0 0.0
    %2295 = vmatpush1.msra.mxu0 0.0
    %2296 = vmatprep.subr.mxu0 0.0
    %2297 = vmatpush1.msra.mxu0 0.0
    %2298 = vmatprep.subr.mxu0 0.0
    %2299 = vmatpush1.msra.mxu0 0.0
    %2300 = vmatprep.subr.mxu0 0.0
    %2301 = vmatpush1.msra.mxu0 0.0
    %2302 = vmatprep.subr.mxu0 0.0
    %2303 = vmatpush1.msra.mxu0 %v1825
    %2304 = vmatprep.subr.mxu0 0.0
    %2305 = vmatpush2.msra.mxu0 0.0
    %2306 = vmatprep.subr.mxu0 0.0
    %2307 = vmatpush2.msra.mxu0 0.0
    %2308 = vmatprep.subr.mxu0 0.0
    %2309 = vmatpush2.msra.mxu0 0.0
    %2310 = vmatprep.subr.mxu0 0.0
    %2311 = vmatpush2.msra.mxu0 0.0
    %2312 = vmatprep.subr.mxu0 0.0
    %2313 = vmatpush2.msra.mxu0 0.0
    %2314 = vmatprep.subr.mxu0 0.0
    %2315 = vmatpush2.msra.mxu0 0.0
    %2316 = vmatprep.subr.mxu0 0.0
    %2317 = vmatpush2.msra.mxu0 0.0
    %2318 = vmatprep.subr.mxu0 0.0
    %2319 = vmatpush2.msra.mxu0 0.0
    %2320 = vmatprep.subr.mxu0 0.0
    %2321 = vmatpush2.msra.mxu0 0.0
    %2322 = vmatprep.subr.mxu0 0.0
    %2323 = vmatpush2.msra.mxu0 0.0
    %2324 = vmatprep.subr.mxu0 0.0
    %2325 = vmatpush2.msra.mxu0 0.0
    %2326 = vmatprep.subr.mxu0 0.0
    %2327 = vmatpush2.msra.mxu0 0.0
    %2328 = vmatprep.subr.mxu0 0.0
    %2329 = vmatpush2.msra.mxu0 0.0
    %2330 = vmatprep.subr.mxu0 0.0
    %2331 = vmatpush2.msra.mxu0 0.0
    %2332 = vmatprep.subr.mxu0 0.0
    %2333 = vmatpush2.msra.mxu0 0.0
    %2334 = vmatprep.subr.mxu0 0.0
    %2335 = vmatpush2.msra.mxu0 0.0
    %2336 = vmatprep.mubr.f32.mxu0 0.0
    %2337 = vmatmul.mubr.f32.gmra.mxu0 %v2270
    %v2338 = vpop.f32.mrf.mxu0
    %v2339 = vadd.f32 0.0, %v2338
    %v2340 = vpop.f32.mrf.mxu0
    %2341 = vdwg.mxu0
    %s2342 = scalar_lea.vmem %s7, 16
    %v2343 = vld [vmem:[%s2342] sm:$0xff]
    %v2345 = vsel %vm548, %v2177, 0
    %v2348 = vsel %vm548, %v2339, 0
    %2350 = vmatprep.subr.mxu0 0.0
    %2351 = vmatpush1.msra.mxu0 0.0
    %2352 = vmatprep.subr.mxu0 0.0
    %2353 = vmatpush1.msra.mxu0 0.0
    %2354 = vmatprep.subr.mxu0 0.0
    %2355 = vmatpush1.msra.mxu0 0.0
    %2356 = vmatprep.subr.mxu0 0.0
    %2357 = vmatpush1.msra.mxu0 0.0
    %2358 = vmatprep.subr.mxu0 0.0
    %2359 = vmatpush1.msra.mxu0 0.0
    %2360 = vmatprep.subr.mxu0 0.0
    %2361 = vmatpush1.msra.mxu0 0.0
    %2362 = vmatprep.subr.mxu0 0.0
    %2363 = vmatpush1.msra.mxu0 0.0
    %2364 = vmatprep.subr.mxu0 0.0
    %2365 = vmatpush1.msra.mxu0 0.0
    %2366 = vmatprep.subr.mxu0 0.0
    %2367 = vmatpush1.msra.mxu0 0.0
    %2368 = vmatprep.subr.mxu0 0.0
    %2369 = vmatpush1.msra.mxu0 0.0
    %2370 = vmatprep.subr.mxu0 0.0
    %2371 = vmatpush1.msra.mxu0 0.0
    %2372 = vmatprep.subr.mxu0 0.0
    %2373 = vmatpush1.msra.mxu0 0.0
    %2374 = vmatprep.subr.mxu0 0.0
    %2375 = vmatpush1.msra.mxu0 0.0
    %2376 = vmatprep.subr.mxu0 0.0
    %2377 = vmatpush1.msra.mxu0 0.0
    %2378 = vmatprep.subr.mxu0 0.0
    %2379 = vmatpush1.msra.mxu0 0.0
    %2380 = vmatprep.subr.mxu0 0.0
    %2381 = vmatpush1.msra.mxu0 %v2343
    %2382 = vmatprep.subr.mxu0 0.0
    %2383 = vmatpush2.msra.mxu0 0.0
    %2384 = vmatprep.subr.mxu0 0.0
    %2385 = vmatpush2.msra.mxu0 0.0
    %2386 = vmatprep.subr.mxu0 0.0
    %2387 = vmatpush2.msra.mxu0 0.0
    %2388 = vmatprep.subr.mxu0 0.0
    %2389 = vmatpush2.msra.mxu0 0.0
    %2390 = vmatprep.subr.mxu0 0.0
    %2391 = vmatpush2.msra.mxu0 0.0
    %2392 = vmatprep.subr.mxu0 0.0
    %2393 = vmatpush2.msra.mxu0 0.0
    %2394 = vmatprep.subr.mxu0 0.0
    %2395 = vmatpush2.msra.mxu0 0.0
    %2396 = vmatprep.subr.mxu0 0.0
    %2397 = vmatpush2.msra.mxu0 0.0
    %2398 = vmatprep.subr.mxu0 0.0
    %2399 = vmatpush2.msra.mxu0 0.0
    %2400 = vmatprep.subr.mxu0 0.0
    %2401 = vmatpush2.msra.mxu0 0.0
    %2402 = vmatprep.subr.mxu0 0.0
    %2403 = vmatpush2.msra.mxu0 0.0
    %2404 = vmatprep.subr.mxu0 0.0
    %2405 = vmatpush2.msra.mxu0 0.0
    %2406 = vmatprep.subr.mxu0 0.0
    %2407 = vmatpush2.msra.mxu0 0.0
    %2408 = vmatprep.subr.mxu0 0.0
    %2409 = vmatpush2.msra.mxu0 0.0
    %2410 = vmatprep.subr.mxu0 0.0
    %2411 = vmatpush2.msra.mxu0 0.0
    %2412 = vmatprep.subr.mxu0 0.0
    %2413 = vmatpush2.msra.mxu0 0.0
    %2414 = vmatprep.mubr.f32.mxu0 0.0
    %2415 = vmatmul.mubr.f32.gmra.mxu0 %v2345
    %v2416 = vpop.f32.mrf.mxu0
    %v2417 = vadd.f32 0.0, %v2416
    %v2418 = vpop.f32.mrf.mxu0
    %2419 = vmatprep.mubr.f32.mxu0 0.0
    %2420 = vmatmul.mubr.f32.gmra.mxu0 %v2348
    %v2421 = vpop.f32.mrf.mxu0
    %v2422 = vadd.f32 0.0, %v2421
    %v2423 = vpop.f32.mrf.mxu0
    %2424 = vdwg.mxu0
    %v2425 = vadd.f32 %v1538, %v2417
    %v2426 = vadd.f32 %v1543, %v2422
    %s2427 = scalar_lea.vmem %s2, 384
    %v2428 = vld [vmem:[%s2427] sm:$0xff]
    %v2429 = vld [vmem:[%s2427 + $0x8] sm:$0xff]
    %v2430 = vld [vmem:[%s2427 + $0x10] sm:$0xff]
    %v2431 = vld [vmem:[%s2427 + $0x18] sm:$0xff]
    %v2432 = vld [vmem:[%s2427 + $0x20] sm:$0xff]
    %v2433 = vld [vmem:[%s2427 + $0x28] sm:$0xff]
    %v2434 = vld [vmem:[%s2427 + $0x30] sm:$0xff]
    %v2435 = vld [vmem:[%s2427 + $0x38] sm:$0xff]
    %v2436 = vld [vmem:[%s2427 + $0x40] sm:$0xff]
    %v2437 = vld [vmem:[%s2427 + $0x48] sm:$0xff]
    %v2438 = vld [vmem:[%s2427 + $0x50] sm:$0xff]
    %v2439 = vld [vmem:[%s2427 + $0x58] sm:$0xff]
    %v2440 = vld [vmem:[%s2427 + $0x60] sm:$0xff]
    %v2441 = vld [vmem:[%s2427 + $0x68] sm:$0xff]
    %v2442 = vld [vmem:[%s2427 + $0x70] sm:$0xff]
    %v2443 = vld [vmem:[%s2427 + $0x78] sm:$0xff]
    %2444 = vmatprep.subr.mxu0 0.0
    %2445 = vmatpush1.msra.mxu0 %v2443
    %2446 = vmatprep.subr.mxu0 0.0
    %2447 = vmatpush1.msra.mxu0 %v2442
    %2448 = vmatprep.subr.mxu0 0.0
    %2449 = vmatpush1.msra.mxu0 %v2441
    %2450 = vmatprep.subr.mxu0 0.0
    %2451 = vmatpush1.msra.mxu0 %v2440
    %2452 = vmatprep.subr.mxu0 0.0
    %2453 = vmatpush1.msra.mxu0 %v2439
    %2454 = vmatprep.subr.mxu0 0.0
    %2455 = vmatpush1.msra.mxu0 %v2438
    %2456 = vmatprep.subr.mxu0 0.0
    %2457 = vmatpush1.msra.mxu0 %v2437
    %2458 = vmatprep.subr.mxu0 0.0
    %2459 = vmatpush1.msra.mxu0 %v2436
    %2460 = vmatprep.subr.mxu0 0.0
    %2461 = vmatpush1.msra.mxu0 %v2435
    %2462 = vmatprep.subr.mxu0 0.0
    %2463 = vmatpush1.msra.mxu0 %v2434
    %2464 = vmatprep.subr.mxu0 0.0
    %2465 = vmatpush1.msra.mxu0 %v2433
    %2466 = vmatprep.subr.mxu0 0.0
    %2467 = vmatpush1.msra.mxu0 %v2432
    %2468 = vmatprep.subr.mxu0 0.0
    %2469 = vmatpush1.msra.mxu0 %v2431
    %2470 = vmatprep.subr.mxu0 0.0
    %2471 = vmatpush1.msra.mxu0 %v2430
    %2472 = vmatprep.subr.mxu0 0.0
    %2473 = vmatpush1.msra.mxu0 %v2429
    %2474 = vmatprep.subr.mxu0 0.0
    %2475 = vmatpush1.msra.mxu0 %v2428
    %2476 = vmatprep.subr.mxu0 0.0
    %2477 = vmatpush2.msra.mxu0 0.0
    %2478 = vmatprep.subr.mxu0 0.0
    %2479 = vmatpush2.msra.mxu0 0.0
    %2480 = vmatprep.subr.mxu0 0.0
    %2481 = vmatpush2.msra.mxu0 0.0
    %2482 = vmatprep.subr.mxu0 0.0
    %2483 = vmatpush2.msra.mxu0 0.0
    %2484 = vmatprep.subr.mxu0 0.0
    %2485 = vmatpush2.msra.mxu0 0.0
    %2486 = vmatprep.subr.mxu0 0.0
    %2487 = vmatpush2.msra.mxu0 0.0
    %2488 = vmatprep.subr.mxu0 0.0
    %2489 = vmatpush2.msra.mxu0 0.0
    %2490 = vmatprep.subr.mxu0 0.0
    %2491 = vmatpush2.msra.mxu0 0.0
    %2492 = vmatprep.subr.mxu0 0.0
    %2493 = vmatpush2.msra.mxu0 0.0
    %2494 = vmatprep.subr.mxu0 0.0
    %2495 = vmatpush2.msra.mxu0 0.0
    %2496 = vmatprep.subr.mxu0 0.0
    %2497 = vmatpush2.msra.mxu0 0.0
    %2498 = vmatprep.subr.mxu0 0.0
    %2499 = vmatpush2.msra.mxu0 0.0
    %2500 = vmatprep.subr.mxu0 0.0
    %2501 = vmatpush2.msra.mxu0 0.0
    %2502 = vmatprep.subr.mxu0 0.0
    %2503 = vmatpush2.msra.mxu0 0.0
    %2504 = vmatprep.subr.mxu0 0.0
    %2505 = vmatpush2.msra.mxu0 0.0
    %2506 = vmatprep.subr.mxu0 0.0
    %2507 = vmatpush2.msra.mxu0 0.0
    %2508 = vmatprep.mubr.f32.mxu0 0.0
    %2509 = vmatmul.mubr.f32.gmra.mxu0 %v74
    %v2510 = vpop.f32.mrf.mxu0
    %v2511 = vadd.f32 0.0, %v2510
    %v2512 = vpop.f32.mrf.mxu0
    %2513 = vmatprep.mubr.f32.mxu0 0.0
    %2514 = vmatmul.mubr.f32.gmra.mxu0 %v75
    %v2515 = vpop.f32.mrf.mxu0
    %v2516 = vadd.f32 0.0, %v2515
    %v2517 = vpop.f32.mrf.mxu0
    %2518 = vdwg.mxu0
    %s2519 = scalar_lea.vmem %s3, 384
    %v2520 = vld [vmem:[%s2519] sm:$0xff]
    %v2521 = vld [vmem:[%s2519 + $0x8] sm:$0xff]
    %v2522 = vld [vmem:[%s2519 + $0x10] sm:$0xff]
    %v2523 = vld [vmem:[%s2519 + $0x18] sm:$0xff]
    %v2524 = vld [vmem:[%s2519 + $0x20] sm:$0xff]
    %v2525 = vld [vmem:[%s2519 + $0x28] sm:$0xff]
    %v2526 = vld [vmem:[%s2519 + $0x30] sm:$0xff]
    %v2527 = vld [vmem:[%s2519 + $0x38] sm:$0xff]
    %v2528 = vld [vmem:[%s2519 + $0x40] sm:$0xff]
    %v2529 = vld [vmem:[%s2519 + $0x48] sm:$0xff]
    %v2530 = vld [vmem:[%s2519 + $0x50] sm:$0xff]
    %v2531 = vld [vmem:[%s2519 + $0x58] sm:$0xff]
    %v2532 = vld [vmem:[%s2519 + $0x60] sm:$0xff]
    %v2533 = vld [vmem:[%s2519 + $0x68] sm:$0xff]
    %v2534 = vld [vmem:[%s2519 + $0x70] sm:$0xff]
    %v2535 = vld [vmem:[%s2519 + $0x78] sm:$0xff]
    %2536 = vmatprep.subr.mxu0 0.0
    %2537 = vmatpush1.msra.mxu0 %v2535
    %2538 = vmatprep.subr.mxu0 0.0
    %2539 = vmatpush1.msra.mxu0 %v2534
    %2540 = vmatprep.subr.mxu0 0.0
    %2541 = vmatpush1.msra.mxu0 %v2533
    %2542 = vmatprep.subr.mxu0 0.0
    %2543 = vmatpush1.msra.mxu0 %v2532
    %2544 = vmatprep.subr.mxu0 0.0
    %2545 = vmatpush1.msra.mxu0 %v2531
    %2546 = vmatprep.subr.mxu0 0.0
    %2547 = vmatpush1.msra.mxu0 %v2530
    %2548 = vmatprep.subr.mxu0 0.0
    %2549 = vmatpush1.msra.mxu0 %v2529
    %2550 = vmatprep.subr.mxu0 0.0
    %2551 = vmatpush1.msra.mxu0 %v2528
    %2552 = vmatprep.subr.mxu0 0.0
    %2553 = vmatpush1.msra.mxu0 %v2527
    %2554 = vmatprep.subr.mxu0 0.0
    %2555 = vmatpush1.msra.mxu0 %v2526
    %2556 = vmatprep.subr.mxu0 0.0
    %2557 = vmatpush1.msra.mxu0 %v2525
    %2558 = vmatprep.subr.mxu0 0.0
    %2559 = vmatpush1.msra.mxu0 %v2524
    %2560 = vmatprep.subr.mxu0 0.0
    %2561 = vmatpush1.msra.mxu0 %v2523
    %2562 = vmatprep.subr.mxu0 0.0
    %2563 = vmatpush1.msra.mxu0 %v2522
    %2564 = vmatprep.subr.mxu0 0.0
    %2565 = vmatpush1.msra.mxu0 %v2521
    %2566 = vmatprep.subr.mxu0 0.0
    %2567 = vmatpush1.msra.mxu0 %v2520
    %2568 = vmatprep.subr.mxu0 0.0
    %2569 = vmatpush2.msra.mxu0 0.0
    %2570 = vmatprep.subr.mxu0 0.0
    %2571 = vmatpush2.msra.mxu0 0.0
    %2572 = vmatprep.subr.mxu0 0.0
    %2573 = vmatpush2.msra.mxu0 0.0
    %2574 = vmatprep.subr.mxu0 0.0
    %2575 = vmatpush2.msra.mxu0 0.0
    %2576 = vmatprep.subr.mxu0 0.0
    %2577 = vmatpush2.msra.mxu0 0.0
    %2578 = vmatprep.subr.mxu0 0.0
    %2579 = vmatpush2.msra.mxu0 0.0
    %2580 = vmatprep.subr.mxu0 0.0
    %2581 = vmatpush2.msra.mxu0 0.0
    %2582 = vmatprep.subr.mxu0 0.0
    %2583 = vmatpush2.msra.mxu0 0.0
    %2584 = vmatprep.subr.mxu0 0.0
    %2585 = vmatpush2.msra.mxu0 0.0
    %2586 = vmatprep.subr.mxu0 0.0
    %2587 = vmatpush2.msra.mxu0 0.0
    %2588 = vmatprep.subr.mxu0 0.0
    %2589 = vmatpush2.msra.mxu0 0.0
    %2590 = vmatprep.subr.mxu0 0.0
    %2591 = vmatpush2.msra.mxu0 0.0
    %2592 = vmatprep.subr.mxu0 0.0
    %2593 = vmatpush2.msra.mxu0 0.0
    %2594 = vmatprep.subr.mxu0 0.0
    %2595 = vmatpush2.msra.mxu0 0.0
    %2596 = vmatprep.subr.mxu0 0.0
    %2597 = vmatpush2.msra.mxu0 0.0
    %2598 = vmatprep.subr.mxu0 0.0
    %2599 = vmatpush2.msra.mxu0 0.0
    %2600 = vmatprep.mubr.f32.mxu0 0.0
    %2601 = vmatmul.mubr.f32.gmra.mxu0 %v74
    %v2602 = vpop.f32.mrf.mxu0
    %v2603 = vadd.f32 0.0, %v2602
    %v2604 = vpop.f32.mrf.mxu0
    %2605 = vmatprep.mubr.f32.mxu0 0.0
    %2606 = vmatmul.mubr.f32.gmra.mxu0 %v75
    %v2607 = vpop.f32.mrf.mxu0
    %v2608 = vadd.f32 0.0, %v2607
    %v2609 = vpop.f32.mrf.mxu0
    %2610 = vdwg.mxu0
    %v2611 = vmul.f32 %v2511, %v76
    %v2612 = vmul.f32 %v2516, %v77
    %v2613 = vmul.f32 %v2603, %v78
    %v2614 = vmul.f32 %v2608, %v79
    %v2615 = vadd.f32 %v2611, %v2613
    %v2616 = vadd.f32 %v2612, %v2614
    %v2618 = vsel %vm548, %v2615, 0
    %2620 = vmatprep.subr.mxu0 0.0
    %2621 = vmatpush1.xpose.msra.mxu0 0.0
    %2622 = vmatprep.subr.mxu0 0.0
    %2623 = vmatpush1.xpose.msra.mxu0 0.0
    %2624 = vmatprep.subr.mxu0 0.0
    %2625 = vmatpush1.xpose.msra.mxu0 0.0
    %2626 = vmatprep.subr.mxu0 0.0
    %2627 = vmatpush1.xpose.msra.mxu0 0.0
    %2628 = vmatprep.subr.mxu0 0.0
    %2629 = vmatpush1.xpose.msra.mxu0 0.0
    %2630 = vmatprep.subr.mxu0 0.0
    %2631 = vmatpush1.xpose.msra.mxu0 0.0
    %2632 = vmatprep.subr.mxu0 0.0
    %2633 = vmatpush1.xpose.msra.mxu0 0.0
    %2634 = vmatprep.subr.mxu0 0.0
    %2635 = vmatpush1.xpose.msra.mxu0 0.0
    %2636 = vmatprep.subr.mxu0 0.0
    %2637 = vmatpush1.xpose.msra.mxu0 0.0
    %2638 = vmatprep.subr.mxu0 0.0
    %2639 = vmatpush1.xpose.msra.mxu0 0.0
    %2640 = vmatprep.subr.mxu0 0.0
    %2641 = vmatpush1.xpose.msra.mxu0 0.0
    %2642 = vmatprep.subr.mxu0 0.0
    %2643 = vmatpush1.xpose.msra.mxu0 0.0
    %2644 = vmatprep.subr.mxu0 0.0
    %2645 = vmatpush1.xpose.msra.mxu0 0.0
    %2646 = vmatprep.subr.mxu0 0.0
    %2647 = vmatpush1.xpose.msra.mxu0 0.0
    %2648 = vmatprep.subr.mxu0 0.0
    %2649 = vmatpush1.xpose.msra.mxu0 0.0
    %2650 = vmatprep.subr.mxu0 0.0
    %2651 = vmatpush1.xpose.msra.mxu0 %v2022
    %2652 = vmatprep.subr.mxu0 0.0
    %2653 = vmatpush2.xpose.msra.mxu0 0.0
    %2654 = vmatprep.subr.mxu0 0.0
    %2655 = vmatpush2.xpose.msra.mxu0 0.0
    %2656 = vmatprep.subr.mxu0 0.0
    %2657 = vmatpush2.xpose.msra.mxu0 0.0
    %2658 = vmatprep.subr.mxu0 0.0
    %2659 = vmatpush2.xpose.msra.mxu0 0.0
    %2660 = vmatprep.subr.mxu0 0.0
    %2661 = vmatpush2.xpose.msra.mxu0 0.0
    %2662 = vmatprep.subr.mxu0 0.0
    %2663 = vmatpush2.xpose.msra.mxu0 0.0
    %2664 = vmatprep.subr.mxu0 0.0
    %2665 = vmatpush2.xpose.msra.mxu0 0.0
    %2666 = vmatprep.subr.mxu0 0.0
    %2667 = vmatpush2.xpose.msra.mxu0 0.0
    %2668 = vmatprep.subr.mxu0 0.0
    %2669 = vmatpush2.xpose.msra.mxu0 0.0
    %2670 = vmatprep.subr.mxu0 0.0
    %2671 = vmatpush2.xpose.msra.mxu0 0.0
    %2672 = vmatprep.subr.mxu0 0.0
    %2673 = vmatpush2.xpose.msra.mxu0 0.0
    %2674 = vmatprep.subr.mxu0 0.0
    %2675 = vmatpush2.xpose.msra.mxu0 0.0
    %2676 = vmatprep.subr.mxu0 0.0
    %2677 = vmatpush2.xpose.msra.mxu0 0.0
    %2678 = vmatprep.subr.mxu0 0.0
    %2679 = vmatpush2.xpose.msra.mxu0 0.0
    %2680 = vmatprep.subr.mxu0 0.0
    %2681 = vmatpush2.xpose.msra.mxu0 0.0
    %2682 = vmatprep.subr.mxu0 0.0
    %2683 = vmatpush2.xpose.msra.mxu0 0.0
    %2684 = vmatprep.mubr.f32.mxu0 0.0
    %2685 = vmatmul.mubr.f32.gmra.mxu0 %v2618
    %v2686 = vpop.f32.mrf.mxu0
    %v2687 = vadd.f32 0.0, %v2686
    %v2688 = vpop.f32.mrf.mxu0
    %2689 = vdwg.mxu0
    %v2690 = vmul.f32 %v2687, 0.35355338
    %v2691 = vadd.f32 %v2690, %v80
    %v2692 = vsel %vm548, %v2691, -inf
    %2693 = vmax.xlane.f32.xlu0 %v2692
    %v2694 = vpop.xlane.xlu0 %2693
    %v2695 = vsub.f32 %v2691, %v2694
    %v2696 = vmul.f32 %v2695, 1.442695
    %v2697 = vpow.pop %v2696
    %v2698 = vsel %vm548, %v2697, 0.0
    %2699 = vadd.xlane.f32.xlu0 %v2698
    %v2700 = vpop.xlane.xlu0 %2699
    %v2701 = vrcp.pop %v2700
    %v2702 = vmul.f32 %v2697, %v2701
    %v2704 = vsel %vm548, %v2702, 0
    %2706 = vmatprep.subr.mxu0 0.0
    %2707 = vmatpush1.msra.mxu0 0.0
    %2708 = vmatprep.subr.mxu0 0.0
    %2709 = vmatpush1.msra.mxu0 0.0
    %2710 = vmatprep.subr.mxu0 0.0
    %2711 = vmatpush1.msra.mxu0 0.0
    %2712 = vmatprep.subr.mxu0 0.0
    %2713 = vmatpush1.msra.mxu0 0.0
    %2714 = vmatprep.subr.mxu0 0.0
    %2715 = vmatpush1.msra.mxu0 0.0
    %2716 = vmatprep.subr.mxu0 0.0
    %2717 = vmatpush1.msra.mxu0 0.0
    %2718 = vmatprep.subr.mxu0 0.0
    %2719 = vmatpush1.msra.mxu0 0.0
    %2720 = vmatprep.subr.mxu0 0.0
    %2721 = vmatpush1.msra.mxu0 0.0
    %2722 = vmatprep.subr.mxu0 0.0
    %2723 = vmatpush1.msra.mxu0 0.0
    %2724 = vmatprep.subr.mxu0 0.0
    %2725 = vmatpush1.msra.mxu0 0.0
    %2726 = vmatprep.subr.mxu0 0.0
    %2727 = vmatpush1.msra.mxu0 0.0
    %2728 = vmatprep.subr.mxu0 0.0
    %2729 = vmatpush1.msra.mxu0 0.0
    %2730 = vmatprep.subr.mxu0 0.0
    %2731 = vmatpush1.msra.mxu0 0.0
    %2732 = vmatprep.subr.mxu0 0.0
    %2733 = vmatpush1.msra.mxu0 0.0
    %2734 = vmatprep.subr.mxu0 0.0
    %2735 = vmatpush1.msra.mxu0 0.0
    %2736 = vmatprep.subr.mxu0 0.0
    %2737 = vmatpush1.msra.mxu0 %v1820
    %2738 = vmatprep.subr.mxu0 0.0
    %2739 = vmatpush2.msra.mxu0 0.0
    %2740 = vmatprep.subr.mxu0 0.0
    %2741 = vmatpush2.msra.mxu0 0.0
    %2742 = vmatprep.subr.mxu0 0.0
    %2743 = vmatpush2.msra.mxu0 0.0
    %2744 = vmatprep.subr.mxu0 0.0
    %2745 = vmatpush2.msra.mxu0 0.0
    %2746 = vmatprep.subr.mxu0 0.0
    %2747 = vmatpush2.msra.mxu0 0.0
    %2748 = vmatprep.subr.mxu0 0.0
    %2749 = vmatpush2.msra.mxu0 0.0
    %2750 = vmatprep.subr.mxu0 0.0
    %2751 = vmatpush2.msra.mxu0 0.0
    %2752 = vmatprep.subr.mxu0 0.0
    %2753 = vmatpush2.msra.mxu0 0.0
    %2754 = vmatprep.subr.mxu0 0.0
    %2755 = vmatpush2.msra.mxu0 0.0
    %2756 = vmatprep.subr.mxu0 0.0
    %2757 = vmatpush2.msra.mxu0 0.0
    %2758 = vmatprep.subr.mxu0 0.0
    %2759 = vmatpush2.msra.mxu0 0.0
    %2760 = vmatprep.subr.mxu0 0.0
    %2761 = vmatpush2.msra.mxu0 0.0
    %2762 = vmatprep.subr.mxu0 0.0
    %2763 = vmatpush2.msra.mxu0 0.0
    %2764 = vmatprep.subr.mxu0 0.0
    %2765 = vmatpush2.msra.mxu0 0.0
    %2766 = vmatprep.subr.mxu0 0.0
    %2767 = vmatpush2.msra.mxu0 0.0
    %2768 = vmatprep.subr.mxu0 0.0
    %2769 = vmatpush2.msra.mxu0 0.0
    %2770 = vmatprep.mubr.f32.mxu0 0.0
    %2771 = vmatmul.mubr.f32.gmra.mxu0 %v2704
    %v2772 = vpop.f32.mrf.mxu0
    %v2773 = vadd.f32 0.0, %v2772
    %v2774 = vpop.f32.mrf.mxu0
    %2775 = vdwg.mxu0
    %v2777 = vsel %vm548, %v2616, 0
    %2779 = vmatprep.subr.mxu0 0.0
    %2780 = vmatpush1.xpose.msra.mxu0 0.0
    %2781 = vmatprep.subr.mxu0 0.0
    %2782 = vmatpush1.xpose.msra.mxu0 0.0
    %2783 = vmatprep.subr.mxu0 0.0
    %2784 = vmatpush1.xpose.msra.mxu0 0.0
    %2785 = vmatprep.subr.mxu0 0.0
    %2786 = vmatpush1.xpose.msra.mxu0 0.0
    %2787 = vmatprep.subr.mxu0 0.0
    %2788 = vmatpush1.xpose.msra.mxu0 0.0
    %2789 = vmatprep.subr.mxu0 0.0
    %2790 = vmatpush1.xpose.msra.mxu0 0.0
    %2791 = vmatprep.subr.mxu0 0.0
    %2792 = vmatpush1.xpose.msra.mxu0 0.0
    %2793 = vmatprep.subr.mxu0 0.0
    %2794 = vmatpush1.xpose.msra.mxu0 0.0
    %2795 = vmatprep.subr.mxu0 0.0
    %2796 = vmatpush1.xpose.msra.mxu0 0.0
    %2797 = vmatprep.subr.mxu0 0.0
    %2798 = vmatpush1.xpose.msra.mxu0 0.0
    %2799 = vmatprep.subr.mxu0 0.0
    %2800 = vmatpush1.xpose.msra.mxu0 0.0
    %2801 = vmatprep.subr.mxu0 0.0
    %2802 = vmatpush1.xpose.msra.mxu0 0.0
    %2803 = vmatprep.subr.mxu0 0.0
    %2804 = vmatpush1.xpose.msra.mxu0 0.0
    %2805 = vmatprep.subr.mxu0 0.0
    %2806 = vmatpush1.xpose.msra.mxu0 0.0
    %2807 = vmatprep.subr.mxu0 0.0
    %2808 = vmatpush1.xpose.msra.mxu0 0.0
    %2809 = vmatprep.subr.mxu0 0.0
    %2810 = vmatpush1.xpose.msra.mxu0 %v2184
    %2811 = vmatprep.subr.mxu0 0.0
    %2812 = vmatpush2.xpose.msra.mxu0 0.0
    %2813 = vmatprep.subr.mxu0 0.0
    %2814 = vmatpush2.xpose.msra.mxu0 0.0
    %2815 = vmatprep.subr.mxu0 0.0
    %2816 = vmatpush2.xpose.msra.mxu0 0.0
    %2817 = vmatprep.subr.mxu0 0.0
    %2818 = vmatpush2.xpose.msra.mxu0 0.0
    %2819 = vmatprep.subr.mxu0 0.0
    %2820 = vmatpush2.xpose.msra.mxu0 0.0
    %2821 = vmatprep.subr.mxu0 0.0
    %2822 = vmatpush2.xpose.msra.mxu0 0.0
    %2823 = vmatprep.subr.mxu0 0.0
    %2824 = vmatpush2.xpose.msra.mxu0 0.0
    %2825 = vmatprep.subr.mxu0 0.0
    %2826 = vmatpush2.xpose.msra.mxu0 0.0
    %2827 = vmatprep.subr.mxu0 0.0
    %2828 = vmatpush2.xpose.msra.mxu0 0.0
    %2829 = vmatprep.subr.mxu0 0.0
    %2830 = vmatpush2.xpose.msra.mxu0 0.0
    %2831 = vmatprep.subr.mxu0 0.0
    %2832 = vmatpush2.xpose.msra.mxu0 0.0
    %2833 = vmatprep.subr.mxu0 0.0
    %2834 = vmatpush2.xpose.msra.mxu0 0.0
    %2835 = vmatprep.subr.mxu0 0.0
    %2836 = vmatpush2.xpose.msra.mxu0 0.0
    %2837 = vmatprep.subr.mxu0 0.0
    %2838 = vmatpush2.xpose.msra.mxu0 0.0
    %2839 = vmatprep.subr.mxu0 0.0
    %2840 = vmatpush2.xpose.msra.mxu0 0.0
    %2841 = vmatprep.subr.mxu0 0.0
    %2842 = vmatpush2.xpose.msra.mxu0 0.0
    %2843 = vmatprep.mubr.f32.mxu0 0.0
    %2844 = vmatmul.mubr.f32.gmra.mxu0 %v2777
    %v2845 = vpop.f32.mrf.mxu0
    %v2846 = vadd.f32 0.0, %v2845
    %v2847 = vpop.f32.mrf.mxu0
    %2848 = vdwg.mxu0
    %v2849 = vmul.f32 %v2846, 0.35355338
    %v2850 = vadd.f32 %v2849, %v80
    %v2851 = vsel %vm548, %v2850, -inf
    %2852 = vmax.xlane.f32.xlu0 %v2851
    %v2853 = vpop.xlane.xlu0 %2852
    %v2854 = vsub.f32 %v2850, %v2853
    %v2855 = vmul.f32 %v2854, 1.442695
    %v2856 = vpow.pop %v2855
    %v2857 = vsel %vm548, %v2856, 0.0
    %2858 = vadd.xlane.f32.xlu0 %v2857
    %v2859 = vpop.xlane.xlu0 %2858
    %v2860 = vrcp.pop %v2859
    %v2861 = vmul.f32 %v2856, %v2860
    %v2863 = vsel %vm548, %v2861, 0
    %2865 = vmatprep.subr.mxu0 0.0
    %2866 = vmatpush1.msra.mxu0 0.0
    %2867 = vmatprep.subr.mxu0 0.0
    %2868 = vmatpush1.msra.mxu0 0.0
    %2869 = vmatprep.subr.mxu0 0.0
    %2870 = vmatpush1.msra.mxu0 0.0
    %2871 = vmatprep.subr.mxu0 0.0
    %2872 = vmatpush1.msra.mxu0 0.0
    %2873 = vmatprep.subr.mxu0 0.0
    %2874 = vmatpush1.msra.mxu0 0.0
    %2875 = vmatprep.subr.mxu0 0.0
    %2876 = vmatpush1.msra.mxu0 0.0
    %2877 = vmatprep.subr.mxu0 0.0
    %2878 = vmatpush1.msra.mxu0 0.0
    %2879 = vmatprep.subr.mxu0 0.0
    %2880 = vmatpush1.msra.mxu0 0.0
    %2881 = vmatprep.subr.mxu0 0.0
    %2882 = vmatpush1.msra.mxu0 0.0
    %2883 = vmatprep.subr.mxu0 0.0
    %2884 = vmatpush1.msra.mxu0 0.0
    %2885 = vmatprep.subr.mxu0 0.0
    %2886 = vmatpush1.msra.mxu0 0.0
    %2887 = vmatprep.subr.mxu0 0.0
    %2888 = vmatpush1.msra.mxu0 0.0
    %2889 = vmatprep.subr.mxu0 0.0
    %2890 = vmatpush1.msra.mxu0 0.0
    %2891 = vmatprep.subr.mxu0 0.0
    %2892 = vmatpush1.msra.mxu0 0.0
    %2893 = vmatprep.subr.mxu0 0.0
    %2894 = vmatpush1.msra.mxu0 0.0
    %2895 = vmatprep.subr.mxu0 0.0
    %2896 = vmatpush1.msra.mxu0 %v1825
    %2897 = vmatprep.subr.mxu0 0.0
    %2898 = vmatpush2.msra.mxu0 0.0
    %2899 = vmatprep.subr.mxu0 0.0
    %2900 = vmatpush2.msra.mxu0 0.0
    %2901 = vmatprep.subr.mxu0 0.0
    %2902 = vmatpush2.msra.mxu0 0.0
    %2903 = vmatprep.subr.mxu0 0.0
    %2904 = vmatpush2.msra.mxu0 0.0
    %2905 = vmatprep.subr.mxu0 0.0
    %2906 = vmatpush2.msra.mxu0 0.0
    %2907 = vmatprep.subr.mxu0 0.0
    %2908 = vmatpush2.msra.mxu0 0.0
    %2909 = vmatprep.subr.mxu0 0.0
    %2910 = vmatpush2.msra.mxu0 0.0
    %2911 = vmatprep.subr.mxu0 0.0
    %2912 = vmatpush2.msra.mxu0 0.0
    %2913 = vmatprep.subr.mxu0 0.0
    %2914 = vmatpush2.msra.mxu0 0.0
    %2915 = vmatprep.subr.mxu0 0.0
    %2916 = vmatpush2.msra.mxu0 0.0
    %2917 = vmatprep.subr.mxu0 0.0
    %2918 = vmatpush2.msra.mxu0 0.0
    %2919 = vmatprep.subr.mxu0 0.0
    %2920 = vmatpush2.msra.mxu0 0.0
    %2921 = vmatprep.subr.mxu0 0.0
    %2922 = vmatpush2.msra.mxu0 0.0
    %2923 = vmatprep.subr.mxu0 0.0
    %2924 = vmatpush2.msra.mxu0 0.0
    %2925 = vmatprep.subr.mxu0 0.0
    %2926 = vmatpush2.msra.mxu0 0.0
    %2927 = vmatprep.subr.mxu0 0.0
    %2928 = vmatpush2.msra.mxu0 0.0
    %2929 = vmatprep.mubr.f32.mxu0 0.0
    %2930 = vmatmul.mubr.f32.gmra.mxu0 %v2863
    %v2931 = vpop.f32.mrf.mxu0
    %v2932 = vadd.f32 0.0, %v2931
    %v2933 = vpop.f32.mrf.mxu0
    %2934 = vdwg.mxu0
    %s2935 = scalar_lea.vmem %s7, 24
    %v2936 = vld [vmem:[%s2935] sm:$0xff]
    %v2938 = vsel %vm548, %v2773, 0
    %v2941 = vsel %vm548, %v2932, 0
    %2943 = vmatprep.subr.mxu0 0.0
    %2944 = vmatpush1.msra.mxu0 0.0
    %2945 = vmatprep.subr.mxu0 0.0
    %2946 = vmatpush1.msra.mxu0 0.0
    %2947 = vmatprep.subr.mxu0 0.0
    %2948 = vmatpush1.msra.mxu0 0.0
    %2949 = vmatprep.subr.mxu0 0.0
    %2950 = vmatpush1.msra.mxu0 0.0
    %2951 = vmatprep.subr.mxu0 0.0
    %2952 = vmatpush1.msra.mxu0 0.0
    %2953 = vmatprep.subr.mxu0 0.0
    %2954 = vmatpush1.msra.mxu0 0.0
    %2955 = vmatprep.subr.mxu0 0.0
    %2956 = vmatpush1.msra.mxu0 0.0
    %2957 = vmatprep.subr.mxu0 0.0
    %2958 = vmatpush1.msra.mxu0 0.0
    %2959 = vmatprep.subr.mxu0 0.0
    %2960 = vmatpush1.msra.mxu0 0.0
    %2961 = vmatprep.subr.mxu0 0.0
    %2962 = vmatpush1.msra.mxu0 0.0
    %2963 = vmatprep.subr.mxu0 0.0
    %2964 = vmatpush1.msra.mxu0 0.0
    %2965 = vmatprep.subr.mxu0 0.0
    %2966 = vmatpush1.msra.mxu0 0.0
    %2967 = vmatprep.subr.mxu0 0.0
    %2968 = vmatpush1.msra.mxu0 0.0
    %2969 = vmatprep.subr.mxu0 0.0
    %2970 = vmatpush1.msra.mxu0 0.0
    %2971 = vmatprep.subr.mxu0 0.0
    %2972 = vmatpush1.msra.mxu0 0.0
    %2973 = vmatprep.subr.mxu0 0.0
    %2974 = vmatpush1.msra.mxu0 %v2936
    %2975 = vmatprep.subr.mxu0 0.0
    %2976 = vmatpush2.msra.mxu0 0.0
    %2977 = vmatprep.subr.mxu0 0.0
    %2978 = vmatpush2.msra.mxu0 0.0
    %2979 = vmatprep.subr.mxu0 0.0
    %2980 = vmatpush2.msra.mxu0 0.0
    %2981 = vmatprep.subr.mxu0 0.0
    %2982 = vmatpush2.msra.mxu0 0.0
    %2983 = vmatprep.subr.mxu0 0.0
    %2984 = vmatpush2.msra.mxu0 0.0
    %2985 = vmatprep.subr.mxu0 0.0
    %2986 = vmatpush2.msra.mxu0 0.0
    %2987 = vmatprep.subr.mxu0 0.0
    %2988 = vmatpush2.msra.mxu0 0.0
    %2989 = vmatprep.subr.mxu0 0.0
    %2990 = vmatpush2.msra.mxu0 0.0
    %2991 = vmatprep.subr.mxu0 0.0
    %2992 = vmatpush2.msra.mxu0 0.0
    %2993 = vmatprep.subr.mxu0 0.0
    %2994 = vmatpush2.msra.mxu0 0.0
    %2995 = vmatprep.subr.mxu0 0.0
    %2996 = vmatpush2.msra.mxu0 0.0
    %2997 = vmatprep.subr.mxu0 0.0
    %2998 = vmatpush2.msra.mxu0 0.0
    %2999 = vmatprep.subr.mxu0 0.0
    %3000 = vmatpush2.msra.mxu0 0.0
    %3001 = vmatprep.subr.mxu0 0.0
    %3002 = vmatpush2.msra.mxu0 0.0
    %3003 = vmatprep.subr.mxu0 0.0
    %3004 = vmatpush2.msra.mxu0 0.0
    %3005 = vmatprep.subr.mxu0 0.0
    %3006 = vmatpush2.msra.mxu0 0.0
    %3007 = vmatprep.mubr.f32.mxu0 0.0
    %3008 = vmatmul.mubr.f32.gmra.mxu0 %v2938
    %v3009 = vpop.f32.mrf.mxu0
    %v3010 = vadd.f32 0.0, %v3009
    %v3011 = vpop.f32.mrf.mxu0
    %3012 = vmatprep.mubr.f32.mxu0 0.0
    %3013 = vmatmul.mubr.f32.gmra.mxu0 %v2941
    %v3014 = vpop.f32.mrf.mxu0
    %v3015 = vadd.f32 0.0, %v3014
    %v3016 = vpop.f32.mrf.mxu0
    %3017 = vdwg.mxu0
    %v3018 = vadd.f32 %v2425, %v3010
    %v3019 = vadd.f32 %v2426, %v3015
    %v3020 = vadd.f32 %v51, %v3018
    %v3021 = vadd.f32 %v52, %v3019
    %v3022 = vmul.f32 %v3020, %v3020
    %v3023 = vmul.f32 %v3021, %v3021
    %3024 = vadd.xlane.f32.xlu0 %v3022
    %v3025 = vpop.xlane.xlu0 %3024
    %3026 = vadd.xlane.f32.xlu0 %v3023
    %v3027 = vpop.xlane.xlu0 %3026
    %v3028 = vmul.f32 %v3025, 0.03125
    %v3029 = vmul.f32 %v3027, 0.03125
    %v3030 = vadd.f32 %v3028, 1e-06
    %v3031 = vadd.f32 %v3029, 1e-06
    %v3032 = vrsqrt.pop %v3030
    %v3033 = vrsqrt.pop %v3031
    %v3034 = vmul.f32 %v3020, %v3032
    %v3035 = vmul.f32 %v3021, %v3033
    %v3036 = vld [vmem:[%s8] sm:$0x1]
    %v3038 = vlaneseq
    %v3039 = vshrl.u32 %v3038, 7
    %v3040 = vsub.s32 0, %v3039
    %v3041 = vrot.slane %v3036, %v3040
    %v3043 = vmul.f32 %v3034, %v3041
    %v3044 = vmul.f32 %v3035, %v3041
    %v3045 = vld [vmem:[%s9] sm:$0xff]
    %v3046 = vld [vmem:[%s9 + $0x8] sm:$0xff]
    %v3047 = vld [vmem:[%s9 + $0x10] sm:$0xff]
    %v3048 = vld [vmem:[%s9 + $0x18] sm:$0xff]
    %v3049 = vld [vmem:[%s9 + $0x20] sm:$0xff]
    %v3050 = vld [vmem:[%s9 + $0x28] sm:$0xff]
    %v3051 = vld [vmem:[%s9 + $0x30] sm:$0xff]
    %v3052 = vld [vmem:[%s9 + $0x38] sm:$0xff]
    %v3053 = vld [vmem:[%s9 + $0x40] sm:$0xff]
    %v3054 = vld [vmem:[%s9 + $0x48] sm:$0xff]
    %v3055 = vld [vmem:[%s9 + $0x50] sm:$0xff]
    %v3056 = vld [vmem:[%s9 + $0x58] sm:$0xff]
    %v3057 = vld [vmem:[%s9 + $0x60] sm:$0xff]
    %v3058 = vld [vmem:[%s9 + $0x68] sm:$0xff]
    %v3059 = vld [vmem:[%s9 + $0x70] sm:$0xff]
    %v3060 = vld [vmem:[%s9 + $0x78] sm:$0xff]
    %3061 = vmatprep.subr.mxu0 0.0
    %3062 = vmatpush1.msra.mxu0 %v3060
    %3063 = vmatprep.subr.mxu0 0.0
    %3064 = vmatpush1.msra.mxu0 %v3059
    %3065 = vmatprep.subr.mxu0 0.0
    %3066 = vmatpush1.msra.mxu0 %v3058
    %3067 = vmatprep.subr.mxu0 0.0
    %3068 = vmatpush1.msra.mxu0 %v3057
    %3069 = vmatprep.subr.mxu0 0.0
    %3070 = vmatpush1.msra.mxu0 %v3056
    %3071 = vmatprep.subr.mxu0 0.0
    %3072 = vmatpush1.msra.mxu0 %v3055
    %3073 = vmatprep.subr.mxu0 0.0
    %3074 = vmatpush1.msra.mxu0 %v3054
    %3075 = vmatprep.subr.mxu0 0.0
    %3076 = vmatpush1.msra.mxu0 %v3053
    %3077 = vmatprep.subr.mxu0 0.0
    %3078 = vmatpush1.msra.mxu0 %v3052
    %3079 = vmatprep.subr.mxu0 0.0
    %3080 = vmatpush1.msra.mxu0 %v3051
    %3081 = vmatprep.subr.mxu0 0.0
    %3082 = vmatpush1.msra.mxu0 %v3050
    %3083 = vmatprep.subr.mxu0 0.0
    %3084 = vmatpush1.msra.mxu0 %v3049
    %3085 = vmatprep.subr.mxu0 0.0
    %3086 = vmatpush1.msra.mxu0 %v3048
    %3087 = vmatprep.subr.mxu0 0.0
    %3088 = vmatpush1.msra.mxu0 %v3047
    %3089 = vmatprep.subr.mxu0 0.0
    %3090 = vmatpush1.msra.mxu0 %v3046
    %3091 = vmatprep.subr.mxu0 0.0
    %3092 = vmatpush1.msra.mxu0 %v3045
    %3093 = vmatprep.subr.mxu0 0.0
    %3094 = vmatpush2.msra.mxu0 0.0
    %3095 = vmatprep.subr.mxu0 0.0
    %3096 = vmatpush2.msra.mxu0 0.0
    %3097 = vmatprep.subr.mxu0 0.0
    %3098 = vmatpush2.msra.mxu0 0.0
    %3099 = vmatprep.subr.mxu0 0.0
    %3100 = vmatpush2.msra.mxu0 0.0
    %3101 = vmatprep.subr.mxu0 0.0
    %3102 = vmatpush2.msra.mxu0 0.0
    %3103 = vmatprep.subr.mxu0 0.0
    %3104 = vmatpush2.msra.mxu0 0.0
    %3105 = vmatprep.subr.mxu0 0.0
    %3106 = vmatpush2.msra.mxu0 0.0
    %3107 = vmatprep.subr.mxu0 0.0
    %3108 = vmatpush2.msra.mxu0 0.0
    %3109 = vmatprep.subr.mxu0 0.0
    %3110 = vmatpush2.msra.mxu0 0.0
    %3111 = vmatprep.subr.mxu0 0.0
    %3112 = vmatpush2.msra.mxu0 0.0
    %3113 = vmatprep.subr.mxu0 0.0
    %3114 = vmatpush2.msra.mxu0 0.0
    %3115 = vmatprep.subr.mxu0 0.0
    %3116 = vmatpush2.msra.mxu0 0.0
    %3117 = vmatprep.subr.mxu0 0.0
    %3118 = vmatpush2.msra.mxu0 0.0
    %3119 = vmatprep.subr.mxu0 0.0
    %3120 = vmatpush2.msra.mxu0 0.0
    %3121 = vmatprep.subr.mxu0 0.0
    %3122 = vmatpush2.msra.mxu0 0.0
    %3123 = vmatprep.subr.mxu0 0.0
    %3124 = vmatpush2.msra.mxu0 0.0
    %3125 = vmatprep.mubr.f32.mxu0 0.0
    %3126 = vmatmul.mubr.f32.gmra.mxu0 %v3043
    %v3127 = vpop.f32.mrf.mxu0
    %v3128 = vadd.f32 0.0, %v3127
    %v3129 = vpop.f32.mrf.mxu0
    %3130 = vmatprep.mubr.f32.mxu0 0.0
    %3131 = vmatmul.mubr.f32.gmra.mxu0 %v3044
    %v3132 = vpop.f32.mrf.mxu0
    %v3133 = vadd.f32 0.0, %v3132
    %v3134 = vpop.f32.mrf.mxu0
    %3135 = vdwg.mxu0
    %v3136 = vxor.u32 %v3128, 2147483648
    %v3137 = vxor.u32 %v3133, 2147483648
    %v3138 = vmul.f32 %v3136, 1.442695
    %v3139 = vpow.pop %v3138
    %v3140 = vmul.f32 %v3137, 1.442695
    %v3141 = vpow.pop %v3140
    %v3142 = vadd.f32 %v3139, 1.0
    %v3143 = vadd.f32 %v3141, 1.0
    %v3144 = vrcp.pop %v3142
    %v3145 = vmul.f32 1.0, %v3144
    %v3146 = vrcp.pop %v3143
    %v3147 = vmul.f32 1.0, %v3146
    %v3148 = vmul.f32 %v3128, %v3145
    %v3149 = vmul.f32 %v3133, %v3147
    %v3150 = vld [vmem:[%s10] sm:$0xff]
    %v3151 = vld [vmem:[%s10 + $0x8] sm:$0xff]
    %v3152 = vld [vmem:[%s10 + $0x10] sm:$0xff]
    %v3153 = vld [vmem:[%s10 + $0x18] sm:$0xff]
    %v3154 = vld [vmem:[%s10 + $0x20] sm:$0xff]
    %v3155 = vld [vmem:[%s10 + $0x28] sm:$0xff]
    %v3156 = vld [vmem:[%s10 + $0x30] sm:$0xff]
    %v3157 = vld [vmem:[%s10 + $0x38] sm:$0xff]
    %v3158 = vld [vmem:[%s10 + $0x40] sm:$0xff]
    %v3159 = vld [vmem:[%s10 + $0x48] sm:$0xff]
    %v3160 = vld [vmem:[%s10 + $0x50] sm:$0xff]
    %v3161 = vld [vmem:[%s10 + $0x58] sm:$0xff]
    %v3162 = vld [vmem:[%s10 + $0x60] sm:$0xff]
    %v3163 = vld [vmem:[%s10 + $0x68] sm:$0xff]
    %v3164 = vld [vmem:[%s10 + $0x70] sm:$0xff]
    %v3165 = vld [vmem:[%s10 + $0x78] sm:$0xff]
    %3166 = vmatprep.subr.mxu0 0.0
    %3167 = vmatpush1.msra.mxu0 %v3165
    %3168 = vmatprep.subr.mxu0 0.0
    %3169 = vmatpush1.msra.mxu0 %v3164
    %3170 = vmatprep.subr.mxu0 0.0
    %3171 = vmatpush1.msra.mxu0 %v3163
    %3172 = vmatprep.subr.mxu0 0.0
    %3173 = vmatpush1.msra.mxu0 %v3162
    %3174 = vmatprep.subr.mxu0 0.0
    %3175 = vmatpush1.msra.mxu0 %v3161
    %3176 = vmatprep.subr.mxu0 0.0
    %3177 = vmatpush1.msra.mxu0 %v3160
    %3178 = vmatprep.subr.mxu0 0.0
    %3179 = vmatpush1.msra.mxu0 %v3159
    %3180 = vmatprep.subr.mxu0 0.0
    %3181 = vmatpush1.msra.mxu0 %v3158
    %3182 = vmatprep.subr.mxu0 0.0
    %3183 = vmatpush1.msra.mxu0 %v3157
    %3184 = vmatprep.subr.mxu0 0.0
    %3185 = vmatpush1.msra.mxu0 %v3156
    %3186 = vmatprep.subr.mxu0 0.0
    %3187 = vmatpush1.msra.mxu0 %v3155
    %3188 = vmatprep.subr.mxu0 0.0
    %3189 = vmatpush1.msra.mxu0 %v3154
    %3190 = vmatprep.subr.mxu0 0.0
    %3191 = vmatpush1.msra.mxu0 %v3153
    %3192 = vmatprep.subr.mxu0 0.0
    %3193 = vmatpush1.msra.mxu0 %v3152
    %3194 = vmatprep.subr.mxu0 0.0
    %3195 = vmatpush1.msra.mxu0 %v3151
    %3196 = vmatprep.subr.mxu0 0.0
    %3197 = vmatpush1.msra.mxu0 %v3150
    %3198 = vmatprep.subr.mxu0 0.0
    %3199 = vmatpush2.msra.mxu0 0.0
    %3200 = vmatprep.subr.mxu0 0.0
    %3201 = vmatpush2.msra.mxu0 0.0
    %3202 = vmatprep.subr.mxu0 0.0
    %3203 = vmatpush2.msra.mxu0 0.0
    %3204 = vmatprep.subr.mxu0 0.0
    %3205 = vmatpush2.msra.mxu0 0.0
    %3206 = vmatprep.subr.mxu0 0.0
    %3207 = vmatpush2.msra.mxu0 0.0
    %3208 = vmatprep.subr.mxu0 0.0
    %3209 = vmatpush2.msra.mxu0 0.0
    %3210 = vmatprep.subr.mxu0 0.0
    %3211 = vmatpush2.msra.mxu0 0.0
    %3212 = vmatprep.subr.mxu0 0.0
    %3213 = vmatpush2.msra.mxu0 0.0
    %3214 = vmatprep.subr.mxu0 0.0
    %3215 = vmatpush2.msra.mxu0 0.0
    %3216 = vmatprep.subr.mxu0 0.0
    %3217 = vmatpush2.msra.mxu0 0.0
    %3218 = vmatprep.subr.mxu0 0.0
    %3219 = vmatpush2.msra.mxu0 0.0
    %3220 = vmatprep.subr.mxu0 0.0
    %3221 = vmatpush2.msra.mxu0 0.0
    %3222 = vmatprep.subr.mxu0 0.0
    %3223 = vmatpush2.msra.mxu0 0.0
    %3224 = vmatprep.subr.mxu0 0.0
    %3225 = vmatpush2.msra.mxu0 0.0
    %3226 = vmatprep.subr.mxu0 0.0
    %3227 = vmatpush2.msra.mxu0 0.0
    %3228 = vmatprep.subr.mxu0 0.0
    %3229 = vmatpush2.msra.mxu0 0.0
    %3230 = vmatprep.mubr.f32.mxu0 0.0
    %3231 = vmatmul.mubr.f32.gmra.mxu0 %v3043
    %v3232 = vpop.f32.mrf.mxu0
    %v3233 = vadd.f32 0.0, %v3232
    %v3234 = vpop.f32.mrf.mxu0
    %3235 = vmatprep.mubr.f32.mxu0 0.0
    %3236 = vmatmul.mubr.f32.gmra.mxu0 %v3044
    %v3237 = vpop.f32.mrf.mxu0
    %v3238 = vadd.f32 0.0, %v3237
    %v3239 = vpop.f32.mrf.mxu0
    %3240 = vdwg.mxu0
    %v3241 = vmul.f32 %v3148, %v3233
    %v3242 = vmul.f32 %v3149, %v3238
    %v3243 = vld [vmem:[%s11] sm:$0xff]
    %v3244 = vld [vmem:[%s11 + $0x8] sm:$0xff]
    %v3245 = vld [vmem:[%s11 + $0x10] sm:$0xff]
    %v3246 = vld [vmem:[%s11 + $0x18] sm:$0xff]
    %v3247 = vld [vmem:[%s11 + $0x20] sm:$0xff]
    %v3248 = vld [vmem:[%s11 + $0x28] sm:$0xff]
    %v3249 = vld [vmem:[%s11 + $0x30] sm:$0xff]
    %v3250 = vld [vmem:[%s11 + $0x38] sm:$0xff]
    %v3251 = vld [vmem:[%s11 + $0x40] sm:$0xff]
    %v3252 = vld [vmem:[%s11 + $0x48] sm:$0xff]
    %v3253 = vld [vmem:[%s11 + $0x50] sm:$0xff]
    %v3254 = vld [vmem:[%s11 + $0x58] sm:$0xff]
    %v3255 = vld [vmem:[%s11 + $0x60] sm:$0xff]
    %v3256 = vld [vmem:[%s11 + $0x68] sm:$0xff]
    %v3257 = vld [vmem:[%s11 + $0x70] sm:$0xff]
    %v3258 = vld [vmem:[%s11 + $0x78] sm:$0xff]
    %3259 = vmatprep.subr.mxu0 0.0
    %3260 = vmatpush1.msra.mxu0 %v3258
    %3261 = vmatprep.subr.mxu0 0.0
    %3262 = vmatpush1.msra.mxu0 %v3257
    %3263 = vmatprep.subr.mxu0 0.0
    %3264 = vmatpush1.msra.mxu0 %v3256
    %3265 = vmatprep.subr.mxu0 0.0
    %3266 = vmatpush1.msra.mxu0 %v3255
    %3267 = vmatprep.subr.mxu0 0.0
    %3268 = vmatpush1.msra.mxu0 %v3254
    %3269 = vmatprep.subr.mxu0 0.0
    %3270 = vmatpush1.msra.mxu0 %v3253
    %3271 = vmatprep.subr.mxu0 0.0
    %3272 = vmatpush1.msra.mxu0 %v3252
    %3273 = vmatprep.subr.mxu0 0.0
    %3274 = vmatpush1.msra.mxu0 %v3251
    %3275 = vmatprep.subr.mxu0 0.0
    %3276 = vmatpush1.msra.mxu0 %v3250
    %3277 = vmatprep.subr.mxu0 0.0
    %3278 = vmatpush1.msra.mxu0 %v3249
    %3279 = vmatprep.subr.mxu0 0.0
    %3280 = vmatpush1.msra.mxu0 %v3248
    %3281 = vmatprep.subr.mxu0 0.0
    %3282 = vmatpush1.msra.mxu0 %v3247
    %3283 = vmatprep.subr.mxu0 0.0
    %3284 = vmatpush1.msra.mxu0 %v3246
    %3285 = vmatprep.subr.mxu0 0.0
    %3286 = vmatpush1.msra.mxu0 %v3245
    %3287 = vmatprep.subr.mxu0 0.0
    %3288 = vmatpush1.msra.mxu0 %v3244
    %3289 = vmatprep.subr.mxu0 0.0
    %3290 = vmatpush1.msra.mxu0 %v3243
    %3291 = vmatprep.subr.mxu0 0.0
    %3292 = vmatpush2.msra.mxu0 0.0
    %3293 = vmatprep.subr.mxu0 0.0
    %3294 = vmatpush2.msra.mxu0 0.0
    %3295 = vmatprep.subr.mxu0 0.0
    %3296 = vmatpush2.msra.mxu0 0.0
    %3297 = vmatprep.subr.mxu0 0.0
    %3298 = vmatpush2.msra.mxu0 0.0
    %3299 = vmatprep.subr.mxu0 0.0
    %3300 = vmatpush2.msra.mxu0 0.0
    %3301 = vmatprep.subr.mxu0 0.0
    %3302 = vmatpush2.msra.mxu0 0.0
    %3303 = vmatprep.subr.mxu0 0.0
    %3304 = vmatpush2.msra.mxu0 0.0
    %3305 = vmatprep.subr.mxu0 0.0
    %3306 = vmatpush2.msra.mxu0 0.0
    %3307 = vmatprep.subr.mxu0 0.0
    %3308 = vmatpush2.msra.mxu0 0.0
    %3309 = vmatprep.subr.mxu0 0.0
    %3310 = vmatpush2.msra.mxu0 0.0
    %3311 = vmatprep.subr.mxu0 0.0
    %3312 = vmatpush2.msra.mxu0 0.0
    %3313 = vmatprep.subr.mxu0 0.0
    %3314 = vmatpush2.msra.mxu0 0.0
    %3315 = vmatprep.subr.mxu0 0.0
    %3316 = vmatpush2.msra.mxu0 0.0
    %3317 = vmatprep.subr.mxu0 0.0
    %3318 = vmatpush2.msra.mxu0 0.0
    %3319 = vmatprep.subr.mxu0 0.0
    %3320 = vmatpush2.msra.mxu0 0.0
    %3321 = vmatprep.subr.mxu0 0.0
    %3322 = vmatpush2.msra.mxu0 0.0
    %3323 = vmatprep.mubr.f32.mxu0 0.0
    %3324 = vmatmul.mubr.f32.gmra.mxu0 %v3241
    %v3325 = vpop.f32.mrf.mxu0
    %v3326 = vadd.f32 0.0, %v3325
    %v3327 = vpop.f32.mrf.mxu0
    %3328 = vmatprep.mubr.f32.mxu0 0.0
    %3329 = vmatmul.mubr.f32.gmra.mxu0 %v3242
    %v3330 = vpop.f32.mrf.mxu0
    %v3331 = vadd.f32 0.0, %v3330
    %v3332 = vpop.f32.mrf.mxu0
    %3333 = vdwg.mxu0
    %v3334 = vadd.f32 %v3020, %v3326
    %v3335 = vadd.f32 %v3021, %v3331
    %3336 = vst [vmem:[#allocation2] sm:$0xff] %v3334
    %3337 = vst [vmem:[#allocation2 + $0x8] sm:$0xff] %v3335
    // Predicated region
    $region62: #{tpu_custom_call.1} parent=1 // pred_check
      _
    $region63: #{tpu_custom_call.1} parent=1 // pred_check_branch
      %3339 = sbr.rel (0) target = $region65
    $region64: #{tpu_custom_call.1} parent=1 // pred_region
      %s3341 = ssub.s32 256, 256
      %3342 = vsyncadd [#allocation3], %s3341
      %s3343 = sshll.u32 [#allocation2], 4
      %s3344 = int_to_ptr.vmem [resolvable:$true] %s3343
      %3349 = dma.vmem_to_hbm [thread:$0]  %s3344, 256, %s15, [#allocation3], 128, 128, 8
    $region65: #{tpu_custom_call.1} parent=1 // pred_fallthru
      _
    // Predicated region
    $region66: #{tpu_custom_call.1} parent=1 // pred_check
      _
    $region67: #{tpu_custom_call.1} parent=1 // pred_check_branch
      %3351 = sbr.rel (0) target = $region69
    $region68: #{tpu_custom_call.1} parent=1 // pred_region
      %3352 = dma.done [#allocation3], 256
    $region69: #{tpu_custom_call.1} parent=1 // pred_fallthru
      _
    %3353 = vsyncpa [#allocation3], 1

</llo_original>
